<compile_context>
chip_gen: v6e
topology: v6e:2x2x1
jax: 0.10.0
libtpu: 0.0.40
codegen_flags: <defaults>
</compile_context>

<pallas_src>
import jax
import jax.numpy as jnp
import numpy as np
from jax import lax
from jax.experimental import pallas as pl
from jax.experimental.pallas import tpu as pltpu


def stock_kernel(x_ref, gwi_ref, gbi_ref, gwh_ref, gbh_ref,
                 fwi_ref, fwh_ref, fb_ref, bwi_ref, bb_ref,
                 fcw_ref, fcb_ref, out_ref):
    # Per batch block:
    #   x:   (Bb, T, I)  batch-major input block
    #   gwi: (I, 3H) gbi: (1, 3H)  GRU input  side [r|z|n], r/z cols pre-scaled 0.5
    #   gwh: (H, 3H) gbh: (1, 3H)  GRU recur. side [r|z|n], r/z cols pre-scaled 0.5
    #   fwi/fwh: (H, 4H) fb: (1, 4H)  fwd-LSTM [i|f|g|o], sigmoid cols pre-scaled 0.5
    #   bwi: (H, 3H) bb: (1, 3H)  reverse LSTM reordered [i|o|g], sigmoid cols pre-scaled
    #   fcw: (1, 2H) fcb: (1, 1)  final Linear
    #   out: (Bb, 1)
    Bb, T, _ = x_ref.shape
    H = gwh_ref.shape[0]

    def mm(a, b):
        return jnp.dot(a, b, preferred_element_type=jnp.float32)

    xv = x_ref[...]
    gwi = gwi_ref[...]
    gwh = gwh_ref[...]
    fwi = fwi_ref[...]
    fwh = fwh_ref[...]
    # biases pre-broadcast once (JAX does not CSE broadcast_in_dim in a loop)
    gbi_b = jnp.broadcast_to(gbi_ref[...], (Bb, 3 * H))
    gbh_b = jnp.broadcast_to(gbh_ref[...], (Bb, 3 * H))
    fb_b = jnp.broadcast_to(fb_ref[...], (Bb, 4 * H))

    h_g = jnp.zeros((Bb, H), jnp.float32)
    h_f = jnp.zeros((Bb, H), jnp.float32)
    c_f = jnp.zeros((Bb, H), jnp.float32)

    # T is small & static -> fully unrolled (LLO cross-iteration visibility).
    # TODO(synk): for large T, switch to lax.fori_loop(..., unroll=4..8) with a
    # time-chunk 'arbitrary' grid axis + VMEM-scratch carries instead of full
    # unroll / whole-sequence residency (v7x: keep double-buffered chunks <48MiB).
    for t in range(T):
        x_t = xv[:, t, :]                                    # (Bb, I) static slice

        # --- GRU cell (PyTorch order r,z,n). 0.5 pre-scale folded into r/z
        #     columns -> both sigmoids are ONE tanh push over 2H lanes. ---
        gi = mm(x_t, gwi) + gbi_b                            # (Bb, 3H)
        gh = mm(h_g, gwh) + gbh_b                            # (Bb, 3H)
        t_rz = jnp.tanh(gi[:, :2 * H] + gh[:, :2 * H])       # one wide EUP push
        r = 0.5 * t_rz[:, :H] + 0.5
        z = 0.5 * t_rz[:, H:] + 0.5
        n = jnp.tanh(gi[:, 2 * H:] + r * gh[:, 2 * H:])      # one EUP push
        h_g = (1.0 - z) * n + z * h_g

        # --- forward LSTM cell (order i,f,g,o). Split matmuls: no per-step
        #     lane concat, and the h_f-side matmul only needs h_f(t-1) so it
        #     can be issued during the GRU step. Sigmoid columns pre-scaled by
        #     0.5 -> all four gate nonlinearities are ONE tanh over 4H lanes. ---
        gates = mm(h_g, fwi) + mm(h_f, fwh) + fb_b           # (Bb, 4H)
        t4 = jnp.tanh(gates)                                 # one wide EUP push
        sig4 = 0.5 * t4 + 0.5                                # full-width VPU FMA
        i = sig4[:, :H]
        f = sig4[:, H:2 * H]
        g = t4[:, 2 * H:3 * H]
        o = sig4[:, 3 * H:]
        c_f = f * c_f + i * g
        h_f = o * jnp.tanh(c_f)                              # one EUP push

    # --- reverse-LSTM output at position T-1: exactly one cell step from a
    #     zero state on h_g(T-1). Valid ONLY because the module consumes
    #     bilstm_out[:, -1, :] and h0=c0=0 (dead forget gate dropped, gates
    #     reordered to [i|o|g] and pre-scaled in the wrapper). ---
    gb = mm(h_g, bwi_ref[...]) + jnp.broadcast_to(bb_ref[...], (Bb, 3 * H))
    t3 = jnp.tanh(gb)                                        # one wide EUP push
    i_b = 0.5 * t3[:, :H] + 0.5
    o_b = 0.5 * t3[:, H:2 * H] + 0.5
    g_b = t3[:, 2 * H:]
    h_b = o_b * jnp.tanh(i_b * g_b)

    # --- final Linear as VPU multiply + lane reduce (no lane concat) ---
    fcw = fcw_ref[...]
    w_f = jnp.broadcast_to(fcw[:, :H], (Bb, H))
    w_b = jnp.broadcast_to(fcw[:, H:], (Bb, H))
    out_ref[...] = (jnp.sum(h_f * w_f, axis=-1, keepdims=True)
                    + jnp.sum(h_b * w_b, axis=-1, keepdims=True)
                    + fcb_ref[...])


def make_params(key, input_size, hidden_size):
    H = hidden_size
    bound = 1.0 / np.sqrt(H)
    keys = jax.random.split(key, 14)
    u = lambda kk, shape: jax.random.uniform(kk, shape, jnp.float32, -bound, bound)
    return dict(
        gru_w_ih=u(keys[0], (3 * H, input_size)),
        gru_w_hh=u(keys[1], (3 * H, H)),
        gru_b_ih=u(keys[2], (3 * H,)),
        gru_b_hh=u(keys[3], (3 * H,)),
        lstm_f_w_ih=u(keys[4], (4 * H, H)),
        lstm_f_w_hh=u(keys[5], (4 * H, H)),
        lstm_f_b_ih=u(keys[6], (4 * H,)),
        lstm_f_b_hh=u(keys[7], (4 * H,)),
        lstm_b_w_ih=u(keys[8], (4 * H, H)),
        lstm_b_w_hh=u(keys[9], (4 * H, H)),
        lstm_b_b_ih=u(keys[10], (4 * H,)),
        lstm_b_b_hh=u(keys[11], (4 * H,)),
        fc_w=u(keys[12], (1, 2 * H)),
        fc_b=u(keys[13], (1,)),
    )


def stock_prediction_forward(x, params):
    """x: (B, T, input_size), batch-first like the PyTorch module."""
    B, T, I = x.shape
    H = params["gru_w_hh"].shape[1]
    B_pad = max(8, ((B + 7) // 8) * 8)            # fill the f32 sublane count
    # NOTE: per-step cost is nearly flat in B up to ~128 MXU rows; batching
    # more sequences per call (B toward 32+) is close to free throughput.

    x = x.astype(jnp.float32)
    if B_pad != B:
        x = jnp.pad(x, ((0, B_pad - B), (0, 0), (0, 0)))
    # x stays batch-major: no wrapper-side transpose/reshape HBM round trip;
    # the per-step input projection happens in-kernel.

    # ---- fuse / reorder / pre-scale per-gate weights ----
    # sigmoid(v) = 0.5*tanh(0.5 v) + 0.5 exactly; the 0.5 pre-scale of sigmoid
    # gate columns is folded into weights & biases so each cell's gate
    # nonlinearities collapse into a single wide tanh (EUP) push in-kernel.
    s_gru = jnp.concatenate([jnp.full((2 * H,), 0.5, jnp.float32),
                             jnp.ones((H,), jnp.float32)])            # [r|z|n]
    s_lstm = jnp.concatenate([jnp.full((2 * H,), 0.5, jnp.float32),
                              jnp.ones((H,), jnp.float32),
                              jnp.full((H,), 0.5, jnp.float32)])       # [i|f|g|o]
    s_rev = s_gru                                                      # [i|o|g]

    gwi = params["gru_w_ih"].T * s_gru                                 # (I, 3H)
    gwh = params["gru_w_hh"].T * s_gru                                 # (H, 3H)
    gbi = (params["gru_b_ih"] * s_gru).reshape(1, 3 * H)
    gbh = (params["gru_b_hh"] * s_gru).reshape(1, 3 * H)

    fwi = params["lstm_f_w_ih"].T * s_lstm                             # (H, 4H)
    fwh = params["lstm_f_w_hh"].T * s_lstm                             # (H, 4H)
    fb = ((params["lstm_f_b_ih"] + params["lstm_f_b_hh"]) * s_lstm).reshape(1, 4 * H)

    bwi_t = params["lstm_b_w_ih"].T                                    # (H, 4H) [i|f|g|o]
    bwi = jnp.concatenate([bwi_t[:, :H], bwi_t[:, 3 * H:], bwi_t[:, 2 * H:3 * H]],
                          axis=1) * s_rev                              # (H, 3H) [i|o|g]
    bb_t = params["lstm_b_b_ih"] + params["lstm_b_b_hh"]
    bb = (jnp.concatenate([bb_t[:H], bb_t[3 * H:], bb_t[2 * H:3 * H]]) * s_rev
          ).reshape(1, 3 * H)

    fcw = params["fc_w"].reshape(1, 2 * H)
    fcb = params["fc_b"].reshape(1, 1)

    # Parallel batch grid axis: uses the second v7x TensorCore once there are
    # >= 2 blocks of >= 8 rows; small batches stay a single block (an extra
    # serial grid step on v5e/v6e would only add per-step overhead).
    if B_pad >= 16 and B_pad % 16 == 0:
        Bblk = B_pad // 2
    else:
        Bblk = B_pad
    grid = (B_pad // Bblk,)

    # TODO(synk): large-T/B streaming - time-chunk grid axis ('arbitrary'),
    # VMEM-scratch carries, per-chunk input projection; size chunks for v7x's
    # 64 MiB VMEM (32 MiB default scoped) with double buffering.
    # TODO(synk): optional v6e/v7x-only fusion of the gh and h_f-side matmuls
    # into one block-diagonal (B,2H)@(2H,7H) push (neutral on v5e's 128-wide MXU).

    def full_spec(a):
        nd = a.ndim
        return pl.BlockSpec(a.shape, lambda j, _nd=nd: (0,) * _nd)

    weights = (gwi, gbi, gwh, gbh, fwi, fwh, fb, bwi, bb, fcw, fcb)
    in_specs = ([pl.BlockSpec((Bblk, T, I), lambda j: (j, 0, 0))]
                + [full_spec(w) for w in weights])
    out_spec = pl.BlockSpec((Bblk, 1), lambda j: (j, 0))

    out = pl.pallas_call(
        stock_kernel,
        out_shape=jax.ShapeDtypeStruct((B_pad, 1), jnp.float32),
        grid=grid,
        in_specs=in_specs,
        out_specs=out_spec,
        compiler_params=pltpu.CompilerParams(
            dimension_semantics=("parallel",),
            vmem_limit_bytes=32 * 1024 * 1024),
    )(x, *weights)
    return out[:B]


def ref_forward(x, params):
    """Pure-JAX reference mirroring torch.nn.GRU / bidirectional LSTM / Linear."""
    B, T, I = x.shape
    H = params["gru_w_hh"].shape[1]
    h0 = jnp.zeros((B, H), jnp.float32)
    x_tm = jnp.transpose(x, (1, 0, 2))

    def gru_cell(h, xt):
        gi = xt @ params["gru_w_ih"].T + params["gru_b_ih"]
        gh = h @ params["gru_w_hh"].T + params["gru_b_hh"]
        ir, iz, inn = jnp.split(gi, 3, axis=1)
        hr, hz, hn = jnp.split(gh, 3, axis=1)
        r = jax.nn.sigmoid(ir + hr)
        z = jax.nn.sigmoid(iz + hz)
        n = jnp.tanh(inn + r * hn)
        h = (1.0 - z) * n + z * h
        return h, h

    def lstm_cell(w_ih, w_hh, b_ih, b_hh):
        def cell(carry, xt):
            h, c = carry
            gates = xt @ w_ih.T + b_ih + h @ w_hh.T + b_hh
            i, f, g, o = jnp.split(gates, 4, axis=1)
            i, f, o = jax.nn.sigmoid(i), jax.nn.sigmoid(f), jax.nn.sigmoid(o)
            g = jnp.tanh(g)
            c = f * c + i * g
            h = o * jnp.tanh(c)
            return (h, c), h
        return cell

    _, gru_out = lax.scan(gru_cell, h0, x_tm)                     # (T, B, H)
    fwd = lstm_cell(params["lstm_f_w_ih"], params["lstm_f_w_hh"],
                    params["lstm_f_b_ih"], params["lstm_f_b_hh"])
    bwd = lstm_cell(params["lstm_b_w_ih"], params["lstm_b_w_hh"],
                    params["lstm_b_b_ih"], params["lstm_b_b_hh"])
    _, out_f = lax.scan(fwd, (h0, h0), gru_out)
    _, out_b_rev = lax.scan(bwd, (h0, h0), gru_out[::-1])
    out_b = out_b_rev[::-1]
    last = jnp.concatenate([out_f[-1], out_b[-1]], axis=1)        # (B, 2H)
    return last @ params["fc_w"].T + params["fc_b"]


if __name__ == "__main__":
    B, T, I, H = 8, 8, 4, 32
    key = jax.random.PRNGKey(0)
    kx, kp = jax.random.split(key)
    x = jax.random.normal(kx, (B, T, I), jnp.float32)
    params = make_params(kp, I, H)

    out = jax.block_until_ready(stock_prediction_forward(x, params))
    ref = ref_forward(x, params)

    assert out.shape == (B, 1), out.shape
    np.testing.assert_allclose(np.asarray(out), np.asarray(ref),
                               rtol=1e-5, atol=1e-5)
    print("KERNEL_OK")
</pallas_src>

<mosaic_0001>
module attributes {stable_mosaic.version = 11 : i64} {
  func.func @stock_kernel(%arg0: i32, %arg1: memref<8x8x4xf32, #tpu.memory_space<vmem>>, %arg2: memref<4x96xf32, #tpu.memory_space<vmem>>, %arg3: memref<1x96xf32, #tpu.memory_space<vmem>>, %arg4: memref<32x96xf32, #tpu.memory_space<vmem>>, %arg5: memref<1x96xf32, #tpu.memory_space<vmem>>, %arg6: memref<32x128xf32, #tpu.memory_space<vmem>>, %arg7: memref<32x128xf32, #tpu.memory_space<vmem>>, %arg8: memref<1x128xf32, #tpu.memory_space<vmem>>, %arg9: memref<32x96xf32, #tpu.memory_space<vmem>>, %arg10: memref<1x96xf32, #tpu.memory_space<vmem>>, %arg11: memref<1x64xf32, #tpu.memory_space<vmem>>, %arg12: memref<1x1xf32, #tpu.memory_space<vmem>>, %arg13: memref<8x1xf32, #tpu.memory_space<vmem>>) attributes {dimension_semantics = [#tpu.dimension_semantics<parallel>], iteration_bounds = array<i64: 1>, scalar_prefetch = 0 : i64, scratch_operands = 0 : i64, tpu.core_type = #tpu.core_type<tc>, window_params = [{transform_indices = @transform_0, window_bounds = array<i64: 8, 8, 4>}, {pipeline_mode = #tpu.pipeline_mode<synchronous>, transform_indices = @transform_1, window_bounds = array<i64: 4, 96>}, {pipeline_mode = #tpu.pipeline_mode<synchronous>, transform_indices = @transform_2, window_bounds = array<i64: 1, 96>}, {pipeline_mode = #tpu.pipeline_mode<synchronous>, transform_indices = @transform_3, window_bounds = array<i64: 32, 96>}, {pipeline_mode = #tpu.pipeline_mode<synchronous>, transform_indices = @transform_4, window_bounds = array<i64: 1, 96>}, {pipeline_mode = #tpu.pipeline_mode<synchronous>, transform_indices = @transform_5, window_bounds = array<i64: 32, 128>}, {pipeline_mode = #tpu.pipeline_mode<synchronous>, transform_indices = @transform_6, window_bounds = array<i64: 32, 128>}, {pipeline_mode = #tpu.pipeline_mode<synchronous>, transform_indices = @transform_7, window_bounds = array<i64: 1, 128>}, {pipeline_mode = #tpu.pipeline_mode<synchronous>, transform_indices = @transform_8, window_bounds = array<i64: 32, 96>}, {pipeline_mode = #tpu.pipeline_mode<synchronous>, transform_indices = @transform_9, window_bounds = array<i64: 1, 96>}, {pipeline_mode = #tpu.pipeline_mode<synchronous>, transform_indices = @transform_10, window_bounds = array<i64: 1, 64>}, {pipeline_mode = #tpu.pipeline_mode<synchronous>, transform_indices = @transform_11, window_bounds = array<i64: 1, 1>}, {transform_indices = @transform_12, window_bounds = array<i64: 8, 1>}]} {
    %c0 = arith.constant 0 : index
    %c0_0 = arith.constant 0 : index
    %c0_1 = arith.constant 0 : index
    %0 = vector.load %arg1[%c0, %c0_0, %c0_1] : memref<8x8x4xf32, #tpu.memory_space<vmem>>, vector<8x8x4xf32>
    %c0_2 = arith.constant 0 : index
    %c0_3 = arith.constant 0 : index
    %1 = vector.load %arg2[%c0_2, %c0_3] : memref<4x96xf32, #tpu.memory_space<vmem>>, vector<4x96xf32>
    %c0_4 = arith.constant 0 : index
    %c0_5 = arith.constant 0 : index
    %2 = vector.load %arg4[%c0_4, %c0_5] : memref<32x96xf32, #tpu.memory_space<vmem>>, vector<32x96xf32>
    %c0_6 = arith.constant 0 : index
    %c0_7 = arith.constant 0 : index
    %3 = vector.load %arg6[%c0_6, %c0_7] : memref<32x128xf32, #tpu.memory_space<vmem>>, vector<32x128xf32>
    %c0_8 = arith.constant 0 : index
    %c0_9 = arith.constant 0 : index
    %4 = vector.load %arg7[%c0_8, %c0_9] : memref<32x128xf32, #tpu.memory_space<vmem>>, vector<32x128xf32>
    %c0_10 = arith.constant 0 : index
    %c0_11 = arith.constant 0 : index
    %5 = vector.load %arg3[%c0_10, %c0_11] : memref<1x96xf32, #tpu.memory_space<vmem>>, vector<1x96xf32>
    %6 = vector.shape_cast %5 : vector<1x96xf32> to vector<1x96xf32>
    %7 = vector.broadcast %6 : vector<1x96xf32> to vector<8x96xf32>
    %c0_12 = arith.constant 0 : index
    %c0_13 = arith.constant 0 : index
    %8 = vector.load %arg5[%c0_12, %c0_13] : memref<1x96xf32, #tpu.memory_space<vmem>>, vector<1x96xf32>
    %9 = vector.shape_cast %8 : vector<1x96xf32> to vector<1x96xf32>
    %10 = vector.broadcast %9 : vector<1x96xf32> to vector<8x96xf32>
    %c0_14 = arith.constant 0 : index
    %c0_15 = arith.constant 0 : index
    %11 = vector.load %arg8[%c0_14, %c0_15] : memref<1x128xf32, #tpu.memory_space<vmem>>, vector<1x128xf32>
    %12 = vector.shape_cast %11 : vector<1x128xf32> to vector<1x128xf32>
    %13 = vector.broadcast %12 : vector<1x128xf32> to vector<8x128xf32>
    %cst = arith.constant 0.000000e+00 : f32
    %14 = vector.broadcast %cst : f32 to vector<8x32xf32>
    %cst_16 = arith.constant 0.000000e+00 : f32
    %15 = vector.broadcast %cst_16 : f32 to vector<8x32xf32>
    %cst_17 = arith.constant 0.000000e+00 : f32
    %16 = vector.broadcast %cst_17 : f32 to vector<8x32xf32>
    %17 = vector.extract_strided_slice %0 {offsets = [0, 0, 0], sizes = [8, 1, 4], strides = [1, 1, 1]} : vector<8x8x4xf32> to vector<8x1x4xf32>
    %18 = vector.shape_cast %17 : vector<8x1x4xf32> to vector<8x4xf32>
    %cst_18 = arith.constant dense<0.000000e+00> : vector<8x96xf32>
    %19 = tpu.matmul %18, %1, %cst_18 {dimension_numbers = #tpu.dot_dimension_numbers<[1], [0], [0], [1], [0, 0, 1, 1], [], []>} : vector<8x4xf32>, vector<4x96xf32>, vector<8x96xf32> -> vector<8x96xf32>
    %20 = arith.addf %19, %7 : vector<8x96xf32>
    %cst_19 = arith.constant dense<0.000000e+00> : vector<8x96xf32>
    %21 = tpu.matmul %14, %2, %cst_19 {dimension_numbers = #tpu.dot_dimension_numbers<[1], [0], [0], [1], [0, 0, 1, 1], [], []>} : vector<8x32xf32>, vector<32x96xf32>, vector<8x96xf32> -> vector<8x96xf32>
    %22 = arith.addf %21, %10 : vector<8x96xf32>
    %23 = vector.extract_strided_slice %20 {offsets = [0, 0], sizes = [8, 64], strides = [1, 1]} : vector<8x96xf32> to vector<8x64xf32>
    %24 = vector.extract_strided_slice %22 {offsets = [0, 0], sizes = [8, 64], strides = [1, 1]} : vector<8x96xf32> to vector<8x64xf32>
    %25 = arith.addf %23, %24 : vector<8x64xf32>
    %26 = math.tanh %25 : vector<8x64xf32>
    %27 = vector.extract_strided_slice %26 {offsets = [0, 0], sizes = [8, 32], strides = [1, 1]} : vector<8x64xf32> to vector<8x32xf32>
    %cst_20 = arith.constant 5.000000e-01 : f32
    %28 = vector.broadcast %cst_20 : f32 to vector<8x32xf32>
    %29 = arith.mulf %28, %27 : vector<8x32xf32>
    %cst_21 = arith.constant 5.000000e-01 : f32
    %30 = vector.broadcast %cst_21 : f32 to vector<8x32xf32>
    %31 = arith.addf %29, %30 : vector<8x32xf32>
    %32 = vector.extract_strided_slice %26 {offsets = [0, 32], sizes = [8, 32], strides = [1, 1]} : vector<8x64xf32> to vector<8x32xf32>
    %cst_22 = arith.constant 5.000000e-01 : f32
    %33 = vector.broadcast %cst_22 : f32 to vector<8x32xf32>
    %34 = arith.mulf %33, %32 : vector<8x32xf32>
    %cst_23 = arith.constant 5.000000e-01 : f32
    %35 = vector.broadcast %cst_23 : f32 to vector<8x32xf32>
    %36 = arith.addf %34, %35 : vector<8x32xf32>
    %37 = vector.extract_strided_slice %20 {offsets = [0, 64], sizes = [8, 32], strides = [1, 1]} : vector<8x96xf32> to vector<8x32xf32>
    %38 = vector.extract_strided_slice %22 {offsets = [0, 64], sizes = [8, 32], strides = [1, 1]} : vector<8x96xf32> to vector<8x32xf32>
    %39 = arith.mulf %31, %38 : vector<8x32xf32>
    %40 = arith.addf %37, %39 : vector<8x32xf32>
    %41 = math.tanh %40 : vector<8x32xf32>
    %cst_24 = arith.constant 1.000000e+00 : f32
    %42 = vector.broadcast %cst_24 : f32 to vector<8x32xf32>
    %43 = arith.subf %42, %36 : vector<8x32xf32>
    %44 = arith.mulf %43, %41 : vector<8x32xf32>
    %45 = arith.mulf %36, %14 : vector<8x32xf32>
    %46 = arith.addf %44, %45 : vector<8x32xf32>
    %cst_25 = arith.constant dense<0.000000e+00> : vector<8x128xf32>
    %47 = tpu.matmul %46, %3, %cst_25 {dimension_numbers = #tpu.dot_dimension_numbers<[1], [0], [0], [1], [0, 0, 1, 1], [], []>} : vector<8x32xf32>, vector<32x128xf32>, vector<8x128xf32> -> vector<8x128xf32>
    %cst_26 = arith.constant dense<0.000000e+00> : vector<8x128xf32>
    %48 = tpu.matmul %15, %4, %cst_26 {dimension_numbers = #tpu.dot_dimension_numbers<[1], [0], [0], [1], [0, 0, 1, 1], [], []>} : vector<8x32xf32>, vector<32x128xf32>, vector<8x128xf32> -> vector<8x128xf32>
    %49 = arith.addf %47, %48 : vector<8x128xf32>
    %50 = arith.addf %49, %13 : vector<8x128xf32>
    %51 = math.tanh %50 : vector<8x128xf32>
    %cst_27 = arith.constant 5.000000e-01 : f32
    %52 = vector.broadcast %cst_27 : f32 to vector<8x128xf32>
    %53 = arith.mulf %52, %51 : vector<8x128xf32>
    %cst_28 = arith.constant 5.000000e-01 : f32
    %54 = vector.broadcast %cst_28 : f32 to vector<8x128xf32>
    %55 = arith.addf %53, %54 : vector<8x128xf32>
    %56 = vector.extract_strided_slice %55 {offsets = [0, 0], sizes = [8, 32], strides = [1, 1]} : vector<8x128xf32> to vector<8x32xf32>
    %57 = vector.extract_strided_slice %55 {offsets = [0, 32], sizes = [8, 32], strides = [1, 1]} : vector<8x128xf32> to vector<8x32xf32>
    %58 = vector.extract_strided_slice %51 {offsets = [0, 64], sizes = [8, 32], strides = [1, 1]} : vector<8x128xf32> to vector<8x32xf32>
    %59 = vector.extract_strided_slice %55 {offsets = [0, 96], sizes = [8, 32], strides = [1, 1]} : vector<8x128xf32> to vector<8x32xf32>
    %60 = arith.mulf %57, %16 : vector<8x32xf32>
    %61 = arith.mulf %56, %58 : vector<8x32xf32>
    %62 = arith.addf %60, %61 : vector<8x32xf32>
    %63 = math.tanh %62 : vector<8x32xf32>
    %64 = arith.mulf %59, %63 : vector<8x32xf32>
    %65 = vector.extract_strided_slice %0 {offsets = [0, 1, 0], sizes = [8, 1, 4], strides = [1, 1, 1]} : vector<8x8x4xf32> to vector<8x1x4xf32>
    %66 = vector.shape_cast %65 : vector<8x1x4xf32> to vector<8x4xf32>
    %cst_29 = arith.constant dense<0.000000e+00> : vector<8x96xf32>
    %67 = tpu.matmul %66, %1, %cst_29 {dimension_numbers = #tpu.dot_dimension_numbers<[1], [0], [0], [1], [0, 0, 1, 1], [], []>} : vector<8x4xf32>, vector<4x96xf32>, vector<8x96xf32> -> vector<8x96xf32>
    %68 = arith.addf %67, %7 : vector<8x96xf32>
    %cst_30 = arith.constant dense<0.000000e+00> : vector<8x96xf32>
    %69 = tpu.matmul %46, %2, %cst_30 {dimension_numbers = #tpu.dot_dimension_numbers<[1], [0], [0], [1], [0, 0, 1, 1], [], []>} : vector<8x32xf32>, vector<32x96xf32>, vector<8x96xf32> -> vector<8x96xf32>
    %70 = arith.addf %69, %10 : vector<8x96xf32>
    %71 = vector.extract_strided_slice %68 {offsets = [0, 0], sizes = [8, 64], strides = [1, 1]} : vector<8x96xf32> to vector<8x64xf32>
    %72 = vector.extract_strided_slice %70 {offsets = [0, 0], sizes = [8, 64], strides = [1, 1]} : vector<8x96xf32> to vector<8x64xf32>
    %73 = arith.addf %71, %72 : vector<8x64xf32>
    %74 = math.tanh %73 : vector<8x64xf32>
    %75 = vector.extract_strided_slice %74 {offsets = [0, 0], sizes = [8, 32], strides = [1, 1]} : vector<8x64xf32> to vector<8x32xf32>
    %cst_31 = arith.constant 5.000000e-01 : f32
    %76 = vector.broadcast %cst_31 : f32 to vector<8x32xf32>
    %77 = arith.mulf %76, %75 : vector<8x32xf32>
    %cst_32 = arith.constant 5.000000e-01 : f32
    %78 = vector.broadcast %cst_32 : f32 to vector<8x32xf32>
    %79 = arith.addf %77, %78 : vector<8x32xf32>
    %80 = vector.extract_strided_slice %74 {offsets = [0, 32], sizes = [8, 32], strides = [1, 1]} : vector<8x64xf32> to vector<8x32xf32>
    %cst_33 = arith.constant 5.000000e-01 : f32
    %81 = vector.broadcast %cst_33 : f32 to vector<8x32xf32>
    %82 = arith.mulf %81, %80 : vector<8x32xf32>
    %cst_34 = arith.constant 5.000000e-01 : f32
    %83 = vector.broadcast %cst_34 : f32 to vector<8x32xf32>
    %84 = arith.addf %82, %83 : vector<8x32xf32>
    %85 = vector.extract_strided_slice %68 {offsets = [0, 64], sizes = [8, 32], strides = [1, 1]} : vector<8x96xf32> to vector<8x32xf32>
    %86 = vector.extract_strided_slice %70 {offsets = [0, 64], sizes = [8, 32], strides = [1, 1]} : vector<8x96xf32> to vector<8x32xf32>
    %87 = arith.mulf %79, %86 : vector<8x32xf32>
    %88 = arith.addf %85, %87 : vector<8x32xf32>
    %89 = math.tanh %88 : vector<8x32xf32>
    %cst_35 = arith.constant 1.000000e+00 : f32
    %90 = vector.broadcast %cst_35 : f32 to vector<8x32xf32>
    %91 = arith.subf %90, %84 : vector<8x32xf32>
    %92 = arith.mulf %91, %89 : vector<8x32xf32>
    %93 = arith.mulf %84, %46 : vector<8x32xf32>
    %94 = arith.addf %92, %93 : vector<8x32xf32>
    %cst_36 = arith.constant dense<0.000000e+00> : vector<8x128xf32>
    %95 = tpu.matmul %94, %3, %cst_36 {dimension_numbers = #tpu.dot_dimension_numbers<[1], [0], [0], [1], [0, 0, 1, 1], [], []>} : vector<8x32xf32>, vector<32x128xf32>, vector<8x128xf32> -> vector<8x128xf32>
    %cst_37 = arith.constant dense<0.000000e+00> : vector<8x128xf32>
    %96 = tpu.matmul %64, %4, %cst_37 {dimension_numbers = #tpu.dot_dimension_numbers<[1], [0], [0], [1], [0, 0, 1, 1], [], []>} : vector<8x32xf32>, vector<32x128xf32>, vector<8x128xf32> -> vector<8x128xf32>
    %97 = arith.addf %95, %96 : vector<8x128xf32>
    %98 = arith.addf %97, %13 : vector<8x128xf32>
    %99 = math.tanh %98 : vector<8x128xf32>
    %cst_38 = arith.constant 5.000000e-01 : f32
    %100 = vector.broadcast %cst_38 : f32 to vector<8x128xf32>
    %101 = arith.mulf %100, %99 : vector<8x128xf32>
    %cst_39 = arith.constant 5.000000e-01 : f32
    %102 = vector.broadcast %cst_39 : f32 to vector<8x128xf32>
    %103 = arith.addf %101, %102 : vector<8x128xf32>
    %104 = vector.extract_strided_slice %103 {offsets = [0, 0], sizes = [8, 32], strides = [1, 1]} : vector<8x128xf32> to vector<8x32xf32>
    %105 = vector.extract_strided_slice %103 {offsets = [0, 32], sizes = [8, 32], strides = [1, 1]} : vector<8x128xf32> to vector<8x32xf32>
    %106 = vector.extract_strided_slice %99 {offsets = [0, 64], sizes = [8, 32], strides = [1, 1]} : vector<8x128xf32> to vector<8x32xf32>
    %107 = vector.extract_strided_slice %103 {offsets = [0, 96], sizes = [8, 32], strides = [1, 1]} : vector<8x128xf32> to vector<8x32xf32>
    %108 = arith.mulf %105, %62 : vector<8x32xf32>
    %109 = arith.mulf %104, %106 : vector<8x32xf32>
    %110 = arith.addf %108, %109 : vector<8x32xf32>
    %111 = math.tanh %110 : vector<8x32xf32>
    %112 = arith.mulf %107, %111 : vector<8x32xf32>
    %113 = vector.extract_strided_slice %0 {offsets = [0, 2, 0], sizes = [8, 1, 4], strides = [1, 1, 1]} : vector<8x8x4xf32> to vector<8x1x4xf32>
    %114 = vector.shape_cast %113 : vector<8x1x4xf32> to vector<8x4xf32>
    %cst_40 = arith.constant dense<0.000000e+00> : vector<8x96xf32>
    %115 = tpu.matmul %114, %1, %cst_40 {dimension_numbers = #tpu.dot_dimension_numbers<[1], [0], [0], [1], [0, 0, 1, 1], [], []>} : vector<8x4xf32>, vector<4x96xf32>, vector<8x96xf32> -> vector<8x96xf32>
    %116 = arith.addf %115, %7 : vector<8x96xf32>
    %cst_41 = arith.constant dense<0.000000e+00> : vector<8x96xf32>
    %117 = tpu.matmul %94, %2, %cst_41 {dimension_numbers = #tpu.dot_dimension_numbers<[1], [0], [0], [1], [0, 0, 1, 1], [], []>} : vector<8x32xf32>, vector<32x96xf32>, vector<8x96xf32> -> vector<8x96xf32>
    %118 = arith.addf %117, %10 : vector<8x96xf32>
    %119 = vector.extract_strided_slice %116 {offsets = [0, 0], sizes = [8, 64], strides = [1, 1]} : vector<8x96xf32> to vector<8x64xf32>
    %120 = vector.extract_strided_slice %118 {offsets = [0, 0], sizes = [8, 64], strides = [1, 1]} : vector<8x96xf32> to vector<8x64xf32>
    %121 = arith.addf %119, %120 : vector<8x64xf32>
    %122 = math.tanh %121 : vector<8x64xf32>
    %123 = vector.extract_strided_slice %122 {offsets = [0, 0], sizes = [8, 32], strides = [1, 1]} : vector<8x64xf32> to vector<8x32xf32>
    %cst_42 = arith.constant 5.000000e-01 : f32
    %124 = vector.broadcast %cst_42 : f32 to vector<8x32xf32>
    %125 = arith.mulf %124, %123 : vector<8x32xf32>
    %cst_43 = arith.constant 5.000000e-01 : f32
    %126 = vector.broadcast %cst_43 : f32 to vector<8x32xf32>
    %127 = arith.addf %125, %126 : vector<8x32xf32>
    %128 = vector.extract_strided_slice %122 {offsets = [0, 32], sizes = [8, 32], strides = [1, 1]} : vector<8x64xf32> to vector<8x32xf32>
    %cst_44 = arith.constant 5.000000e-01 : f32
    %129 = vector.broadcast %cst_44 : f32 to vector<8x32xf32>
    %130 = arith.mulf %129, %128 : vector<8x32xf32>
    %cst_45 = arith.constant 5.000000e-01 : f32
    %131 = vector.broadcast %cst_45 : f32 to vector<8x32xf32>
    %132 = arith.addf %130, %131 : vector<8x32xf32>
    %133 = vector.extract_strided_slice %116 {offsets = [0, 64], sizes = [8, 32], strides = [1, 1]} : vector<8x96xf32> to vector<8x32xf32>
    %134 = vector.extract_strided_slice %118 {offsets = [0, 64], sizes = [8, 32], strides = [1, 1]} : vector<8x96xf32> to vector<8x32xf32>
    %135 = arith.mulf %127, %134 : vector<8x32xf32>
    %136 = arith.addf %133, %135 : vector<8x32xf32>
    %137 = math.tanh %136 : vector<8x32xf32>
    %cst_46 = arith.constant 1.000000e+00 : f32
    %138 = vector.broadcast %cst_46 : f32 to vector<8x32xf32>
    %139 = arith.subf %138, %132 : vector<8x32xf32>
    %140 = arith.mulf %139, %137 : vector<8x32xf32>
    %141 = arith.mulf %132, %94 : vector<8x32xf32>
    %142 = arith.addf %140, %141 : vector<8x32xf32>
    %cst_47 = arith.constant dense<0.000000e+00> : vector<8x128xf32>
    %143 = tpu.matmul %142, %3, %cst_47 {dimension_numbers = #tpu.dot_dimension_numbers<[1], [0], [0], [1], [0, 0, 1, 1], [], []>} : vector<8x32xf32>, vector<32x128xf32>, vector<8x128xf32> -> vector<8x128xf32>
    %cst_48 = arith.constant dense<0.000000e+00> : vector<8x128xf32>
    %144 = tpu.matmul %112, %4, %cst_48 {dimension_numbers = #tpu.dot_dimension_numbers<[1], [0], [0], [1], [0, 0, 1, 1], [], []>} : vector<8x32xf32>, vector<32x128xf32>, vector<8x128xf32> -> vector<8x128xf32>
    %145 = arith.addf %143, %144 : vector<8x128xf32>
    %146 = arith.addf %145, %13 : vector<8x128xf32>
    %147 = math.tanh %146 : vector<8x128xf32>
    %cst_49 = arith.constant 5.000000e-01 : f32
    %148 = vector.broadcast %cst_49 : f32 to vector<8x128xf32>
    %149 = arith.mulf %148, %147 : vector<8x128xf32>
    %cst_50 = arith.constant 5.000000e-01 : f32
    %150 = vector.broadcast %cst_50 : f32 to vector<8x128xf32>
    %151 = arith.addf %149, %150 : vector<8x128xf32>
    %152 = vector.extract_strided_slice %151 {offsets = [0, 0], sizes = [8, 32], strides = [1, 1]} : vector<8x128xf32> to vector<8x32xf32>
    %153 = vector.extract_strided_slice %151 {offsets = [0, 32], sizes = [8, 32], strides = [1, 1]} : vector<8x128xf32> to vector<8x32xf32>
    %154 = vector.extract_strided_slice %147 {offsets = [0, 64], sizes = [8, 32], strides = [1, 1]} : vector<8x128xf32> to vector<8x32xf32>
    %155 = vector.extract_strided_slice %151 {offsets = [0, 96], sizes = [8, 32], strides = [1, 1]} : vector<8x128xf32> to vector<8x32xf32>
    %156 = arith.mulf %153, %110 : vector<8x32xf32>
    %157 = arith.mulf %152, %154 : vector<8x32xf32>
    %158 = arith.addf %156, %157 : vector<8x32xf32>
    %159 = math.tanh %158 : vector<8x32xf32>
    %160 = arith.mulf %155, %159 : vector<8x32xf32>
    %161 = vector.extract_strided_slice %0 {offsets = [0, 3, 0], sizes = [8, 1, 4], strides = [1, 1, 1]} : vector<8x8x4xf32> to vector<8x1x4xf32>
    %162 = vector.shape_cast %161 : vector<8x1x4xf32> to vector<8x4xf32>
    %cst_51 = arith.constant dense<0.000000e+00> : vector<8x96xf32>
    %163 = tpu.matmul %162, %1, %cst_51 {dimension_numbers = #tpu.dot_dimension_numbers<[1], [0], [0], [1], [0, 0, 1, 1], [], []>} : vector<8x4xf32>, vector<4x96xf32>, vector<8x96xf32> -> vector<8x96xf32>
    %164 = arith.addf %163, %7 : vector<8x96xf32>
    %cst_52 = arith.constant dense<0.000000e+00> : vector<8x96xf32>
    %165 = tpu.matmul %142, %2, %cst_52 {dimension_numbers = #tpu.dot_dimension_numbers<[1], [0], [0], [1], [0, 0, 1, 1], [], []>} : vector<8x32xf32>, vector<32x96xf32>, vector<8x96xf32> -> vector<8x96xf32>
    %166 = arith.addf %165, %10 : vector<8x96xf32>
    %167 = vector.extract_strided_slice %164 {offsets = [0, 0], sizes = [8, 64], strides = [1, 1]} : vector<8x96xf32> to vector<8x64xf32>
    %168 = vector.extract_strided_slice %166 {offsets = [0, 0], sizes = [8, 64], strides = [1, 1]} : vector<8x96xf32> to vector<8x64xf32>
    %169 = arith.addf %167, %168 : vector<8x64xf32>
    %170 = math.tanh %169 : vector<8x64xf32>
    %171 = vector.extract_strided_slice %170 {offsets = [0, 0], sizes = [8, 32], strides = [1, 1]} : vector<8x64xf32> to vector<8x32xf32>
    %cst_53 = arith.constant 5.000000e-01 : f32
    %172 = vector.broadcast %cst_53 : f32 to vector<8x32xf32>
    %173 = arith.mulf %172, %171 : vector<8x32xf32>
    %cst_54 = arith.constant 5.000000e-01 : f32
    %174 = vector.broadcast %cst_54 : f32 to vector<8x32xf32>
    %175 = arith.addf %173, %174 : vector<8x32xf32>
    %176 = vector.extract_strided_slice %170 {offsets = [0, 32], sizes = [8, 32], strides = [1, 1]} : vector<8x64xf32> to vector<8x32xf32>
    %cst_55 = arith.constant 5.000000e-01 : f32
    %177 = vector.broadcast %cst_55 : f32 to vector<8x32xf32>
    %178 = arith.mulf %177, %176 : vector<8x32xf32>
    %cst_56 = arith.constant 5.000000e-01 : f32
    %179 = vector.broadcast %cst_56 : f32 to vector<8x32xf32>
    %180 = arith.addf %178, %179 : vector<8x32xf32>
    %181 = vector.extract_strided_slice %164 {offsets = [0, 64], sizes = [8, 32], strides = [1, 1]} : vector<8x96xf32> to vector<8x32xf32>
    %182 = vector.extract_strided_slice %166 {offsets = [0, 64], sizes = [8, 32], strides = [1, 1]} : vector<8x96xf32> to vector<8x32xf32>
    %183 = arith.mulf %175, %182 : vector<8x32xf32>
    %184 = arith.addf %181, %183 : vector<8x32xf32>
    %185 = math.tanh %184 : vector<8x32xf32>
    %cst_57 = arith.constant 1.000000e+00 : f32
    %186 = vector.broadcast %cst_57 : f32 to vector<8x32xf32>
    %187 = arith.subf %186, %180 : vector<8x32xf32>
    %188 = arith.mulf %187, %185 : vector<8x32xf32>
    %189 = arith.mulf %180, %142 : vector<8x32xf32>
    %190 = arith.addf %188, %189 : vector<8x32xf32>
    %cst_58 = arith.constant dense<0.000000e+00> : vector<8x128xf32>
    %191 = tpu.matmul %190, %3, %cst_58 {dimension_numbers = #tpu.dot_dimension_numbers<[1], [0], [0], [1], [0, 0, 1, 1], [], []>} : vector<8x32xf32>, vector<32x128xf32>, vector<8x128xf32> -> vector<8x128xf32>
    %cst_59 = arith.constant dense<0.000000e+00> : vector<8x128xf32>
    %192 = tpu.matmul %160, %4, %cst_59 {dimension_numbers = #tpu.dot_dimension_numbers<[1], [0], [0], [1], [0, 0, 1, 1], [], []>} : vector<8x32xf32>, vector<32x128xf32>, vector<8x128xf32> -> vector<8x128xf32>
    %193 = arith.addf %191, %192 : vector<8x128xf32>
    %194 = arith.addf %193, %13 : vector<8x128xf32>
    %195 = math.tanh %194 : vector<8x128xf32>
    %cst_60 = arith.constant 5.000000e-01 : f32
    %196 = vector.broadcast %cst_60 : f32 to vector<8x128xf32>
    %197 = arith.mulf %196, %195 : vector<8x128xf32>
    %cst_61 = arith.constant 5.000000e-01 : f32
    %198 = vector.broadcast %cst_61 : f32 to vector<8x128xf32>
    %199 = arith.addf %197, %198 : vector<8x128xf32>
    %200 = vector.extract_strided_slice %199 {offsets = [0, 0], sizes = [8, 32], strides = [1, 1]} : vector<8x128xf32> to vector<8x32xf32>
    %201 = vector.extract_strided_slice %199 {offsets = [0, 32], sizes = [8, 32], strides = [1, 1]} : vector<8x128xf32> to vector<8x32xf32>
    %202 = vector.extract_strided_slice %195 {offsets = [0, 64], sizes = [8, 32], strides = [1, 1]} : vector<8x128xf32> to vector<8x32xf32>
    %203 = vector.extract_strided_slice %199 {offsets = [0, 96], sizes = [8, 32], strides = [1, 1]} : vector<8x128xf32> to vector<8x32xf32>
    %204 = arith.mulf %201, %158 : vector<8x32xf32>
    %205 = arith.mulf %200, %202 : vector<8x32xf32>
    %206 = arith.addf %204, %205 : vector<8x32xf32>
    %207 = math.tanh %206 : vector<8x32xf32>
    %208 = arith.mulf %203, %207 : vector<8x32xf32>
    %209 = vector.extract_strided_slice %0 {offsets = [0, 4, 0], sizes = [8, 1, 4], strides = [1, 1, 1]} : vector<8x8x4xf32> to vector<8x1x4xf32>
    %210 = vector.shape_cast %209 : vector<8x1x4xf32> to vector<8x4xf32>
    %cst_62 = arith.constant dense<0.000000e+00> : vector<8x96xf32>
    %211 = tpu.matmul %210, %1, %cst_62 {dimension_numbers = #tpu.dot_dimension_numbers<[1], [0], [0], [1], [0, 0, 1, 1], [], []>} : vector<8x4xf32>, vector<4x96xf32>, vector<8x96xf32> -> vector<8x96xf32>
    %212 = arith.addf %211, %7 : vector<8x96xf32>
    %cst_63 = arith.constant dense<0.000000e+00> : vector<8x96xf32>
    %213 = tpu.matmul %190, %2, %cst_63 {dimension_numbers = #tpu.dot_dimension_numbers<[1], [0], [0], [1], [0, 0, 1, 1], [], []>} : vector<8x32xf32>, vector<32x96xf32>, vector<8x96xf32> -> vector<8x96xf32>
    %214 = arith.addf %213, %10 : vector<8x96xf32>
    %215 = vector.extract_strided_slice %212 {offsets = [0, 0], sizes = [8, 64], strides = [1, 1]} : vector<8x96xf32> to vector<8x64xf32>
    %216 = vector.extract_strided_slice %214 {offsets = [0, 0], sizes = [8, 64], strides = [1, 1]} : vector<8x96xf32> to vector<8x64xf32>
    %217 = arith.addf %215, %216 : vector<8x64xf32>
    %218 = math.tanh %217 : vector<8x64xf32>
    %219 = vector.extract_strided_slice %218 {offsets = [0, 0], sizes = [8, 32], strides = [1, 1]} : vector<8x64xf32> to vector<8x32xf32>
    %cst_64 = arith.constant 5.000000e-01 : f32
    %220 = vector.broadcast %cst_64 : f32 to vector<8x32xf32>
    %221 = arith.mulf %220, %219 : vector<8x32xf32>
    %cst_65 = arith.constant 5.000000e-01 : f32
    %222 = vector.broadcast %cst_65 : f32 to vector<8x32xf32>
    %223 = arith.addf %221, %222 : vector<8x32xf32>
    %224 = vector.extract_strided_slice %218 {offsets = [0, 32], sizes = [8, 32], strides = [1, 1]} : vector<8x64xf32> to vector<8x32xf32>
    %cst_66 = arith.constant 5.000000e-01 : f32
    %225 = vector.broadcast %cst_66 : f32 to vector<8x32xf32>
    %226 = arith.mulf %225, %224 : vector<8x32xf32>
    %cst_67 = arith.constant 5.000000e-01 : f32
    %227 = vector.broadcast %cst_67 : f32 to vector<8x32xf32>
    %228 = arith.addf %226, %227 : vector<8x32xf32>
    %229 = vector.extract_strided_slice %212 {offsets = [0, 64], sizes = [8, 32], strides = [1, 1]} : vector<8x96xf32> to vector<8x32xf32>
    %230 = vector.extract_strided_slice %214 {offsets = [0, 64], sizes = [8, 32], strides = [1, 1]} : vector<8x96xf32> to vector<8x32xf32>
    %231 = arith.mulf %223, %230 : vector<8x32xf32>
    %232 = arith.addf %229, %231 : vector<8x32xf32>
    %233 = math.tanh %232 : vector<8x32xf32>
    %cst_68 = arith.constant 1.000000e+00 : f32
    %234 = vector.broadcast %cst_68 : f32 to vector<8x32xf32>
    %235 = arith.subf %234, %228 : vector<8x32xf32>
    %236 = arith.mulf %235, %233 : vector<8x32xf32>
    %237 = arith.mulf %228, %190 : vector<8x32xf32>
    %238 = arith.addf %236, %237 : vector<8x32xf32>
    %cst_69 = arith.constant dense<0.000000e+00> : vector<8x128xf32>
    %239 = tpu.matmul %238, %3, %cst_69 {dimension_numbers = #tpu.dot_dimension_numbers<[1], [0], [0], [1], [0, 0, 1, 1], [], []>} : vector<8x32xf32>, vector<32x128xf32>, vector<8x128xf32> -> vector<8x128xf32>
    %cst_70 = arith.constant dense<0.000000e+00> : vector<8x128xf32>
    %240 = tpu.matmul %208, %4, %cst_70 {dimension_numbers = #tpu.dot_dimension_numbers<[1], [0], [0], [1], [0, 0, 1, 1], [], []>} : vector<8x32xf32>, vector<32x128xf32>, vector<8x128xf32> -> vector<8x128xf32>
    %241 = arith.addf %239, %240 : vector<8x128xf32>
    %242 = arith.addf %241, %13 : vector<8x128xf32>
    %243 = math.tanh %242 : vector<8x128xf32>
    %cst_71 = arith.constant 5.000000e-01 : f32
    %244 = vector.broadcast %cst_71 : f32 to vector<8x128xf32>
    %245 = arith.mulf %244, %243 : vector<8x128xf32>
    %cst_72 = arith.constant 5.000000e-01 : f32
    %246 = vector.broadcast %cst_72 : f32 to vector<8x128xf32>
    %247 = arith.addf %245, %246 : vector<8x128xf32>
    %248 = vector.extract_strided_slice %247 {offsets = [0, 0], sizes = [8, 32], strides = [1, 1]} : vector<8x128xf32> to vector<8x32xf32>
    %249 = vector.extract_strided_slice %247 {offsets = [0, 32], sizes = [8, 32], strides = [1, 1]} : vector<8x128xf32> to vector<8x32xf32>
    %250 = vector.extract_strided_slice %243 {offsets = [0, 64], sizes = [8, 32], strides = [1, 1]} : vector<8x128xf32> to vector<8x32xf32>
    %251 = vector.extract_strided_slice %247 {offsets = [0, 96], sizes = [8, 32], strides = [1, 1]} : vector<8x128xf32> to vector<8x32xf32>
    %252 = arith.mulf %249, %206 : vector<8x32xf32>
    %253 = arith.mulf %248, %250 : vector<8x32xf32>
    %254 = arith.addf %252, %253 : vector<8x32xf32>
    %255 = math.tanh %254 : vector<8x32xf32>
    %256 = arith.mulf %251, %255 : vector<8x32xf32>
    %257 = vector.extract_strided_slice %0 {offsets = [0, 5, 0], sizes = [8, 1, 4], strides = [1, 1, 1]} : vector<8x8x4xf32> to vector<8x1x4xf32>
    %258 = vector.shape_cast %257 : vector<8x1x4xf32> to vector<8x4xf32>
    %cst_73 = arith.constant dense<0.000000e+00> : vector<8x96xf32>
    %259 = tpu.matmul %258, %1, %cst_73 {dimension_numbers = #tpu.dot_dimension_numbers<[1], [0], [0], [1], [0, 0, 1, 1], [], []>} : vector<8x4xf32>, vector<4x96xf32>, vector<8x96xf32> -> vector<8x96xf32>
    %260 = arith.addf %259, %7 : vector<8x96xf32>
    %cst_74 = arith.constant dense<0.000000e+00> : vector<8x96xf32>
    %261 = tpu.matmul %238, %2, %cst_74 {dimension_numbers = #tpu.dot_dimension_numbers<[1], [0], [0], [1], [0, 0, 1, 1], [], []>} : vector<8x32xf32>, vector<32x96xf32>, vector<8x96xf32> -> vector<8x96xf32>
    %262 = arith.addf %261, %10 : vector<8x96xf32>
    %263 = vector.extract_strided_slice %260 {offsets = [0, 0], sizes = [8, 64], strides = [1, 1]} : vector<8x96xf32> to vector<8x64xf32>
    %264 = vector.extract_strided_slice %262 {offsets = [0, 0], sizes = [8, 64], strides = [1, 1]} : vector<8x96xf32> to vector<8x64xf32>
    %265 = arith.addf %263, %264 : vector<8x64xf32>
    %266 = math.tanh %265 : vector<8x64xf32>
    %267 = vector.extract_strided_slice %266 {offsets = [0, 0], sizes = [8, 32], strides = [1, 1]} : vector<8x64xf32> to vector<8x32xf32>
    %cst_75 = arith.constant 5.000000e-01 : f32
    %268 = vector.broadcast %cst_75 : f32 to vector<8x32xf32>
    %269 = arith.mulf %268, %267 : vector<8x32xf32>
    %cst_76 = arith.constant 5.000000e-01 : f32
    %270 = vector.broadcast %cst_76 : f32 to vector<8x32xf32>
    %271 = arith.addf %269, %270 : vector<8x32xf32>
    %272 = vector.extract_strided_slice %266 {offsets = [0, 32], sizes = [8, 32], strides = [1, 1]} : vector<8x64xf32> to vector<8x32xf32>
    %cst_77 = arith.constant 5.000000e-01 : f32
    %273 = vector.broadcast %cst_77 : f32 to vector<8x32xf32>
    %274 = arith.mulf %273, %272 : vector<8x32xf32>
    %cst_78 = arith.constant 5.000000e-01 : f32
    %275 = vector.broadcast %cst_78 : f32 to vector<8x32xf32>
    %276 = arith.addf %274, %275 : vector<8x32xf32>
    %277 = vector.extract_strided_slice %260 {offsets = [0, 64], sizes = [8, 32], strides = [1, 1]} : vector<8x96xf32> to vector<8x32xf32>
    %278 = vector.extract_strided_slice %262 {offsets = [0, 64], sizes = [8, 32], strides = [1, 1]} : vector<8x96xf32> to vector<8x32xf32>
    %279 = arith.mulf %271, %278 : vector<8x32xf32>
    %280 = arith.addf %277, %279 : vector<8x32xf32>
    %281 = math.tanh %280 : vector<8x32xf32>
    %cst_79 = arith.constant 1.000000e+00 : f32
    %282 = vector.broadcast %cst_79 : f32 to vector<8x32xf32>
    %283 = arith.subf %282, %276 : vector<8x32xf32>
    %284 = arith.mulf %283, %281 : vector<8x32xf32>
    %285 = arith.mulf %276, %238 : vector<8x32xf32>
    %286 = arith.addf %284, %285 : vector<8x32xf32>
    %cst_80 = arith.constant dense<0.000000e+00> : vector<8x128xf32>
    %287 = tpu.matmul %286, %3, %cst_80 {dimension_numbers = #tpu.dot_dimension_numbers<[1], [0], [0], [1], [0, 0, 1, 1], [], []>} : vector<8x32xf32>, vector<32x128xf32>, vector<8x128xf32> -> vector<8x128xf32>
    %cst_81 = arith.constant dense<0.000000e+00> : vector<8x128xf32>
    %288 = tpu.matmul %256, %4, %cst_81 {dimension_numbers = #tpu.dot_dimension_numbers<[1], [0], [0], [1], [0, 0, 1, 1], [], []>} : vector<8x32xf32>, vector<32x128xf32>, vector<8x128xf32> -> vector<8x128xf32>
    %289 = arith.addf %287, %288 : vector<8x128xf32>
    %290 = arith.addf %289, %13 : vector<8x128xf32>
    %291 = math.tanh %290 : vector<8x128xf32>
    %cst_82 = arith.constant 5.000000e-01 : f32
    %292 = vector.broadcast %cst_82 : f32 to vector<8x128xf32>
    %293 = arith.mulf %292, %291 : vector<8x128xf32>
    %cst_83 = arith.constant 5.000000e-01 : f32
    %294 = vector.broadcast %cst_83 : f32 to vector<8x128xf32>
    %295 = arith.addf %293, %294 : vector<8x128xf32>
    %296 = vector.extract_strided_slice %295 {offsets = [0, 0], sizes = [8, 32], strides = [1, 1]} : vector<8x128xf32> to vector<8x32xf32>
    %297 = vector.extract_strided_slice %295 {offsets = [0, 32], sizes = [8, 32], strides = [1, 1]} : vector<8x128xf32> to vector<8x32xf32>
    %298 = vector.extract_strided_slice %291 {offsets = [0, 64], sizes = [8, 32], strides = [1, 1]} : vector<8x128xf32> to vector<8x32xf32>
    %299 = vector.extract_strided_slice %295 {offsets = [0, 96], sizes = [8, 32], strides = [1, 1]} : vector<8x128xf32> to vector<8x32xf32>
    %300 = arith.mulf %297, %254 : vector<8x32xf32>
    %301 = arith.mulf %296, %298 : vector<8x32xf32>
    %302 = arith.addf %300, %301 : vector<8x32xf32>
    %303 = math.tanh %302 : vector<8x32xf32>
    %304 = arith.mulf %299, %303 : vector<8x32xf32>
    %305 = vector.extract_strided_slice %0 {offsets = [0, 6, 0], sizes = [8, 1, 4], strides = [1, 1, 1]} : vector<8x8x4xf32> to vector<8x1x4xf32>
    %306 = vector.shape_cast %305 : vector<8x1x4xf32> to vector<8x4xf32>
    %cst_84 = arith.constant dense<0.000000e+00> : vector<8x96xf32>
    %307 = tpu.matmul %306, %1, %cst_84 {dimension_numbers = #tpu.dot_dimension_numbers<[1], [0], [0], [1], [0, 0, 1, 1], [], []>} : vector<8x4xf32>, vector<4x96xf32>, vector<8x96xf32> -> vector<8x96xf32>
    %308 = arith.addf %307, %7 : vector<8x96xf32>
    %cst_85 = arith.constant dense<0.000000e+00> : vector<8x96xf32>
    %309 = tpu.matmul %286, %2, %cst_85 {dimension_numbers = #tpu.dot_dimension_numbers<[1], [0], [0], [1], [0, 0, 1, 1], [], []>} : vector<8x32xf32>, vector<32x96xf32>, vector<8x96xf32> -> vector<8x96xf32>
    %310 = arith.addf %309, %10 : vector<8x96xf32>
    %311 = vector.extract_strided_slice %308 {offsets = [0, 0], sizes = [8, 64], strides = [1, 1]} : vector<8x96xf32> to vector<8x64xf32>
    %312 = vector.extract_strided_slice %310 {offsets = [0, 0], sizes = [8, 64], strides = [1, 1]} : vector<8x96xf32> to vector<8x64xf32>
    %313 = arith.addf %311, %312 : vector<8x64xf32>
    %314 = math.tanh %313 : vector<8x64xf32>
    %315 = vector.extract_strided_slice %314 {offsets = [0, 0], sizes = [8, 32], strides = [1, 1]} : vector<8x64xf32> to vector<8x32xf32>
    %cst_86 = arith.constant 5.000000e-01 : f32
    %316 = vector.broadcast %cst_86 : f32 to vector<8x32xf32>
    %317 = arith.mulf %316, %315 : vector<8x32xf32>
    %cst_87 = arith.constant 5.000000e-01 : f32
    %318 = vector.broadcast %cst_87 : f32 to vector<8x32xf32>
    %319 = arith.addf %317, %318 : vector<8x32xf32>
    %320 = vector.extract_strided_slice %314 {offsets = [0, 32], sizes = [8, 32], strides = [1, 1]} : vector<8x64xf32> to vector<8x32xf32>
    %cst_88 = arith.constant 5.000000e-01 : f32
    %321 = vector.broadcast %cst_88 : f32 to vector<8x32xf32>
    %322 = arith.mulf %321, %320 : vector<8x32xf32>
    %cst_89 = arith.constant 5.000000e-01 : f32
    %323 = vector.broadcast %cst_89 : f32 to vector<8x32xf32>
    %324 = arith.addf %322, %323 : vector<8x32xf32>
    %325 = vector.extract_strided_slice %308 {offsets = [0, 64], sizes = [8, 32], strides = [1, 1]} : vector<8x96xf32> to vector<8x32xf32>
    %326 = vector.extract_strided_slice %310 {offsets = [0, 64], sizes = [8, 32], strides = [1, 1]} : vector<8x96xf32> to vector<8x32xf32>
    %327 = arith.mulf %319, %326 : vector<8x32xf32>
    %328 = arith.addf %325, %327 : vector<8x32xf32>
    %329 = math.tanh %328 : vector<8x32xf32>
    %cst_90 = arith.constant 1.000000e+00 : f32
    %330 = vector.broadcast %cst_90 : f32 to vector<8x32xf32>
    %331 = arith.subf %330, %324 : vector<8x32xf32>
    %332 = arith.mulf %331, %329 : vector<8x32xf32>
    %333 = arith.mulf %324, %286 : vector<8x32xf32>
    %334 = arith.addf %332, %333 : vector<8x32xf32>
    %cst_91 = arith.constant dense<0.000000e+00> : vector<8x128xf32>
    %335 = tpu.matmul %334, %3, %cst_91 {dimension_numbers = #tpu.dot_dimension_numbers<[1], [0], [0], [1], [0, 0, 1, 1], [], []>} : vector<8x32xf32>, vector<32x128xf32>, vector<8x128xf32> -> vector<8x128xf32>
    %cst_92 = arith.constant dense<0.000000e+00> : vector<8x128xf32>
    %336 = tpu.matmul %304, %4, %cst_92 {dimension_numbers = #tpu.dot_dimension_numbers<[1], [0], [0], [1], [0, 0, 1, 1], [], []>} : vector<8x32xf32>, vector<32x128xf32>, vector<8x128xf32> -> vector<8x128xf32>
    %337 = arith.addf %335, %336 : vector<8x128xf32>
    %338 = arith.addf %337, %13 : vector<8x128xf32>
    %339 = math.tanh %338 : vector<8x128xf32>
    %cst_93 = arith.constant 5.000000e-01 : f32
    %340 = vector.broadcast %cst_93 : f32 to vector<8x128xf32>
    %341 = arith.mulf %340, %339 : vector<8x128xf32>
    %cst_94 = arith.constant 5.000000e-01 : f32
    %342 = vector.broadcast %cst_94 : f32 to vector<8x128xf32>
    %343 = arith.addf %341, %342 : vector<8x128xf32>
    %344 = vector.extract_strided_slice %343 {offsets = [0, 0], sizes = [8, 32], strides = [1, 1]} : vector<8x128xf32> to vector<8x32xf32>
    %345 = vector.extract_strided_slice %343 {offsets = [0, 32], sizes = [8, 32], strides = [1, 1]} : vector<8x128xf32> to vector<8x32xf32>
    %346 = vector.extract_strided_slice %339 {offsets = [0, 64], sizes = [8, 32], strides = [1, 1]} : vector<8x128xf32> to vector<8x32xf32>
    %347 = vector.extract_strided_slice %343 {offsets = [0, 96], sizes = [8, 32], strides = [1, 1]} : vector<8x128xf32> to vector<8x32xf32>
    %348 = arith.mulf %345, %302 : vector<8x32xf32>
    %349 = arith.mulf %344, %346 : vector<8x32xf32>
    %350 = arith.addf %348, %349 : vector<8x32xf32>
    %351 = math.tanh %350 : vector<8x32xf32>
    %352 = arith.mulf %347, %351 : vector<8x32xf32>
    %353 = vector.extract_strided_slice %0 {offsets = [0, 7, 0], sizes = [8, 1, 4], strides = [1, 1, 1]} : vector<8x8x4xf32> to vector<8x1x4xf32>
    %354 = vector.shape_cast %353 : vector<8x1x4xf32> to vector<8x4xf32>
    %cst_95 = arith.constant dense<0.000000e+00> : vector<8x96xf32>
    %355 = tpu.matmul %354, %1, %cst_95 {dimension_numbers = #tpu.dot_dimension_numbers<[1], [0], [0], [1], [0, 0, 1, 1], [], []>} : vector<8x4xf32>, vector<4x96xf32>, vector<8x96xf32> -> vector<8x96xf32>
    %356 = arith.addf %355, %7 : vector<8x96xf32>
    %cst_96 = arith.constant dense<0.000000e+00> : vector<8x96xf32>
    %357 = tpu.matmul %334, %2, %cst_96 {dimension_numbers = #tpu.dot_dimension_numbers<[1], [0], [0], [1], [0, 0, 1, 1], [], []>} : vector<8x32xf32>, vector<32x96xf32>, vector<8x96xf32> -> vector<8x96xf32>
    %358 = arith.addf %357, %10 : vector<8x96xf32>
    %359 = vector.extract_strided_slice %356 {offsets = [0, 0], sizes = [8, 64], strides = [1, 1]} : vector<8x96xf32> to vector<8x64xf32>
    %360 = vector.extract_strided_slice %358 {offsets = [0, 0], sizes = [8, 64], strides = [1, 1]} : vector<8x96xf32> to vector<8x64xf32>
    %361 = arith.addf %359, %360 : vector<8x64xf32>
    %362 = math.tanh %361 : vector<8x64xf32>
    %363 = vector.extract_strided_slice %362 {offsets = [0, 0], sizes = [8, 32], strides = [1, 1]} : vector<8x64xf32> to vector<8x32xf32>
    %cst_97 = arith.constant 5.000000e-01 : f32
    %364 = vector.broadcast %cst_97 : f32 to vector<8x32xf32>
    %365 = arith.mulf %364, %363 : vector<8x32xf32>
    %cst_98 = arith.constant 5.000000e-01 : f32
    %366 = vector.broadcast %cst_98 : f32 to vector<8x32xf32>
    %367 = arith.addf %365, %366 : vector<8x32xf32>
    %368 = vector.extract_strided_slice %362 {offsets = [0, 32], sizes = [8, 32], strides = [1, 1]} : vector<8x64xf32> to vector<8x32xf32>
    %cst_99 = arith.constant 5.000000e-01 : f32
    %369 = vector.broadcast %cst_99 : f32 to vector<8x32xf32>
    %370 = arith.mulf %369, %368 : vector<8x32xf32>
    %cst_100 = arith.constant 5.000000e-01 : f32
    %371 = vector.broadcast %cst_100 : f32 to vector<8x32xf32>
    %372 = arith.addf %370, %371 : vector<8x32xf32>
    %373 = vector.extract_strided_slice %356 {offsets = [0, 64], sizes = [8, 32], strides = [1, 1]} : vector<8x96xf32> to vector<8x32xf32>
    %374 = vector.extract_strided_slice %358 {offsets = [0, 64], sizes = [8, 32], strides = [1, 1]} : vector<8x96xf32> to vector<8x32xf32>
    %375 = arith.mulf %367, %374 : vector<8x32xf32>
    %376 = arith.addf %373, %375 : vector<8x32xf32>
    %377 = math.tanh %376 : vector<8x32xf32>
    %cst_101 = arith.constant 1.000000e+00 : f32
    %378 = vector.broadcast %cst_101 : f32 to vector<8x32xf32>
    %379 = arith.subf %378, %372 : vector<8x32xf32>
    %380 = arith.mulf %379, %377 : vector<8x32xf32>
    %381 = arith.mulf %372, %334 : vector<8x32xf32>
    %382 = arith.addf %380, %381 : vector<8x32xf32>
    %cst_102 = arith.constant dense<0.000000e+00> : vector<8x128xf32>
    %383 = tpu.matmul %382, %3, %cst_102 {dimension_numbers = #tpu.dot_dimension_numbers<[1], [0], [0], [1], [0, 0, 1, 1], [], []>} : vector<8x32xf32>, vector<32x128xf32>, vector<8x128xf32> -> vector<8x128xf32>
    %cst_103 = arith.constant dense<0.000000e+00> : vector<8x128xf32>
    %384 = tpu.matmul %352, %4, %cst_103 {dimension_numbers = #tpu.dot_dimension_numbers<[1], [0], [0], [1], [0, 0, 1, 1], [], []>} : vector<8x32xf32>, vector<32x128xf32>, vector<8x128xf32> -> vector<8x128xf32>
    %385 = arith.addf %383, %384 : vector<8x128xf32>
    %386 = arith.addf %385, %13 : vector<8x128xf32>
    %387 = math.tanh %386 : vector<8x128xf32>
    %cst_104 = arith.constant 5.000000e-01 : f32
    %388 = vector.broadcast %cst_104 : f32 to vector<8x128xf32>
    %389 = arith.mulf %388, %387 : vector<8x128xf32>
    %cst_105 = arith.constant 5.000000e-01 : f32
    %390 = vector.broadcast %cst_105 : f32 to vector<8x128xf32>
    %391 = arith.addf %389, %390 : vector<8x128xf32>
    %392 = vector.extract_strided_slice %391 {offsets = [0, 0], sizes = [8, 32], strides = [1, 1]} : vector<8x128xf32> to vector<8x32xf32>
    %393 = vector.extract_strided_slice %391 {offsets = [0, 32], sizes = [8, 32], strides = [1, 1]} : vector<8x128xf32> to vector<8x32xf32>
    %394 = vector.extract_strided_slice %387 {offsets = [0, 64], sizes = [8, 32], strides = [1, 1]} : vector<8x128xf32> to vector<8x32xf32>
    %395 = vector.extract_strided_slice %391 {offsets = [0, 96], sizes = [8, 32], strides = [1, 1]} : vector<8x128xf32> to vector<8x32xf32>
    %396 = arith.mulf %393, %350 : vector<8x32xf32>
    %397 = arith.mulf %392, %394 : vector<8x32xf32>
    %398 = arith.addf %396, %397 : vector<8x32xf32>
    %399 = math.tanh %398 : vector<8x32xf32>
    %400 = arith.mulf %395, %399 : vector<8x32xf32>
    %c0_106 = arith.constant 0 : index
    %c0_107 = arith.constant 0 : index
    %401 = vector.load %arg9[%c0_106, %c0_107] : memref<32x96xf32, #tpu.memory_space<vmem>>, vector<32x96xf32>
    %cst_108 = arith.constant dense<0.000000e+00> : vector<8x96xf32>
    %402 = tpu.matmul %382, %401, %cst_108 {dimension_numbers = #tpu.dot_dimension_numbers<[1], [0], [0], [1], [0, 0, 1, 1], [], []>} : vector<8x32xf32>, vector<32x96xf32>, vector<8x96xf32> -> vector<8x96xf32>
    %c0_109 = arith.constant 0 : index
    %c0_110 = arith.constant 0 : index
    %403 = vector.load %arg10[%c0_109, %c0_110] : memref<1x96xf32, #tpu.memory_space<vmem>>, vector<1x96xf32>
    %404 = vector.shape_cast %403 : vector<1x96xf32> to vector<1x96xf32>
    %405 = vector.broadcast %404 : vector<1x96xf32> to vector<8x96xf32>
    %406 = arith.addf %402, %405 : vector<8x96xf32>
    %407 = math.tanh %406 : vector<8x96xf32>
    %408 = vector.extract_strided_slice %407 {offsets = [0, 0], sizes = [8, 32], strides = [1, 1]} : vector<8x96xf32> to vector<8x32xf32>
    %cst_111 = arith.constant 5.000000e-01 : f32
    %409 = vector.broadcast %cst_111 : f32 to vector<8x32xf32>
    %410 = arith.mulf %409, %408 : vector<8x32xf32>
    %cst_112 = arith.constant 5.000000e-01 : f32
    %411 = vector.broadcast %cst_112 : f32 to vector<8x32xf32>
    %412 = arith.addf %410, %411 : vector<8x32xf32>
    %413 = vector.extract_strided_slice %407 {offsets = [0, 32], sizes = [8, 32], strides = [1, 1]} : vector<8x96xf32> to vector<8x32xf32>
    %cst_113 = arith.constant 5.000000e-01 : f32
    %414 = vector.broadcast %cst_113 : f32 to vector<8x32xf32>
    %415 = arith.mulf %414, %413 : vector<8x32xf32>
    %cst_114 = arith.constant 5.000000e-01 : f32
    %416 = vector.broadcast %cst_114 : f32 to vector<8x32xf32>
    %417 = arith.addf %415, %416 : vector<8x32xf32>
    %418 = vector.extract_strided_slice %407 {offsets = [0, 64], sizes = [8, 32], strides = [1, 1]} : vector<8x96xf32> to vector<8x32xf32>
    %419 = arith.mulf %412, %418 : vector<8x32xf32>
    %420 = math.tanh %419 : vector<8x32xf32>
    %421 = arith.mulf %417, %420 : vector<8x32xf32>
    %c0_115 = arith.constant 0 : index
    %c0_116 = arith.constant 0 : index
    %422 = vector.load %arg11[%c0_115, %c0_116] : memref<1x64xf32, #tpu.memory_space<vmem>>, vector<1x64xf32>
    %423 = vector.extract_strided_slice %422 {offsets = [0, 0], sizes = [1, 32], strides = [1, 1]} : vector<1x64xf32> to vector<1x32xf32>
    %424 = vector.shape_cast %423 : vector<1x32xf32> to vector<1x32xf32>
    %425 = vector.broadcast %424 : vector<1x32xf32> to vector<8x32xf32>
    %426 = vector.extract_strided_slice %422 {offsets = [0, 32], sizes = [1, 32], strides = [1, 1]} : vector<1x64xf32> to vector<1x32xf32>
    %427 = vector.shape_cast %426 : vector<1x32xf32> to vector<1x32xf32>
    %428 = vector.broadcast %427 : vector<1x32xf32> to vector<8x32xf32>
    %429 = arith.mulf %400, %425 : vector<8x32xf32>
    %cst_117 = arith.constant dense<0.000000e+00> : vector<8xf32>
    %430 = vector.multi_reduction <add>, %429, %cst_117 [1] : vector<8x32xf32> to vector<8xf32>
    %431 = vector.shape_cast %430 : vector<8xf32> to vector<8x1xf32>
    %432 = arith.mulf %421, %428 : vector<8x32xf32>
    %cst_118 = arith.constant dense<0.000000e+00> : vector<8xf32>
    %433 = vector.multi_reduction <add>, %432, %cst_118 [1] : vector<8x32xf32> to vector<8xf32>
    %434 = vector.shape_cast %433 : vector<8xf32> to vector<8x1xf32>
    %435 = arith.addf %431, %434 : vector<8x1xf32>
    %c0_119 = arith.constant 0 : index
    %c0_120 = arith.constant 0 : index
    %436 = vector.load %arg12[%c0_119, %c0_120] : memref<1x1xf32, #tpu.memory_space<vmem>>, vector<1x1xf32>
    %437 = vector.broadcast %436 : vector<1x1xf32> to vector<8x1xf32>
    %438 = arith.addf %435, %437 : vector<8x1xf32>
    %c0_121 = arith.constant 0 : index
    %c0_122 = arith.constant 0 : index
    %439 = vector.load %arg13[%c0_121, %c0_122] : memref<8x1xf32, #tpu.memory_space<vmem>>, vector<8x1xf32>
    tpu.vector_store %arg13[%c0_121, %c0_122], %438 {strides = array<i32>} : memref<8x1xf32, #tpu.memory_space<vmem>>, vector<8x1xf32>,
    return
  }
  func.func @transform_0(%arg0: i32) -> (i32, i32, i32) {
    %c0_i32 = arith.constant 0 : i32
    %c0_i32_0 = arith.constant 0 : i32
    %c0_i32_1 = arith.constant 0 : i32
    return %arg0, %c0_i32, %c0_i32_0 : i32, i32, i32
  }
  func.func @transform_1(%arg0: i32) -> (i32, i32) {
    %c0_i32 = arith.constant 0 : i32
    %c0_i32_0 = arith.constant 0 : i32
    %c0_i32_1 = arith.constant 0 : i32
    return %c0_i32, %c0_i32_0 : i32, i32
  }
  func.func @transform_2(%arg0: i32) -> (i32, i32) {
    %c0_i32 = arith.constant 0 : i32
    %c0_i32_0 = arith.constant 0 : i32
    %c0_i32_1 = arith.constant 0 : i32
    return %c0_i32, %c0_i32_0 : i32, i32
  }
  func.func @transform_3(%arg0: i32) -> (i32, i32) {
    %c0_i32 = arith.constant 0 : i32
    %c0_i32_0 = arith.constant 0 : i32
    %c0_i32_1 = arith.constant 0 : i32
    return %c0_i32, %c0_i32_0 : i32, i32
  }
  func.func @transform_4(%arg0: i32) -> (i32, i32) {
    %c0_i32 = arith.constant 0 : i32
    %c0_i32_0 = arith.constant 0 : i32
    %c0_i32_1 = arith.constant 0 : i32
    return %c0_i32, %c0_i32_0 : i32, i32
  }
  func.func @transform_5(%arg0: i32) -> (i32, i32) {
    %c0_i32 = arith.constant 0 : i32
    %c0_i32_0 = arith.constant 0 : i32
    %c0_i32_1 = arith.constant 0 : i32
    return %c0_i32, %c0_i32_0 : i32, i32
  }
  func.func @transform_6(%arg0: i32) -> (i32, i32) {
    %c0_i32 = arith.constant 0 : i32
    %c0_i32_0 = arith.constant 0 : i32
    %c0_i32_1 = arith.constant 0 : i32
    return %c0_i32, %c0_i32_0 : i32, i32
  }
  func.func @transform_7(%arg0: i32) -> (i32, i32) {
    %c0_i32 = arith.constant 0 : i32
    %c0_i32_0 = arith.constant 0 : i32
    %c0_i32_1 = arith.constant 0 : i32
    return %c0_i32, %c0_i32_0 : i32, i32
  }
  func.func @transform_8(%arg0: i32) -> (i32, i32) {
    %c0_i32 = arith.constant 0 : i32
    %c0_i32_0 = arith.constant 0 : i32
    %c0_i32_1 = arith.constant 0 : i32
    return %c0_i32, %c0_i32_0 : i32, i32
  }
  func.func @transform_9(%arg0: i32) -> (i32, i32) {
    %c0_i32 = arith.constant 0 : i32
    %c0_i32_0 = arith.constant 0 : i32
    %c0_i32_1 = arith.constant 0 : i32
    return %c0_i32, %c0_i32_0 : i32, i32
  }
  func.func @transform_10(%arg0: i32) -> (i32, i32) {
    %c0_i32 = arith.constant 0 : i32
    %c0_i32_0 = arith.constant 0 : i32
    %c0_i32_1 = arith.constant 0 : i32
    return %c0_i32, %c0_i32_0 : i32, i32
  }
  func.func @transform_11(%arg0: i32) -> (i32, i32) {
    %c0_i32 = arith.constant 0 : i32
    %c0_i32_0 = arith.constant 0 : i32
    %c0_i32_1 = arith.constant 0 : i32
    return %c0_i32, %c0_i32_0 : i32, i32
  }
  func.func @transform_12(%arg0: i32) -> (i32, i32) {
    %c0_i32 = arith.constant 0 : i32
    %c0_i32_0 = arith.constant 0 : i32
    return %arg0, %c0_i32 : i32, i32
  }
}

</mosaic_0001>

<llo_original>
// kernel: tpu_custom_call.1
$region0: #{tpu_custom_call.1}
  #allocation0 [shape = 'u32[]', space=smem, size = 0x4, offset = 0x4, fixed_abs, tag = 'smem constant byte address 0x4 - core index']
  #allocation1 [shape = 'u32[144,128]{1,0:T(1,128)}', space=vmem, size = 0x12000, scoped, tag = 'internal scratch']
  #allocation2 [shape = 'f32[1,1]{1,0:T(1,128)S(1)}', space=vmem, size = 0x200, scoped, tag = 'scoped memory for tpu_custom_call.1']
  %s0 = inlined_call_operand.vmem [shape: f32[8,8,4], index: 0, kind: input, shape index: {}]
  %s1 = inlined_call_operand.hbm [shape: f32[4,96], index: 1, kind: input, shape index: {}]
  %s2 = inlined_call_operand.vmem [shape: f32[1,96], index: 2, kind: input, shape index: {}]
  %s3 = inlined_call_operand.vmem [shape: f32[32,96], index: 3, kind: input, shape index: {}]
  %s4 = inlined_call_operand.vmem [shape: f32[1,96], index: 4, kind: input, shape index: {}]
  %s5 = inlined_call_operand.vmem [shape: f32[32,128], index: 5, kind: input, shape index: {}]
  %s6 = inlined_call_operand.vmem [shape: f32[32,128], index: 6, kind: input, shape index: {}]
  %s7 = inlined_call_operand.vmem [shape: f32[1,128], index: 7, kind: input, shape index: {}]
  %s8 = inlined_call_operand.hbm [shape: f32[32,96], index: 8, kind: input, shape index: {}]
  %s9 = inlined_call_operand.vmem [shape: f32[1,96], index: 9, kind: input, shape index: {}]
  %s10 = inlined_call_operand.vmem [shape: f32[1,64], index: 10, kind: input, shape index: {}]
  %s11 = inlined_call_operand.<no memory space> [shape: f32[1,1], index: 11, kind: input, shape index: {}]
  %s12 = inlined_call_operand.vmem [shape: f32[8,1], index: 12, kind: output, shape index: {}]
  %s13 = sld [smem:[#allocation0]]
  $region66: #{tpu_custom_call.1} parent=0
    _
  %s15 = ssub.s32 1, %s13
  %s16 = scalar_select 0, %s15, %s13
  %v17 = vstv %s11
  %18 = vst [vmem:[#allocation2] sm:$0x1] %v17
  $region1: #{tpu_custom_call.1} parent=0
    #allocation3 [shape = 'u8[2048]{0}', space=vmem, size = 0x800, scoped, tag = 'input window, operand 1, single buffered']
    #allocation4 [shape = 's32[1]{0}', space=sflag, size = 0x4, scoped, tag = 'scoped memory for tpu_custom_call.1']
    #allocation5 [shape = 'u8[16384]{0}', space=vmem, size = 0x4000, scoped, tag = 'input window, operand 8, single buffered']
    #allocation6 [shape = 's32[1]{0}', space=sflag, size = 0x4, scoped, tag = 'scoped memory for tpu_custom_call.1']
    %19 = vsyncpa [#allocation4], 0
    %20 = vsyncpa [#allocation6], 0
    // Predicated region
    $region2: #{tpu_custom_call.1} parent=1 // pred_check
      _
    $region3: #{tpu_custom_call.1} parent=1 // pred_check_branch
      %22 = sbr.rel (0) target = $region5
    $region4: #{tpu_custom_call.1} parent=1 // pred_region
      _
    $region5: #{tpu_custom_call.1} parent=1 // pred_fallthru
      _
    // Predicated region
    $region6: #{tpu_custom_call.1} parent=1 // pred_check
      _
    $region7: #{tpu_custom_call.1} parent=1 // pred_check_branch
      %24 = sbr.rel (0) target = $region9
    $region8: #{tpu_custom_call.1} parent=1 // pred_region
      %s26 = ssub.s32 64, 64
      %27 = vsyncadd [#allocation4], %s26
      %s29 = sshll.u32 [#allocation3], 4
      %s30 = int_to_ptr.vmem [resolvable:$true] %s29
      %32 = dma.hbm_to_vmem [thread:$0]  %s1, 64, %s30, [#allocation4]
    $region9: #{tpu_custom_call.1} parent=1 // pred_fallthru
      _
    // Predicated region
    $region10: #{tpu_custom_call.1} parent=1 // pred_check
      _
    $region11: #{tpu_custom_call.1} parent=1 // pred_check_branch
      %34 = sbr.rel (0) target = $region13
    $region12: #{tpu_custom_call.1} parent=1 // pred_region
      _
    $region13: #{tpu_custom_call.1} parent=1 // pred_fallthru
      _
    // Predicated region
    $region14: #{tpu_custom_call.1} parent=1 // pred_check
      _
    $region15: #{tpu_custom_call.1} parent=1 // pred_check_branch
      %36 = sbr.rel (0) target = $region17
    $region16: #{tpu_custom_call.1} parent=1 // pred_region
      _
    $region17: #{tpu_custom_call.1} parent=1 // pred_fallthru
      _
    // Predicated region
    $region18: #{tpu_custom_call.1} parent=1 // pred_check
      _
    $region19: #{tpu_custom_call.1} parent=1 // pred_check_branch
      %38 = sbr.rel (0) target = $region21
    $region20: #{tpu_custom_call.1} parent=1 // pred_region
      _
    $region21: #{tpu_custom_call.1} parent=1 // pred_fallthru
      _
    // Predicated region
    $region22: #{tpu_custom_call.1} parent=1 // pred_check
      _
    $region23: #{tpu_custom_call.1} parent=1 // pred_check_branch
      %40 = sbr.rel (0) target = $region25
    $region24: #{tpu_custom_call.1} parent=1 // pred_region
      _
    $region25: #{tpu_custom_call.1} parent=1 // pred_fallthru
      _
    // Predicated region
    $region26: #{tpu_custom_call.1} parent=1 // pred_check
      _
    $region27: #{tpu_custom_call.1} parent=1 // pred_check_branch
      %42 = sbr.rel (0) target = $region29
    $region28: #{tpu_custom_call.1} parent=1 // pred_region
      _
    $region29: #{tpu_custom_call.1} parent=1 // pred_fallthru
      _
    // Predicated region
    $region30: #{tpu_custom_call.1} parent=1 // pred_check
      _
    $region31: #{tpu_custom_call.1} parent=1 // pred_check_branch
      %44 = sbr.rel (0) target = $region33
    $region32: #{tpu_custom_call.1} parent=1 // pred_region
      _
    $region33: #{tpu_custom_call.1} parent=1 // pred_fallthru
      _
    // Predicated region
    $region34: #{tpu_custom_call.1} parent=1 // pred_check
      _
    $region35: #{tpu_custom_call.1} parent=1 // pred_check_branch
      %46 = sbr.rel (0) target = $region37
    $region36: #{tpu_custom_call.1} parent=1 // pred_region
      %s48 = ssub.s32 512, 512
      %49 = vsyncadd [#allocation6], %s48
      %s50 = sshll.u32 [#allocation5], 4
      %s51 = int_to_ptr.vmem [resolvable:$true] %s50
      %56 = dma.hbm_to_vmem [thread:$0]  %s8, 512, %s51, [#allocation6], 128, 128, 8
    $region37: #{tpu_custom_call.1} parent=1 // pred_fallthru
      _
    // Predicated region
    $region38: #{tpu_custom_call.1} parent=1 // pred_check
      _
    $region39: #{tpu_custom_call.1} parent=1 // pred_check_branch
      %58 = sbr.rel (0) target = $region41
    $region40: #{tpu_custom_call.1} parent=1 // pred_region
      _
    $region41: #{tpu_custom_call.1} parent=1 // pred_fallthru
      _
    // Predicated region
    $region42: #{tpu_custom_call.1} parent=1 // pred_check
      _
    $region43: #{tpu_custom_call.1} parent=1 // pred_check_branch
      %60 = sbr.rel (0) target = $region45
    $region44: #{tpu_custom_call.1} parent=1 // pred_region
      _
    $region45: #{tpu_custom_call.1} parent=1 // pred_fallthru
      _
    // Predicated region
    $region46: #{tpu_custom_call.1} parent=1 // pred_check
      _
    $region47: #{tpu_custom_call.1} parent=1 // pred_check_branch
      %62 = sbr.rel (0) target = $region49
    $region48: #{tpu_custom_call.1} parent=1 // pred_region
      _
    $region49: #{tpu_custom_call.1} parent=1 // pred_fallthru
      _
    // Predicated region
    $region50: #{tpu_custom_call.1} parent=1 // pred_check
      _
    $region51: #{tpu_custom_call.1} parent=1 // pred_check_branch
      %64 = sbr.rel (0) target = $region53
    $region52: #{tpu_custom_call.1} parent=1 // pred_region
      %65 = dma.done [#allocation4], 64
    $region53: #{tpu_custom_call.1} parent=1 // pred_fallthru
      _
    // Predicated region
    $region54: #{tpu_custom_call.1} parent=1 // pred_check
      _
    $region55: #{tpu_custom_call.1} parent=1 // pred_check_branch
      %67 = sbr.rel (0) target = $region57
    $region56: #{tpu_custom_call.1} parent=1 // pred_region
      %68 = dma.done [#allocation6], 512
    $region57: #{tpu_custom_call.1} parent=1 // pred_fallthru
      _
    %v69 = vld [vmem:[%s0] sm:$0xff]
    %v70 = vld [vmem:[%s0 + $0x8] sm:$0xff]
    %v71 = vld [vmem:[%s0 + $0x10] sm:$0xff]
    %v72 = vld [vmem:[%s0 + $0x18] sm:$0xff]
    %v73 = vld [vmem:[%s0 + $0x20] sm:$0xff]
    %v74 = vld [vmem:[%s0 + $0x28] sm:$0xff]
    %v75 = vld [vmem:[%s0 + $0x30] sm:$0xff]
    %v76 = vld [vmem:[%s0 + $0x38] sm:$0xff]
    %v77 = vld [vmem:[#allocation3] sm:$0xf]
    %v78 = vld [vmem:[%s3] sm:$0xff]
    %v79 = vld [vmem:[%s3 + $0x8] sm:$0xff]
    %v80 = vld [vmem:[%s3 + $0x10] sm:$0xff]
    %v81 = vld [vmem:[%s3 + $0x18] sm:$0xff]
    %v82 = vld [vmem:[%s5] sm:$0xff]
    %v83 = vld [vmem:[%s5 + $0x8] sm:$0xff]
    %v84 = vld [vmem:[%s5 + $0x10] sm:$0xff]
    %v85 = vld [vmem:[%s5 + $0x18] sm:$0xff]
    %v86 = vld [vmem:[%s6] sm:$0xff]
    %v87 = vld [vmem:[%s6 + $0x8] sm:$0xff]
    %v88 = vld [vmem:[%s6 + $0x10] sm:$0xff]
    %v89 = vld [vmem:[%s6 + $0x18] sm:$0xff]
    %v90 = vld [vmem:[%s2] sm:$0x1]
    %v92 = vlaneseq
    %v93 = vshrl.u32 %v92, 7
    %v94 = vsub.s32 0, %v93
    %v95 = vrot.slane %v90, %v94
    %v97 = vld [vmem:[%s4] sm:$0x1]
    %v99 = vlaneseq
    %v100 = vshrl.u32 %v99, 7
    %v101 = vsub.s32 0, %v100
    %v102 = vrot.slane %v97, %v101
    %v104 = vld [vmem:[%s7] sm:$0x1]
    %v106 = vlaneseq
    %v107 = vshrl.u32 %v106, 7
    %v108 = vsub.s32 0, %v107
    %v109 = vrot.slane %v104, %v108
    %v119 = vrot.slane %v70, 7
    %vm120 = vcmask 1041409
    %v121 = vsel %vm120, %v119, %v69
    %v122 = vrot.slane %v71, 6
    %vm123 = vcmask 1042434
    %v124 = vsel %vm123, %v122, %v121
    %v125 = vrot.slane %v72, 5
    %vm126 = vcmask 1043459
    %v127 = vsel %vm126, %v125, %v124
    %v128 = vrot.slane %v73, 4
    %vm129 = vcmask 1044484
    %v130 = vsel %vm129, %v128, %v127
    %v131 = vrot.slane %v74, 3
    %vm132 = vcmask 1045509
    %v133 = vsel %vm132, %v131, %v130
    %v134 = vrot.slane %v75, 2
    %vm135 = vcmask 1046534
    %v136 = vsel %vm135, %v134, %v133
    %v137 = vrot.slane %v76, 1
    %vm138 = vcmask 1047559
    %v139 = vsel %vm138, %v137, %v136
    %vm140 = vcmask 31744
    %v141 = vsel %vm140, %v139, 0
    %vm143 = vcmask 1043456
    %v145 = vsel %vm143, %v77, 0
    %147 = vmatprep.subr.mxu0 0.0
    %148 = vmatpush1.msra.mxu0 0.0
    %149 = vmatprep.subr.mxu0 0.0
    %150 = vmatpush1.msra.mxu0 0.0
    %151 = vmatprep.subr.mxu0 0.0
    %152 = vmatpush1.msra.mxu0 0.0
    %153 = vmatprep.subr.mxu0 0.0
    %154 = vmatpush1.msra.mxu0 0.0
    %155 = vmatprep.subr.mxu0 0.0
    %156 = vmatpush1.msra.mxu0 0.0
    %157 = vmatprep.subr.mxu0 0.0
    %158 = vmatpush1.msra.mxu0 0.0
    %159 = vmatprep.subr.mxu0 0.0
    %160 = vmatpush1.msra.mxu0 0.0
    %161 = vmatprep.subr.mxu0 0.0
    %162 = vmatpush1.msra.mxu0 0.0
    %163 = vmatprep.subr.mxu0 0.0
    %164 = vmatpush1.msra.mxu0 0.0
    %165 = vmatprep.subr.mxu0 0.0
    %166 = vmatpush1.msra.mxu0 0.0
    %167 = vmatprep.subr.mxu0 0.0
    %168 = vmatpush1.msra.mxu0 0.0
    %169 = vmatprep.subr.mxu0 0.0
    %170 = vmatpush1.msra.mxu0 0.0
    %171 = vmatprep.subr.mxu0 0.0
    %172 = vmatpush1.msra.mxu0 0.0
    %173 = vmatprep.subr.mxu0 0.0
    %174 = vmatpush1.msra.mxu0 0.0
    %175 = vmatprep.subr.mxu0 0.0
    %176 = vmatpush1.msra.mxu0 0.0
    %177 = vmatprep.subr.mxu0 0.0
    %178 = vmatpush1.msra.mxu0 %v145
    %179 = vmatprep.subr.mxu0 0.0
    %180 = vmatpush2.msra.mxu0 0.0
    %181 = vmatprep.subr.mxu0 0.0
    %182 = vmatpush2.msra.mxu0 0.0
    %183 = vmatprep.subr.mxu0 0.0
    %184 = vmatpush2.msra.mxu0 0.0
    %185 = vmatprep.subr.mxu0 0.0
    %186 = vmatpush2.msra.mxu0 0.0
    %187 = vmatprep.subr.mxu0 0.0
    %188 = vmatpush2.msra.mxu0 0.0
    %189 = vmatprep.subr.mxu0 0.0
    %190 = vmatpush2.msra.mxu0 0.0
    %191 = vmatprep.subr.mxu0 0.0
    %192 = vmatpush2.msra.mxu0 0.0
    %193 = vmatprep.subr.mxu0 0.0
    %194 = vmatpush2.msra.mxu0 0.0
    %195 = vmatprep.subr.mxu0 0.0
    %196 = vmatpush2.msra.mxu0 0.0
    %197 = vmatprep.subr.mxu0 0.0
    %198 = vmatpush2.msra.mxu0 0.0
    %199 = vmatprep.subr.mxu0 0.0
    %200 = vmatpush2.msra.mxu0 0.0
    %201 = vmatprep.subr.mxu0 0.0
    %202 = vmatpush2.msra.mxu0 0.0
    %203 = vmatprep.subr.mxu0 0.0
    %204 = vmatpush2.msra.mxu0 0.0
    %205 = vmatprep.subr.mxu0 0.0
    %206 = vmatpush2.msra.mxu0 0.0
    %207 = vmatprep.subr.mxu0 0.0
    %208 = vmatpush2.msra.mxu0 0.0
    %209 = vmatprep.subr.mxu0 0.0
    %210 = vmatpush2.msra.mxu0 0.0
    %211 = vmatprep.mubr.f32.mxu0 0.0
    %212 = vmatmul.mubr.f32.gmra.mxu0 %v141
    %v213 = vpop.f32.mrf.mxu0
    %v214 = vadd.f32 %v95, %v213
    %v215 = vpop.f32.mrf.mxu0
    %216 = vdwg.mxu0
    %vm217 = vcmask 261120
    %v219 = vsel %vm217, 0.0, 0
    %221 = vmatprep.subr.mxu0 0.0
    %222 = vmatpush1.msra.mxu0 0.0
    %223 = vmatprep.subr.mxu0 0.0
    %224 = vmatpush1.msra.mxu0 0.0
    %225 = vmatprep.subr.mxu0 0.0
    %226 = vmatpush1.msra.mxu0 0.0
    %227 = vmatprep.subr.mxu0 0.0
    %228 = vmatpush1.msra.mxu0 0.0
    %229 = vmatprep.subr.mxu0 0.0
    %230 = vmatpush1.msra.mxu0 0.0
    %231 = vmatprep.subr.mxu0 0.0
    %232 = vmatpush1.msra.mxu0 0.0
    %233 = vmatprep.subr.mxu0 0.0
    %234 = vmatpush1.msra.mxu0 0.0
    %235 = vmatprep.subr.mxu0 0.0
    %236 = vmatpush1.msra.mxu0 0.0
    %237 = vmatprep.subr.mxu0 0.0
    %238 = vmatpush1.msra.mxu0 0.0
    %239 = vmatprep.subr.mxu0 0.0
    %240 = vmatpush1.msra.mxu0 0.0
    %241 = vmatprep.subr.mxu0 0.0
    %242 = vmatpush1.msra.mxu0 0.0
    %243 = vmatprep.subr.mxu0 0.0
    %244 = vmatpush1.msra.mxu0 0.0
    %245 = vmatprep.subr.mxu0 0.0
    %246 = vmatpush1.msra.mxu0 %v81
    %247 = vmatprep.subr.mxu0 0.0
    %248 = vmatpush1.msra.mxu0 %v80
    %249 = vmatprep.subr.mxu0 0.0
    %250 = vmatpush1.msra.mxu0 %v79
    %251 = vmatprep.subr.mxu0 0.0
    %252 = vmatpush1.msra.mxu0 %v78
    %253 = vmatprep.subr.mxu0 0.0
    %254 = vmatpush2.msra.mxu0 0.0
    %255 = vmatprep.subr.mxu0 0.0
    %256 = vmatpush2.msra.mxu0 0.0
    %257 = vmatprep.subr.mxu0 0.0
    %258 = vmatpush2.msra.mxu0 0.0
    %259 = vmatprep.subr.mxu0 0.0
    %260 = vmatpush2.msra.mxu0 0.0
    %261 = vmatprep.subr.mxu0 0.0
    %262 = vmatpush2.msra.mxu0 0.0
    %263 = vmatprep.subr.mxu0 0.0
    %264 = vmatpush2.msra.mxu0 0.0
    %265 = vmatprep.subr.mxu0 0.0
    %266 = vmatpush2.msra.mxu0 0.0
    %267 = vmatprep.subr.mxu0 0.0
    %268 = vmatpush2.msra.mxu0 0.0
    %269 = vmatprep.subr.mxu0 0.0
    %270 = vmatpush2.msra.mxu0 0.0
    %271 = vmatprep.subr.mxu0 0.0
    %272 = vmatpush2.msra.mxu0 0.0
    %273 = vmatprep.subr.mxu0 0.0
    %274 = vmatpush2.msra.mxu0 0.0
    %275 = vmatprep.subr.mxu0 0.0
    %276 = vmatpush2.msra.mxu0 0.0
    %277 = vmatprep.subr.mxu0 0.0
    %278 = vmatpush2.msra.mxu0 0.0
    %279 = vmatprep.subr.mxu0 0.0
    %280 = vmatpush2.msra.mxu0 0.0
    %281 = vmatprep.subr.mxu0 0.0
    %282 = vmatpush2.msra.mxu0 0.0
    %283 = vmatprep.subr.mxu0 0.0
    %284 = vmatpush2.msra.mxu0 0.0
    %285 = vmatprep.mubr.f32.mxu0 0.0
    %286 = vmatmul.mubr.f32.gmra.mxu0 %v219
    %v287 = vpop.f32.mrf.mxu0
    %v288 = vadd.f32 %v102, %v287
    %v289 = vpop.f32.mrf.mxu0
    %290 = vdwg.mxu0
    %v291 = vadd.f32 %v214, %v288
    %v292 = vtanh.pop %v291
    %v293 = vmul.f32 %v292, 0.5
    %v294 = vadd.f32 %v293, 0.5
    %296 = vrot.lane.b32.xlu0 %v288, 64
    %v297 = vpop.permute.xlu0 %296
    %v299 = vmul.f32 %v294, %v297
    %301 = vrot.lane.b32.xlu0 %v299, 64
    %v302 = vpop.permute.xlu0 %301
    %v304 = vadd.f32 %v214, %v302
    %v305 = vtanh.pop %v304
    %v306 = vsub.f32 1.0, %v294
    %308 = vrot.lane.b32.xlu0 %v305, 96
    %v309 = vpop.permute.xlu0 %308
    %v311 = vmul.f32 %v306, %v309
    %v312 = vmul.f32 %v294, 0.0
    %v313 = vadd.f32 %v311, %v312
    %314 = vmatprep.subr.mxu0 0.0
    %315 = vmatpush1.msra.mxu0 0.0
    %316 = vmatprep.subr.mxu0 0.0
    %317 = vmatpush1.msra.mxu0 0.0
    %318 = vmatprep.subr.mxu0 0.0
    %319 = vmatpush1.msra.mxu0 0.0
    %320 = vmatprep.subr.mxu0 0.0
    %321 = vmatpush1.msra.mxu0 0.0
    %322 = vmatprep.subr.mxu0 0.0
    %323 = vmatpush1.msra.mxu0 0.0
    %324 = vmatprep.subr.mxu0 0.0
    %325 = vmatpush1.msra.mxu0 0.0
    %326 = vmatprep.subr.mxu0 0.0
    %327 = vmatpush1.msra.mxu0 0.0
    %328 = vmatprep.subr.mxu0 0.0
    %329 = vmatpush1.msra.mxu0 0.0
    %330 = vmatprep.subr.mxu0 0.0
    %331 = vmatpush1.msra.mxu0 0.0
    %332 = vmatprep.subr.mxu0 0.0
    %333 = vmatpush1.msra.mxu0 0.0
    %334 = vmatprep.subr.mxu0 0.0
    %335 = vmatpush1.msra.mxu0 0.0
    %336 = vmatprep.subr.mxu0 0.0
    %337 = vmatpush1.msra.mxu0 0.0
    %338 = vmatprep.subr.mxu0 0.0
    %339 = vmatpush1.msra.mxu0 %v89
    %340 = vmatprep.subr.mxu0 0.0
    %341 = vmatpush1.msra.mxu0 %v88
    %342 = vmatprep.subr.mxu0 0.0
    %343 = vmatpush1.msra.mxu0 %v87
    %344 = vmatprep.subr.mxu0 0.0
    %345 = vmatpush1.msra.mxu0 %v86
    %346 = vmatprep.subr.mxu0 0.0
    %347 = vmatpush2.msra.mxu0 0.0
    %348 = vmatprep.subr.mxu0 0.0
    %349 = vmatpush2.msra.mxu0 0.0
    %350 = vmatprep.subr.mxu0 0.0
    %351 = vmatpush2.msra.mxu0 0.0
    %352 = vmatprep.subr.mxu0 0.0
    %353 = vmatpush2.msra.mxu0 0.0
    %354 = vmatprep.subr.mxu0 0.0
    %355 = vmatpush2.msra.mxu0 0.0
    %356 = vmatprep.subr.mxu0 0.0
    %357 = vmatpush2.msra.mxu0 0.0
    %358 = vmatprep.subr.mxu0 0.0
    %359 = vmatpush2.msra.mxu0 0.0
    %360 = vmatprep.subr.mxu0 0.0
    %361 = vmatpush2.msra.mxu0 0.0
    %362 = vmatprep.subr.mxu0 0.0
    %363 = vmatpush2.msra.mxu0 0.0
    %364 = vmatprep.subr.mxu0 0.0
    %365 = vmatpush2.msra.mxu0 0.0
    %366 = vmatprep.subr.mxu0 0.0
    %367 = vmatpush2.msra.mxu0 0.0
    %368 = vmatprep.subr.mxu0 0.0
    %369 = vmatpush2.msra.mxu0 0.0
    %370 = vmatprep.subr.mxu0 0.0
    %371 = vmatpush2.msra.mxu0 0.0
    %372 = vmatprep.subr.mxu0 0.0
    %373 = vmatpush2.msra.mxu0 0.0
    %374 = vmatprep.subr.mxu0 0.0
    %375 = vmatpush2.msra.mxu0 0.0
    %376 = vmatprep.subr.mxu0 0.0
    %377 = vmatpush2.msra.mxu0 0.0
    %378 = vmatprep.mubr.f32.mxu0 0.0
    %379 = vmatmul.mubr.f32.gmra.mxu0 %v219
    %v380 = vpop.f32.mrf.mxu0
    %v381 = vadd.f32 0.0, %v380
    %v382 = vpop.f32.mrf.mxu0
    %383 = vdwg.mxu0
    %385 = vrot.lane.b32.xlu0 %v313, 96
    %v386 = vpop.permute.xlu0 %385
    %v387 = vsel %vm217, %v386, 0
    %389 = vmatprep.subr.mxu0 0.0
    %390 = vmatpush1.msra.mxu0 0.0
    %391 = vmatprep.subr.mxu0 0.0
    %392 = vmatpush1.msra.mxu0 0.0
    %393 = vmatprep.subr.mxu0 0.0
    %394 = vmatpush1.msra.mxu0 0.0
    %395 = vmatprep.subr.mxu0 0.0
    %396 = vmatpush1.msra.mxu0 0.0
    %397 = vmatprep.subr.mxu0 0.0
    %398 = vmatpush1.msra.mxu0 0.0
    %399 = vmatprep.subr.mxu0 0.0
    %400 = vmatpush1.msra.mxu0 0.0
    %401 = vmatprep.subr.mxu0 0.0
    %402 = vmatpush1.msra.mxu0 0.0
    %403 = vmatprep.subr.mxu0 0.0
    %404 = vmatpush1.msra.mxu0 0.0
    %405 = vmatprep.subr.mxu0 0.0
    %406 = vmatpush1.msra.mxu0 0.0
    %407 = vmatprep.subr.mxu0 0.0
    %408 = vmatpush1.msra.mxu0 0.0
    %409 = vmatprep.subr.mxu0 0.0
    %410 = vmatpush1.msra.mxu0 0.0
    %411 = vmatprep.subr.mxu0 0.0
    %412 = vmatpush1.msra.mxu0 0.0
    %413 = vmatprep.subr.mxu0 0.0
    %414 = vmatpush1.msra.mxu0 %v85
    %415 = vmatprep.subr.mxu0 0.0
    %416 = vmatpush1.msra.mxu0 %v84
    %417 = vmatprep.subr.mxu0 0.0
    %418 = vmatpush1.msra.mxu0 %v83
    %419 = vmatprep.subr.mxu0 0.0
    %420 = vmatpush1.msra.mxu0 %v82
    %421 = vmatprep.subr.mxu0 0.0
    %422 = vmatpush2.msra.mxu0 0.0
    %423 = vmatprep.subr.mxu0 0.0
    %424 = vmatpush2.msra.mxu0 0.0
    %425 = vmatprep.subr.mxu0 0.0
    %426 = vmatpush2.msra.mxu0 0.0
    %427 = vmatprep.subr.mxu0 0.0
    %428 = vmatpush2.msra.mxu0 0.0
    %429 = vmatprep.subr.mxu0 0.0
    %430 = vmatpush2.msra.mxu0 0.0
    %431 = vmatprep.subr.mxu0 0.0
    %432 = vmatpush2.msra.mxu0 0.0
    %433 = vmatprep.subr.mxu0 0.0
    %434 = vmatpush2.msra.mxu0 0.0
    %435 = vmatprep.subr.mxu0 0.0
    %436 = vmatpush2.msra.mxu0 0.0
    %437 = vmatprep.subr.mxu0 0.0
    %438 = vmatpush2.msra.mxu0 0.0
    %439 = vmatprep.subr.mxu0 0.0
    %440 = vmatpush2.msra.mxu0 0.0
    %441 = vmatprep.subr.mxu0 0.0
    %442 = vmatpush2.msra.mxu0 0.0
    %443 = vmatprep.subr.mxu0 0.0
    %444 = vmatpush2.msra.mxu0 0.0
    %445 = vmatprep.subr.mxu0 0.0
    %446 = vmatpush2.msra.mxu0 0.0
    %447 = vmatprep.subr.mxu0 0.0
    %448 = vmatpush2.msra.mxu0 0.0
    %449 = vmatprep.subr.mxu0 0.0
    %450 = vmatpush2.msra.mxu0 0.0
    %451 = vmatprep.subr.mxu0 0.0
    %452 = vmatpush2.msra.mxu0 0.0
    %453 = vmatprep.mubr.f32.mxu0 0.0
    %454 = vmatmul.mubr.f32.gmra.mxu0 %v387
    %v455 = vpop.f32.mrf.mxu0
    %v456 = vadd.f32 %v381, %v455
    %v457 = vpop.f32.mrf.mxu0
    %458 = vdwg.mxu0
    %v459 = vadd.f32 %v456, %v109
    %v460 = vtanh.pop %v459
    %v461 = vmul.f32 %v460, 0.5
    %v462 = vadd.f32 %v461, 0.5
    %v463 = vmul.f32 %v462, 0.0
    %465 = vrot.lane.b32.xlu0 %v460, 64
    %v466 = vpop.permute.xlu0 %465
    %v468 = vmul.f32 %v462, %v466
    %470 = vrot.lane.b32.xlu0 %v468, 32
    %v471 = vpop.permute.xlu0 %470
    %v473 = vadd.f32 %v463, %v471
    %v474 = vtanh.pop %v473
    %476 = vrot.lane.b32.xlu0 %v474, 64
    %v477 = vpop.permute.xlu0 %476
    %v479 = vmul.f32 %v462, %v477
    %v480 = vrot.slane %v69, 1
    %v481 = vsel %vm120, %v70, %v480
    %v482 = vrot.slane %v71, 7
    %v483 = vsel %vm123, %v482, %v481
    %v484 = vrot.slane %v72, 6
    %v485 = vsel %vm126, %v484, %v483
    %v486 = vrot.slane %v73, 5
    %v487 = vsel %vm129, %v486, %v485
    %v488 = vrot.slane %v74, 4
    %v489 = vsel %vm132, %v488, %v487
    %v490 = vrot.slane %v75, 3
    %v491 = vsel %vm135, %v490, %v489
    %v492 = vrot.slane %v76, 2
    %v493 = vsel %vm138, %v492, %v491
    %v494 = vsel %vm140, %v493, 0
    %496 = vmatprep.subr.mxu0 0.0
    %497 = vmatpush1.msra.mxu0 0.0
    %498 = vmatprep.subr.mxu0 0.0
    %499 = vmatpush1.msra.mxu0 0.0
    %500 = vmatprep.subr.mxu0 0.0
    %501 = vmatpush1.msra.mxu0 0.0
    %502 = vmatprep.subr.mxu0 0.0
    %503 = vmatpush1.msra.mxu0 0.0
    %504 = vmatprep.subr.mxu0 0.0
    %505 = vmatpush1.msra.mxu0 0.0
    %506 = vmatprep.subr.mxu0 0.0
    %507 = vmatpush1.msra.mxu0 0.0
    %508 = vmatprep.subr.mxu0 0.0
    %509 = vmatpush1.msra.mxu0 0.0
    %510 = vmatprep.subr.mxu0 0.0
    %511 = vmatpush1.msra.mxu0 0.0
    %512 = vmatprep.subr.mxu0 0.0
    %513 = vmatpush1.msra.mxu0 0.0
    %514 = vmatprep.subr.mxu0 0.0
    %515 = vmatpush1.msra.mxu0 0.0
    %516 = vmatprep.subr.mxu0 0.0
    %517 = vmatpush1.msra.mxu0 0.0
    %518 = vmatprep.subr.mxu0 0.0
    %519 = vmatpush1.msra.mxu0 0.0
    %520 = vmatprep.subr.mxu0 0.0
    %521 = vmatpush1.msra.mxu0 0.0
    %522 = vmatprep.subr.mxu0 0.0
    %523 = vmatpush1.msra.mxu0 0.0
    %524 = vmatprep.subr.mxu0 0.0
    %525 = vmatpush1.msra.mxu0 0.0
    %526 = vmatprep.subr.mxu0 0.0
    %527 = vmatpush1.msra.mxu0 %v145
    %528 = vmatprep.subr.mxu0 0.0
    %529 = vmatpush2.msra.mxu0 0.0
    %530 = vmatprep.subr.mxu0 0.0
    %531 = vmatpush2.msra.mxu0 0.0
    %532 = vmatprep.subr.mxu0 0.0
    %533 = vmatpush2.msra.mxu0 0.0
    %534 = vmatprep.subr.mxu0 0.0
    %535 = vmatpush2.msra.mxu0 0.0
    %536 = vmatprep.subr.mxu0 0.0
    %537 = vmatpush2.msra.mxu0 0.0
    %538 = vmatprep.subr.mxu0 0.0
    %539 = vmatpush2.msra.mxu0 0.0
    %540 = vmatprep.subr.mxu0 0.0
    %541 = vmatpush2.msra.mxu0 0.0
    %542 = vmatprep.subr.mxu0 0.0
    %543 = vmatpush2.msra.mxu0 0.0
    %544 = vmatprep.subr.mxu0 0.0
    %545 = vmatpush2.msra.mxu0 0.0
    %546 = vmatprep.subr.mxu0 0.0
    %547 = vmatpush2.msra.mxu0 0.0
    %548 = vmatprep.subr.mxu0 0.0
    %549 = vmatpush2.msra.mxu0 0.0
    %550 = vmatprep.subr.mxu0 0.0
    %551 = vmatpush2.msra.mxu0 0.0
    %552 = vmatprep.subr.mxu0 0.0
    %553 = vmatpush2.msra.mxu0 0.0
    %554 = vmatprep.subr.mxu0 0.0
    %555 = vmatpush2.msra.mxu0 0.0
    %556 = vmatprep.subr.mxu0 0.0
    %557 = vmatpush2.msra.mxu0 0.0
    %558 = vmatprep.subr.mxu0 0.0
    %559 = vmatpush2.msra.mxu0 0.0
    %560 = vmatprep.mubr.f32.mxu0 0.0
    %561 = vmatmul.mubr.f32.gmra.mxu0 %v494
    %v562 = vpop.f32.mrf.mxu0
    %v563 = vadd.f32 %v95, %v562
    %v564 = vpop.f32.mrf.mxu0
    %565 = vdwg.mxu0
    %566 = vmatprep.subr.mxu0 0.0
    %567 = vmatpush1.msra.mxu0 0.0
    %568 = vmatprep.subr.mxu0 0.0
    %569 = vmatpush1.msra.mxu0 0.0
    %570 = vmatprep.subr.mxu0 0.0
    %571 = vmatpush1.msra.mxu0 0.0
    %572 = vmatprep.subr.mxu0 0.0
    %573 = vmatpush1.msra.mxu0 0.0
    %574 = vmatprep.subr.mxu0 0.0
    %575 = vmatpush1.msra.mxu0 0.0
    %576 = vmatprep.subr.mxu0 0.0
    %577 = vmatpush1.msra.mxu0 0.0
    %578 = vmatprep.subr.mxu0 0.0
    %579 = vmatpush1.msra.mxu0 0.0
    %580 = vmatprep.subr.mxu0 0.0
    %581 = vmatpush1.msra.mxu0 0.0
    %582 = vmatprep.subr.mxu0 0.0
    %583 = vmatpush1.msra.mxu0 0.0
    %584 = vmatprep.subr.mxu0 0.0
    %585 = vmatpush1.msra.mxu0 0.0
    %586 = vmatprep.subr.mxu0 0.0
    %587 = vmatpush1.msra.mxu0 0.0
    %588 = vmatprep.subr.mxu0 0.0
    %589 = vmatpush1.msra.mxu0 0.0
    %590 = vmatprep.subr.mxu0 0.0
    %591 = vmatpush1.msra.mxu0 %v81
    %592 = vmatprep.subr.mxu0 0.0
    %593 = vmatpush1.msra.mxu0 %v80
    %594 = vmatprep.subr.mxu0 0.0
    %595 = vmatpush1.msra.mxu0 %v79
    %596 = vmatprep.subr.mxu0 0.0
    %597 = vmatpush1.msra.mxu0 %v78
    %598 = vmatprep.subr.mxu0 0.0
    %599 = vmatpush2.msra.mxu0 0.0
    %600 = vmatprep.subr.mxu0 0.0
    %601 = vmatpush2.msra.mxu0 0.0
    %602 = vmatprep.subr.mxu0 0.0
    %603 = vmatpush2.msra.mxu0 0.0
    %604 = vmatprep.subr.mxu0 0.0
    %605 = vmatpush2.msra.mxu0 0.0
    %606 = vmatprep.subr.mxu0 0.0
    %607 = vmatpush2.msra.mxu0 0.0
    %608 = vmatprep.subr.mxu0 0.0
    %609 = vmatpush2.msra.mxu0 0.0
    %610 = vmatprep.subr.mxu0 0.0
    %611 = vmatpush2.msra.mxu0 0.0
    %612 = vmatprep.subr.mxu0 0.0
    %613 = vmatpush2.msra.mxu0 0.0
    %614 = vmatprep.subr.mxu0 0.0
    %615 = vmatpush2.msra.mxu0 0.0
    %616 = vmatprep.subr.mxu0 0.0
    %617 = vmatpush2.msra.mxu0 0.0
    %618 = vmatprep.subr.mxu0 0.0
    %619 = vmatpush2.msra.mxu0 0.0
    %620 = vmatprep.subr.mxu0 0.0
    %621 = vmatpush2.msra.mxu0 0.0
    %622 = vmatprep.subr.mxu0 0.0
    %623 = vmatpush2.msra.mxu0 0.0
    %624 = vmatprep.subr.mxu0 0.0
    %625 = vmatpush2.msra.mxu0 0.0
    %626 = vmatprep.subr.mxu0 0.0
    %627 = vmatpush2.msra.mxu0 0.0
    %628 = vmatprep.subr.mxu0 0.0
    %629 = vmatpush2.msra.mxu0 0.0
    %630 = vmatprep.mubr.f32.mxu0 0.0
    %631 = vmatmul.mubr.f32.gmra.mxu0 %v387
    %v632 = vpop.f32.mrf.mxu0
    %v633 = vadd.f32 %v102, %v632
    %v634 = vpop.f32.mrf.mxu0
    %635 = vdwg.mxu0
    %v636 = vadd.f32 %v563, %v633
    %v637 = vtanh.pop %v636
    %v638 = vmul.f32 %v637, 0.5
    %v639 = vadd.f32 %v638, 0.5
    %641 = vrot.lane.b32.xlu0 %v633, 64
    %v642 = vpop.permute.xlu0 %641
    %v644 = vmul.f32 %v639, %v642
    %646 = vrot.lane.b32.xlu0 %v644, 64
    %v647 = vpop.permute.xlu0 %646
    %v649 = vadd.f32 %v563, %v647
    %v650 = vtanh.pop %v649
    %v651 = vsub.f32 1.0, %v639
    %653 = vrot.lane.b32.xlu0 %v650, 96
    %v654 = vpop.permute.xlu0 %653
    %v656 = vmul.f32 %v651, %v654
    %v657 = vmul.f32 %v639, %v313
    %v658 = vadd.f32 %v656, %v657
    %660 = vrot.lane.b32.xlu0 %v479, 32
    %v661 = vpop.permute.xlu0 %660
    %v662 = vsel %vm217, %v661, 0
    %664 = vmatprep.subr.mxu0 0.0
    %665 = vmatpush1.msra.mxu0 0.0
    %666 = vmatprep.subr.mxu0 0.0
    %667 = vmatpush1.msra.mxu0 0.0
    %668 = vmatprep.subr.mxu0 0.0
    %669 = vmatpush1.msra.mxu0 0.0
    %670 = vmatprep.subr.mxu0 0.0
    %671 = vmatpush1.msra.mxu0 0.0
    %672 = vmatprep.subr.mxu0 0.0
    %673 = vmatpush1.msra.mxu0 0.0
    %674 = vmatprep.subr.mxu0 0.0
    %675 = vmatpush1.msra.mxu0 0.0
    %676 = vmatprep.subr.mxu0 0.0
    %677 = vmatpush1.msra.mxu0 0.0
    %678 = vmatprep.subr.mxu0 0.0
    %679 = vmatpush1.msra.mxu0 0.0
    %680 = vmatprep.subr.mxu0 0.0
    %681 = vmatpush1.msra.mxu0 0.0
    %682 = vmatprep.subr.mxu0 0.0
    %683 = vmatpush1.msra.mxu0 0.0
    %684 = vmatprep.subr.mxu0 0.0
    %685 = vmatpush1.msra.mxu0 0.0
    %686 = vmatprep.subr.mxu0 0.0
    %687 = vmatpush1.msra.mxu0 0.0
    %688 = vmatprep.subr.mxu0 0.0
    %689 = vmatpush1.msra.mxu0 %v89
    %690 = vmatprep.subr.mxu0 0.0
    %691 = vmatpush1.msra.mxu0 %v88
    %692 = vmatprep.subr.mxu0 0.0
    %693 = vmatpush1.msra.mxu0 %v87
    %694 = vmatprep.subr.mxu0 0.0
    %695 = vmatpush1.msra.mxu0 %v86
    %696 = vmatprep.subr.mxu0 0.0
    %697 = vmatpush2.msra.mxu0 0.0
    %698 = vmatprep.subr.mxu0 0.0
    %699 = vmatpush2.msra.mxu0 0.0
    %700 = vmatprep.subr.mxu0 0.0
    %701 = vmatpush2.msra.mxu0 0.0
    %702 = vmatprep.subr.mxu0 0.0
    %703 = vmatpush2.msra.mxu0 0.0
    %704 = vmatprep.subr.mxu0 0.0
    %705 = vmatpush2.msra.mxu0 0.0
    %706 = vmatprep.subr.mxu0 0.0
    %707 = vmatpush2.msra.mxu0 0.0
    %708 = vmatprep.subr.mxu0 0.0
    %709 = vmatpush2.msra.mxu0 0.0
    %710 = vmatprep.subr.mxu0 0.0
    %711 = vmatpush2.msra.mxu0 0.0
    %712 = vmatprep.subr.mxu0 0.0
    %713 = vmatpush2.msra.mxu0 0.0
    %714 = vmatprep.subr.mxu0 0.0
    %715 = vmatpush2.msra.mxu0 0.0
    %716 = vmatprep.subr.mxu0 0.0
    %717 = vmatpush2.msra.mxu0 0.0
    %718 = vmatprep.subr.mxu0 0.0
    %719 = vmatpush2.msra.mxu0 0.0
    %720 = vmatprep.subr.mxu0 0.0
    %721 = vmatpush2.msra.mxu0 0.0
    %722 = vmatprep.subr.mxu0 0.0
    %723 = vmatpush2.msra.mxu0 0.0
    %724 = vmatprep.subr.mxu0 0.0
    %725 = vmatpush2.msra.mxu0 0.0
    %726 = vmatprep.subr.mxu0 0.0
    %727 = vmatpush2.msra.mxu0 0.0
    %728 = vmatprep.mubr.f32.mxu0 0.0
    %729 = vmatmul.mubr.f32.gmra.mxu0 %v662
    %v730 = vpop.f32.mrf.mxu0
    %v731 = vadd.f32 0.0, %v730
    %v732 = vpop.f32.mrf.mxu0
    %733 = vdwg.mxu0
    %735 = vrot.lane.b32.xlu0 %v658, 96
    %v736 = vpop.permute.xlu0 %735
    %v737 = vsel %vm217, %v736, 0
    %739 = vmatprep.subr.mxu0 0.0
    %740 = vmatpush1.msra.mxu0 0.0
    %741 = vmatprep.subr.mxu0 0.0
    %742 = vmatpush1.msra.mxu0 0.0
    %743 = vmatprep.subr.mxu0 0.0
    %744 = vmatpush1.msra.mxu0 0.0
    %745 = vmatprep.subr.mxu0 0.0
    %746 = vmatpush1.msra.mxu0 0.0
    %747 = vmatprep.subr.mxu0 0.0
    %748 = vmatpush1.msra.mxu0 0.0
    %749 = vmatprep.subr.mxu0 0.0
    %750 = vmatpush1.msra.mxu0 0.0
    %751 = vmatprep.subr.mxu0 0.0
    %752 = vmatpush1.msra.mxu0 0.0
    %753 = vmatprep.subr.mxu0 0.0
    %754 = vmatpush1.msra.mxu0 0.0
    %755 = vmatprep.subr.mxu0 0.0
    %756 = vmatpush1.msra.mxu0 0.0
    %757 = vmatprep.subr.mxu0 0.0
    %758 = vmatpush1.msra.mxu0 0.0
    %759 = vmatprep.subr.mxu0 0.0
    %760 = vmatpush1.msra.mxu0 0.0
    %761 = vmatprep.subr.mxu0 0.0
    %762 = vmatpush1.msra.mxu0 0.0
    %763 = vmatprep.subr.mxu0 0.0
    %764 = vmatpush1.msra.mxu0 %v85
    %765 = vmatprep.subr.mxu0 0.0
    %766 = vmatpush1.msra.mxu0 %v84
    %767 = vmatprep.subr.mxu0 0.0
    %768 = vmatpush1.msra.mxu0 %v83
    %769 = vmatprep.subr.mxu0 0.0
    %770 = vmatpush1.msra.mxu0 %v82
    %771 = vmatprep.subr.mxu0 0.0
    %772 = vmatpush2.msra.mxu0 0.0
    %773 = vmatprep.subr.mxu0 0.0
    %774 = vmatpush2.msra.mxu0 0.0
    %775 = vmatprep.subr.mxu0 0.0
    %776 = vmatpush2.msra.mxu0 0.0
    %777 = vmatprep.subr.mxu0 0.0
    %778 = vmatpush2.msra.mxu0 0.0
    %779 = vmatprep.subr.mxu0 0.0
    %780 = vmatpush2.msra.mxu0 0.0
    %781 = vmatprep.subr.mxu0 0.0
    %782 = vmatpush2.msra.mxu0 0.0
    %783 = vmatprep.subr.mxu0 0.0
    %784 = vmatpush2.msra.mxu0 0.0
    %785 = vmatprep.subr.mxu0 0.0
    %786 = vmatpush2.msra.mxu0 0.0
    %787 = vmatprep.subr.mxu0 0.0
    %788 = vmatpush2.msra.mxu0 0.0
    %789 = vmatprep.subr.mxu0 0.0
    %790 = vmatpush2.msra.mxu0 0.0
    %791 = vmatprep.subr.mxu0 0.0
    %792 = vmatpush2.msra.mxu0 0.0
    %793 = vmatprep.subr.mxu0 0.0
    %794 = vmatpush2.msra.mxu0 0.0
    %795 = vmatprep.subr.mxu0 0.0
    %796 = vmatpush2.msra.mxu0 0.0
    %797 = vmatprep.subr.mxu0 0.0
    %798 = vmatpush2.msra.mxu0 0.0
    %799 = vmatprep.subr.mxu0 0.0
    %800 = vmatpush2.msra.mxu0 0.0
    %801 = vmatprep.subr.mxu0 0.0
    %802 = vmatpush2.msra.mxu0 0.0
    %803 = vmatprep.mubr.f32.mxu0 0.0
    %804 = vmatmul.mubr.f32.gmra.mxu0 %v737
    %v805 = vpop.f32.mrf.mxu0
    %v806 = vadd.f32 %v731, %v805
    %v807 = vpop.f32.mrf.mxu0
    %808 = vdwg.mxu0
    %v809 = vadd.f32 %v806, %v109
    %v810 = vtanh.pop %v809
    %v811 = vmul.f32 %v810, 0.5
    %v812 = vadd.f32 %v811, 0.5
    %v813 = vmul.f32 %v812, %v473
    %815 = vrot.lane.b32.xlu0 %v810, 64
    %v816 = vpop.permute.xlu0 %815
    %v818 = vmul.f32 %v812, %v816
    %820 = vrot.lane.b32.xlu0 %v818, 32
    %v821 = vpop.permute.xlu0 %820
    %v823 = vadd.f32 %v813, %v821
    %v824 = vtanh.pop %v823
    %826 = vrot.lane.b32.xlu0 %v824, 64
    %v827 = vpop.permute.xlu0 %826
    %v829 = vmul.f32 %v812, %v827
    %v830 = vrot.slane %v69, 2
    %v831 = vrot.slane %v70, 1
    %v832 = vsel %vm120, %v831, %v830
    %v833 = vsel %vm123, %v71, %v832
    %v834 = vrot.slane %v72, 7
    %v835 = vsel %vm126, %v834, %v833
    %v836 = vrot.slane %v73, 6
    %v837 = vsel %vm129, %v836, %v835
    %v838 = vrot.slane %v74, 5
    %v839 = vsel %vm132, %v838, %v837
    %v840 = vrot.slane %v75, 4
    %v841 = vsel %vm135, %v840, %v839
    %v842 = vrot.slane %v76, 3
    %v843 = vsel %vm138, %v842, %v841
    %v844 = vsel %vm140, %v843, 0
    %846 = vmatprep.subr.mxu0 0.0
    %847 = vmatpush1.msra.mxu0 0.0
    %848 = vmatprep.subr.mxu0 0.0
    %849 = vmatpush1.msra.mxu0 0.0
    %850 = vmatprep.subr.mxu0 0.0
    %851 = vmatpush1.msra.mxu0 0.0
    %852 = vmatprep.subr.mxu0 0.0
    %853 = vmatpush1.msra.mxu0 0.0
    %854 = vmatprep.subr.mxu0 0.0
    %855 = vmatpush1.msra.mxu0 0.0
    %856 = vmatprep.subr.mxu0 0.0
    %857 = vmatpush1.msra.mxu0 0.0
    %858 = vmatprep.subr.mxu0 0.0
    %859 = vmatpush1.msra.mxu0 0.0
    %860 = vmatprep.subr.mxu0 0.0
    %861 = vmatpush1.msra.mxu0 0.0
    %862 = vmatprep.subr.mxu0 0.0
    %863 = vmatpush1.msra.mxu0 0.0
    %864 = vmatprep.subr.mxu0 0.0
    %865 = vmatpush1.msra.mxu0 0.0
    %866 = vmatprep.subr.mxu0 0.0
    %867 = vmatpush1.msra.mxu0 0.0
    %868 = vmatprep.subr.mxu0 0.0
    %869 = vmatpush1.msra.mxu0 0.0
    %870 = vmatprep.subr.mxu0 0.0
    %871 = vmatpush1.msra.mxu0 0.0
    %872 = vmatprep.subr.mxu0 0.0
    %873 = vmatpush1.msra.mxu0 0.0
    %874 = vmatprep.subr.mxu0 0.0
    %875 = vmatpush1.msra.mxu0 0.0
    %876 = vmatprep.subr.mxu0 0.0
    %877 = vmatpush1.msra.mxu0 %v145
    %878 = vmatprep.subr.mxu0 0.0
    %879 = vmatpush2.msra.mxu0 0.0
    %880 = vmatprep.subr.mxu0 0.0
    %881 = vmatpush2.msra.mxu0 0.0
    %882 = vmatprep.subr.mxu0 0.0
    %883 = vmatpush2.msra.mxu0 0.0
    %884 = vmatprep.subr.mxu0 0.0
    %885 = vmatpush2.msra.mxu0 0.0
    %886 = vmatprep.subr.mxu0 0.0
    %887 = vmatpush2.msra.mxu0 0.0
    %888 = vmatprep.subr.mxu0 0.0
    %889 = vmatpush2.msra.mxu0 0.0
    %890 = vmatprep.subr.mxu0 0.0
    %891 = vmatpush2.msra.mxu0 0.0
    %892 = vmatprep.subr.mxu0 0.0
    %893 = vmatpush2.msra.mxu0 0.0
    %894 = vmatprep.subr.mxu0 0.0
    %895 = vmatpush2.msra.mxu0 0.0
    %896 = vmatprep.subr.mxu0 0.0
    %897 = vmatpush2.msra.mxu0 0.0
    %898 = vmatprep.subr.mxu0 0.0
    %899 = vmatpush2.msra.mxu0 0.0
    %900 = vmatprep.subr.mxu0 0.0
    %901 = vmatpush2.msra.mxu0 0.0
    %902 = vmatprep.subr.mxu0 0.0
    %903 = vmatpush2.msra.mxu0 0.0
    %904 = vmatprep.subr.mxu0 0.0
    %905 = vmatpush2.msra.mxu0 0.0
    %906 = vmatprep.subr.mxu0 0.0
    %907 = vmatpush2.msra.mxu0 0.0
    %908 = vmatprep.subr.mxu0 0.0
    %909 = vmatpush2.msra.mxu0 0.0
    %910 = vmatprep.mubr.f32.mxu0 0.0
    %911 = vmatmul.mubr.f32.gmra.mxu0 %v844
    %v912 = vpop.f32.mrf.mxu0
    %v913 = vadd.f32 %v95, %v912
    %v914 = vpop.f32.mrf.mxu0
    %915 = vdwg.mxu0
    %916 = vmatprep.subr.mxu0 0.0
    %917 = vmatpush1.msra.mxu0 0.0
    %918 = vmatprep.subr.mxu0 0.0
    %919 = vmatpush1.msra.mxu0 0.0
    %920 = vmatprep.subr.mxu0 0.0
    %921 = vmatpush1.msra.mxu0 0.0
    %922 = vmatprep.subr.mxu0 0.0
    %923 = vmatpush1.msra.mxu0 0.0
    %924 = vmatprep.subr.mxu0 0.0
    %925 = vmatpush1.msra.mxu0 0.0
    %926 = vmatprep.subr.mxu0 0.0
    %927 = vmatpush1.msra.mxu0 0.0
    %928 = vmatprep.subr.mxu0 0.0
    %929 = vmatpush1.msra.mxu0 0.0
    %930 = vmatprep.subr.mxu0 0.0
    %931 = vmatpush1.msra.mxu0 0.0
    %932 = vmatprep.subr.mxu0 0.0
    %933 = vmatpush1.msra.mxu0 0.0
    %934 = vmatprep.subr.mxu0 0.0
    %935 = vmatpush1.msra.mxu0 0.0
    %936 = vmatprep.subr.mxu0 0.0
    %937 = vmatpush1.msra.mxu0 0.0
    %938 = vmatprep.subr.mxu0 0.0
    %939 = vmatpush1.msra.mxu0 0.0
    %940 = vmatprep.subr.mxu0 0.0
    %941 = vmatpush1.msra.mxu0 %v81
    %942 = vmatprep.subr.mxu0 0.0
    %943 = vmatpush1.msra.mxu0 %v80
    %944 = vmatprep.subr.mxu0 0.0
    %945 = vmatpush1.msra.mxu0 %v79
    %946 = vmatprep.subr.mxu0 0.0
    %947 = vmatpush1.msra.mxu0 %v78
    %948 = vmatprep.subr.mxu0 0.0
    %949 = vmatpush2.msra.mxu0 0.0
    %950 = vmatprep.subr.mxu0 0.0
    %951 = vmatpush2.msra.mxu0 0.0
    %952 = vmatprep.subr.mxu0 0.0
    %953 = vmatpush2.msra.mxu0 0.0
    %954 = vmatprep.subr.mxu0 0.0
    %955 = vmatpush2.msra.mxu0 0.0
    %956 = vmatprep.subr.mxu0 0.0
    %957 = vmatpush2.msra.mxu0 0.0
    %958 = vmatprep.subr.mxu0 0.0
    %959 = vmatpush2.msra.mxu0 0.0
    %960 = vmatprep.subr.mxu0 0.0
    %961 = vmatpush2.msra.mxu0 0.0
    %962 = vmatprep.subr.mxu0 0.0
    %963 = vmatpush2.msra.mxu0 0.0
    %964 = vmatprep.subr.mxu0 0.0
    %965 = vmatpush2.msra.mxu0 0.0
    %966 = vmatprep.subr.mxu0 0.0
    %967 = vmatpush2.msra.mxu0 0.0
    %968 = vmatprep.subr.mxu0 0.0
    %969 = vmatpush2.msra.mxu0 0.0
    %970 = vmatprep.subr.mxu0 0.0
    %971 = vmatpush2.msra.mxu0 0.0
    %972 = vmatprep.subr.mxu0 0.0
    %973 = vmatpush2.msra.mxu0 0.0
    %974 = vmatprep.subr.mxu0 0.0
    %975 = vmatpush2.msra.mxu0 0.0
    %976 = vmatprep.subr.mxu0 0.0
    %977 = vmatpush2.msra.mxu0 0.0
    %978 = vmatprep.subr.mxu0 0.0
    %979 = vmatpush2.msra.mxu0 0.0
    %980 = vmatprep.mubr.f32.mxu0 0.0
    %981 = vmatmul.mubr.f32.gmra.mxu0 %v737
    %v982 = vpop.f32.mrf.mxu0
    %v983 = vadd.f32 %v102, %v982
    %v984 = vpop.f32.mrf.mxu0
    %985 = vdwg.mxu0
    %v986 = vadd.f32 %v913, %v983
    %v987 = vtanh.pop %v986
    %v988 = vmul.f32 %v987, 0.5
    %v989 = vadd.f32 %v988, 0.5
    %991 = vrot.lane.b32.xlu0 %v983, 64
    %v992 = vpop.permute.xlu0 %991
    %v994 = vmul.f32 %v989, %v992
    %996 = vrot.lane.b32.xlu0 %v994, 64
    %v997 = vpop.permute.xlu0 %996
    %v999 = vadd.f32 %v913, %v997
    %v1000 = vtanh.pop %v999
    %v1001 = vsub.f32 1.0, %v989
    %1003 = vrot.lane.b32.xlu0 %v1000, 96
    %v1004 = vpop.permute.xlu0 %1003
    %v1006 = vmul.f32 %v1001, %v1004
    %v1007 = vmul.f32 %v989, %v658
    %v1008 = vadd.f32 %v1006, %v1007
    %1010 = vrot.lane.b32.xlu0 %v829, 32
    %v1011 = vpop.permute.xlu0 %1010
    %v1012 = vsel %vm217, %v1011, 0
    %1014 = vmatprep.subr.mxu0 0.0
    %1015 = vmatpush1.msra.mxu0 0.0
    %1016 = vmatprep.subr.mxu0 0.0
    %1017 = vmatpush1.msra.mxu0 0.0
    %1018 = vmatprep.subr.mxu0 0.0
    %1019 = vmatpush1.msra.mxu0 0.0
    %1020 = vmatprep.subr.mxu0 0.0
    %1021 = vmatpush1.msra.mxu0 0.0
    %1022 = vmatprep.subr.mxu0 0.0
    %1023 = vmatpush1.msra.mxu0 0.0
    %1024 = vmatprep.subr.mxu0 0.0
    %1025 = vmatpush1.msra.mxu0 0.0
    %1026 = vmatprep.subr.mxu0 0.0
    %1027 = vmatpush1.msra.mxu0 0.0
    %1028 = vmatprep.subr.mxu0 0.0
    %1029 = vmatpush1.msra.mxu0 0.0
    %1030 = vmatprep.subr.mxu0 0.0
    %1031 = vmatpush1.msra.mxu0 0.0
    %1032 = vmatprep.subr.mxu0 0.0
    %1033 = vmatpush1.msra.mxu0 0.0
    %1034 = vmatprep.subr.mxu0 0.0
    %1035 = vmatpush1.msra.mxu0 0.0
    %1036 = vmatprep.subr.mxu0 0.0
    %1037 = vmatpush1.msra.mxu0 0.0
    %1038 = vmatprep.subr.mxu0 0.0
    %1039 = vmatpush1.msra.mxu0 %v89
    %1040 = vmatprep.subr.mxu0 0.0
    %1041 = vmatpush1.msra.mxu0 %v88
    %1042 = vmatprep.subr.mxu0 0.0
    %1043 = vmatpush1.msra.mxu0 %v87
    %1044 = vmatprep.subr.mxu0 0.0
    %1045 = vmatpush1.msra.mxu0 %v86
    %1046 = vmatprep.subr.mxu0 0.0
    %1047 = vmatpush2.msra.mxu0 0.0
    %1048 = vmatprep.subr.mxu0 0.0
    %1049 = vmatpush2.msra.mxu0 0.0
    %1050 = vmatprep.subr.mxu0 0.0
    %1051 = vmatpush2.msra.mxu0 0.0
    %1052 = vmatprep.subr.mxu0 0.0
    %1053 = vmatpush2.msra.mxu0 0.0
    %1054 = vmatprep.subr.mxu0 0.0
    %1055 = vmatpush2.msra.mxu0 0.0
    %1056 = vmatprep.subr.mxu0 0.0
    %1057 = vmatpush2.msra.mxu0 0.0
    %1058 = vmatprep.subr.mxu0 0.0
    %1059 = vmatpush2.msra.mxu0 0.0
    %1060 = vmatprep.subr.mxu0 0.0
    %1061 = vmatpush2.msra.mxu0 0.0
    %1062 = vmatprep.subr.mxu0 0.0
    %1063 = vmatpush2.msra.mxu0 0.0
    %1064 = vmatprep.subr.mxu0 0.0
    %1065 = vmatpush2.msra.mxu0 0.0
    %1066 = vmatprep.subr.mxu0 0.0
    %1067 = vmatpush2.msra.mxu0 0.0
    %1068 = vmatprep.subr.mxu0 0.0
    %1069 = vmatpush2.msra.mxu0 0.0
    %1070 = vmatprep.subr.mxu0 0.0
    %1071 = vmatpush2.msra.mxu0 0.0
    %1072 = vmatprep.subr.mxu0 0.0
    %1073 = vmatpush2.msra.mxu0 0.0
    %1074 = vmatprep.subr.mxu0 0.0
    %1075 = vmatpush2.msra.mxu0 0.0
    %1076 = vmatprep.subr.mxu0 0.0
    %1077 = vmatpush2.msra.mxu0 0.0
    %1078 = vmatprep.mubr.f32.mxu0 0.0
    %1079 = vmatmul.mubr.f32.gmra.mxu0 %v1012
    %v1080 = vpop.f32.mrf.mxu0
    %v1081 = vadd.f32 0.0, %v1080
    %v1082 = vpop.f32.mrf.mxu0
    %1083 = vdwg.mxu0
    %1085 = vrot.lane.b32.xlu0 %v1008, 96
    %v1086 = vpop.permute.xlu0 %1085
    %v1087 = vsel %vm217, %v1086, 0
    %1089 = vmatprep.subr.mxu0 0.0
    %1090 = vmatpush1.msra.mxu0 0.0
    %1091 = vmatprep.subr.mxu0 0.0
    %1092 = vmatpush1.msra.mxu0 0.0
    %1093 = vmatprep.subr.mxu0 0.0
    %1094 = vmatpush1.msra.mxu0 0.0
    %1095 = vmatprep.subr.mxu0 0.0
    %1096 = vmatpush1.msra.mxu0 0.0
    %1097 = vmatprep.subr.mxu0 0.0
    %1098 = vmatpush1.msra.mxu0 0.0
    %1099 = vmatprep.subr.mxu0 0.0
    %1100 = vmatpush1.msra.mxu0 0.0
    %1101 = vmatprep.subr.mxu0 0.0
    %1102 = vmatpush1.msra.mxu0 0.0
    %1103 = vmatprep.subr.mxu0 0.0
    %1104 = vmatpush1.msra.mxu0 0.0
    %1105 = vmatprep.subr.mxu0 0.0
    %1106 = vmatpush1.msra.mxu0 0.0
    %1107 = vmatprep.subr.mxu0 0.0
    %1108 = vmatpush1.msra.mxu0 0.0
    %1109 = vmatprep.subr.mxu0 0.0
    %1110 = vmatpush1.msra.mxu0 0.0
    %1111 = vmatprep.subr.mxu0 0.0
    %1112 = vmatpush1.msra.mxu0 0.0
    %1113 = vmatprep.subr.mxu0 0.0
    %1114 = vmatpush1.msra.mxu0 %v85
    %1115 = vmatprep.subr.mxu0 0.0
    %1116 = vmatpush1.msra.mxu0 %v84
    %1117 = vmatprep.subr.mxu0 0.0
    %1118 = vmatpush1.msra.mxu0 %v83
    %1119 = vmatprep.subr.mxu0 0.0
    %1120 = vmatpush1.msra.mxu0 %v82
    %1121 = vmatprep.subr.mxu0 0.0
    %1122 = vmatpush2.msra.mxu0 0.0
    %1123 = vmatprep.subr.mxu0 0.0
    %1124 = vmatpush2.msra.mxu0 0.0
    %1125 = vmatprep.subr.mxu0 0.0
    %1126 = vmatpush2.msra.mxu0 0.0
    %1127 = vmatprep.subr.mxu0 0.0
    %1128 = vmatpush2.msra.mxu0 0.0
    %1129 = vmatprep.subr.mxu0 0.0
    %1130 = vmatpush2.msra.mxu0 0.0
    %1131 = vmatprep.subr.mxu0 0.0
    %1132 = vmatpush2.msra.mxu0 0.0
    %1133 = vmatprep.subr.mxu0 0.0
    %1134 = vmatpush2.msra.mxu0 0.0
    %1135 = vmatprep.subr.mxu0 0.0
    %1136 = vmatpush2.msra.mxu0 0.0
    %1137 = vmatprep.subr.mxu0 0.0
    %1138 = vmatpush2.msra.mxu0 0.0
    %1139 = vmatprep.subr.mxu0 0.0
    %1140 = vmatpush2.msra.mxu0 0.0
    %1141 = vmatprep.subr.mxu0 0.0
    %1142 = vmatpush2.msra.mxu0 0.0
    %1143 = vmatprep.subr.mxu0 0.0
    %1144 = vmatpush2.msra.mxu0 0.0
    %1145 = vmatprep.subr.mxu0 0.0
    %1146 = vmatpush2.msra.mxu0 0.0
    %1147 = vmatprep.subr.mxu0 0.0
    %1148 = vmatpush2.msra.mxu0 0.0
    %1149 = vmatprep.subr.mxu0 0.0
    %1150 = vmatpush2.msra.mxu0 0.0
    %1151 = vmatprep.subr.mxu0 0.0
    %1152 = vmatpush2.msra.mxu0 0.0
    %1153 = vmatprep.mubr.f32.mxu0 0.0
    %1154 = vmatmul.mubr.f32.gmra.mxu0 %v1087
    %v1155 = vpop.f32.mrf.mxu0
    %v1156 = vadd.f32 %v1081, %v1155
    %v1157 = vpop.f32.mrf.mxu0
    %1158 = vdwg.mxu0
    %v1159 = vadd.f32 %v1156, %v109
    %v1160 = vtanh.pop %v1159
    %v1161 = vmul.f32 %v1160, 0.5
    %v1162 = vadd.f32 %v1161, 0.5
    %v1163 = vmul.f32 %v1162, %v823
    %1165 = vrot.lane.b32.xlu0 %v1160, 64
    %v1166 = vpop.permute.xlu0 %1165
    %v1168 = vmul.f32 %v1162, %v1166
    %1170 = vrot.lane.b32.xlu0 %v1168, 32
    %v1171 = vpop.permute.xlu0 %1170
    %v1173 = vadd.f32 %v1163, %v1171
    %v1174 = vtanh.pop %v1173
    %1176 = vrot.lane.b32.xlu0 %v1174, 64
    %v1177 = vpop.permute.xlu0 %1176
    %v1179 = vmul.f32 %v1162, %v1177
    %v1180 = vrot.slane %v69, 3
    %v1181 = vrot.slane %v70, 2
    %v1182 = vsel %vm120, %v1181, %v1180
    %v1183 = vrot.slane %v71, 1
    %v1184 = vsel %vm123, %v1183, %v1182
    %v1185 = vsel %vm126, %v72, %v1184
    %v1186 = vrot.slane %v73, 7
    %v1187 = vsel %vm129, %v1186, %v1185
    %v1188 = vrot.slane %v74, 6
    %v1189 = vsel %vm132, %v1188, %v1187
    %v1190 = vrot.slane %v75, 5
    %v1191 = vsel %vm135, %v1190, %v1189
    %v1192 = vrot.slane %v76, 4
    %v1193 = vsel %vm138, %v1192, %v1191
    %v1194 = vsel %vm140, %v1193, 0
    %1196 = vmatprep.subr.mxu0 0.0
    %1197 = vmatpush1.msra.mxu0 0.0
    %1198 = vmatprep.subr.mxu0 0.0
    %1199 = vmatpush1.msra.mxu0 0.0
    %1200 = vmatprep.subr.mxu0 0.0
    %1201 = vmatpush1.msra.mxu0 0.0
    %1202 = vmatprep.subr.mxu0 0.0
    %1203 = vmatpush1.msra.mxu0 0.0
    %1204 = vmatprep.subr.mxu0 0.0
    %1205 = vmatpush1.msra.mxu0 0.0
    %1206 = vmatprep.subr.mxu0 0.0
    %1207 = vmatpush1.msra.mxu0 0.0
    %1208 = vmatprep.subr.mxu0 0.0
    %1209 = vmatpush1.msra.mxu0 0.0
    %1210 = vmatprep.subr.mxu0 0.0
    %1211 = vmatpush1.msra.mxu0 0.0
    %1212 = vmatprep.subr.mxu0 0.0
    %1213 = vmatpush1.msra.mxu0 0.0
    %1214 = vmatprep.subr.mxu0 0.0
    %1215 = vmatpush1.msra.mxu0 0.0
    %1216 = vmatprep.subr.mxu0 0.0
    %1217 = vmatpush1.msra.mxu0 0.0
    %1218 = vmatprep.subr.mxu0 0.0
    %1219 = vmatpush1.msra.mxu0 0.0
    %1220 = vmatprep.subr.mxu0 0.0
    %1221 = vmatpush1.msra.mxu0 0.0
    %1222 = vmatprep.subr.mxu0 0.0
    %1223 = vmatpush1.msra.mxu0 0.0
    %1224 = vmatprep.subr.mxu0 0.0
    %1225 = vmatpush1.msra.mxu0 0.0
    %1226 = vmatprep.subr.mxu0 0.0
    %1227 = vmatpush1.msra.mxu0 %v145
    %1228 = vmatprep.subr.mxu0 0.0
    %1229 = vmatpush2.msra.mxu0 0.0
    %1230 = vmatprep.subr.mxu0 0.0
    %1231 = vmatpush2.msra.mxu0 0.0
    %1232 = vmatprep.subr.mxu0 0.0
    %1233 = vmatpush2.msra.mxu0 0.0
    %1234 = vmatprep.subr.mxu0 0.0
    %1235 = vmatpush2.msra.mxu0 0.0
    %1236 = vmatprep.subr.mxu0 0.0
    %1237 = vmatpush2.msra.mxu0 0.0
    %1238 = vmatprep.subr.mxu0 0.0
    %1239 = vmatpush2.msra.mxu0 0.0
    %1240 = vmatprep.subr.mxu0 0.0
    %1241 = vmatpush2.msra.mxu0 0.0
    %1242 = vmatprep.subr.mxu0 0.0
    %1243 = vmatpush2.msra.mxu0 0.0
    %1244 = vmatprep.subr.mxu0 0.0
    %1245 = vmatpush2.msra.mxu0 0.0
    %1246 = vmatprep.subr.mxu0 0.0
    %1247 = vmatpush2.msra.mxu0 0.0
    %1248 = vmatprep.subr.mxu0 0.0
    %1249 = vmatpush2.msra.mxu0 0.0
    %1250 = vmatprep.subr.mxu0 0.0
    %1251 = vmatpush2.msra.mxu0 0.0
    %1252 = vmatprep.subr.mxu0 0.0
    %1253 = vmatpush2.msra.mxu0 0.0
    %1254 = vmatprep.subr.mxu0 0.0
    %1255 = vmatpush2.msra.mxu0 0.0
    %1256 = vmatprep.subr.mxu0 0.0
    %1257 = vmatpush2.msra.mxu0 0.0
    %1258 = vmatprep.subr.mxu0 0.0
    %1259 = vmatpush2.msra.mxu0 0.0
    %1260 = vmatprep.mubr.f32.mxu0 0.0
    %1261 = vmatmul.mubr.f32.gmra.mxu0 %v1194
    %v1262 = vpop.f32.mrf.mxu0
    %v1263 = vadd.f32 %v95, %v1262
    %v1264 = vpop.f32.mrf.mxu0
    %1265 = vdwg.mxu0
    %1266 = vmatprep.subr.mxu0 0.0
    %1267 = vmatpush1.msra.mxu0 0.0
    %1268 = vmatprep.subr.mxu0 0.0
    %1269 = vmatpush1.msra.mxu0 0.0
    %1270 = vmatprep.subr.mxu0 0.0
    %1271 = vmatpush1.msra.mxu0 0.0
    %1272 = vmatprep.subr.mxu0 0.0
    %1273 = vmatpush1.msra.mxu0 0.0
    %1274 = vmatprep.subr.mxu0 0.0
    %1275 = vmatpush1.msra.mxu0 0.0
    %1276 = vmatprep.subr.mxu0 0.0
    %1277 = vmatpush1.msra.mxu0 0.0
    %1278 = vmatprep.subr.mxu0 0.0
    %1279 = vmatpush1.msra.mxu0 0.0
    %1280 = vmatprep.subr.mxu0 0.0
    %1281 = vmatpush1.msra.mxu0 0.0
    %1282 = vmatprep.subr.mxu0 0.0
    %1283 = vmatpush1.msra.mxu0 0.0
    %1284 = vmatprep.subr.mxu0 0.0
    %1285 = vmatpush1.msra.mxu0 0.0
    %1286 = vmatprep.subr.mxu0 0.0
    %1287 = vmatpush1.msra.mxu0 0.0
    %1288 = vmatprep.subr.mxu0 0.0
    %1289 = vmatpush1.msra.mxu0 0.0
    %1290 = vmatprep.subr.mxu0 0.0
    %1291 = vmatpush1.msra.mxu0 %v81
    %1292 = vmatprep.subr.mxu0 0.0
    %1293 = vmatpush1.msra.mxu0 %v80
    %1294 = vmatprep.subr.mxu0 0.0
    %1295 = vmatpush1.msra.mxu0 %v79
    %1296 = vmatprep.subr.mxu0 0.0
    %1297 = vmatpush1.msra.mxu0 %v78
    %1298 = vmatprep.subr.mxu0 0.0
    %1299 = vmatpush2.msra.mxu0 0.0
    %1300 = vmatprep.subr.mxu0 0.0
    %1301 = vmatpush2.msra.mxu0 0.0
    %1302 = vmatprep.subr.mxu0 0.0
    %1303 = vmatpush2.msra.mxu0 0.0
    %1304 = vmatprep.subr.mxu0 0.0
    %1305 = vmatpush2.msra.mxu0 0.0
    %1306 = vmatprep.subr.mxu0 0.0
    %1307 = vmatpush2.msra.mxu0 0.0
    %1308 = vmatprep.subr.mxu0 0.0
    %1309 = vmatpush2.msra.mxu0 0.0
    %1310 = vmatprep.subr.mxu0 0.0
    %1311 = vmatpush2.msra.mxu0 0.0
    %1312 = vmatprep.subr.mxu0 0.0
    %1313 = vmatpush2.msra.mxu0 0.0
    %1314 = vmatprep.subr.mxu0 0.0
    %1315 = vmatpush2.msra.mxu0 0.0
    %1316 = vmatprep.subr.mxu0 0.0
    %1317 = vmatpush2.msra.mxu0 0.0
    %1318 = vmatprep.subr.mxu0 0.0
    %1319 = vmatpush2.msra.mxu0 0.0
    %1320 = vmatprep.subr.mxu0 0.0
    %1321 = vmatpush2.msra.mxu0 0.0
    %1322 = vmatprep.subr.mxu0 0.0
    %1323 = vmatpush2.msra.mxu0 0.0
    %1324 = vmatprep.subr.mxu0 0.0
    %1325 = vmatpush2.msra.mxu0 0.0
    %1326 = vmatprep.subr.mxu0 0.0
    %1327 = vmatpush2.msra.mxu0 0.0
    %1328 = vmatprep.subr.mxu0 0.0
    %1329 = vmatpush2.msra.mxu0 0.0
    %1330 = vmatprep.mubr.f32.mxu0 0.0
    %1331 = vmatmul.mubr.f32.gmra.mxu0 %v1087
    %v1332 = vpop.f32.mrf.mxu0
    %v1333 = vadd.f32 %v102, %v1332
    %v1334 = vpop.f32.mrf.mxu0
    %1335 = vdwg.mxu0
    %v1336 = vadd.f32 %v1263, %v1333
    %v1337 = vtanh.pop %v1336
    %v1338 = vmul.f32 %v1337, 0.5
    %v1339 = vadd.f32 %v1338, 0.5
    %1341 = vrot.lane.b32.xlu0 %v1333, 64
    %v1342 = vpop.permute.xlu0 %1341
    %v1344 = vmul.f32 %v1339, %v1342
    %1346 = vrot.lane.b32.xlu0 %v1344, 64
    %v1347 = vpop.permute.xlu0 %1346
    %v1349 = vadd.f32 %v1263, %v1347
    %v1350 = vtanh.pop %v1349
    %v1351 = vsub.f32 1.0, %v1339
    %1353 = vrot.lane.b32.xlu0 %v1350, 96
    %v1354 = vpop.permute.xlu0 %1353
    %v1356 = vmul.f32 %v1351, %v1354
    %v1357 = vmul.f32 %v1339, %v1008
    %v1358 = vadd.f32 %v1356, %v1357
    %1360 = vrot.lane.b32.xlu0 %v1179, 32
    %v1361 = vpop.permute.xlu0 %1360
    %v1362 = vsel %vm217, %v1361, 0
    %1364 = vmatprep.subr.mxu0 0.0
    %1365 = vmatpush1.msra.mxu0 0.0
    %1366 = vmatprep.subr.mxu0 0.0
    %1367 = vmatpush1.msra.mxu0 0.0
    %1368 = vmatprep.subr.mxu0 0.0
    %1369 = vmatpush1.msra.mxu0 0.0
    %1370 = vmatprep.subr.mxu0 0.0
    %1371 = vmatpush1.msra.mxu0 0.0
    %1372 = vmatprep.subr.mxu0 0.0
    %1373 = vmatpush1.msra.mxu0 0.0
    %1374 = vmatprep.subr.mxu0 0.0
    %1375 = vmatpush1.msra.mxu0 0.0
    %1376 = vmatprep.subr.mxu0 0.0
    %1377 = vmatpush1.msra.mxu0 0.0
    %1378 = vmatprep.subr.mxu0 0.0
    %1379 = vmatpush1.msra.mxu0 0.0
    %1380 = vmatprep.subr.mxu0 0.0
    %1381 = vmatpush1.msra.mxu0 0.0
    %1382 = vmatprep.subr.mxu0 0.0
    %1383 = vmatpush1.msra.mxu0 0.0
    %1384 = vmatprep.subr.mxu0 0.0
    %1385 = vmatpush1.msra.mxu0 0.0
    %1386 = vmatprep.subr.mxu0 0.0
    %1387 = vmatpush1.msra.mxu0 0.0
    %1388 = vmatprep.subr.mxu0 0.0
    %1389 = vmatpush1.msra.mxu0 %v89
    %1390 = vmatprep.subr.mxu0 0.0
    %1391 = vmatpush1.msra.mxu0 %v88
    %1392 = vmatprep.subr.mxu0 0.0
    %1393 = vmatpush1.msra.mxu0 %v87
    %1394 = vmatprep.subr.mxu0 0.0
    %1395 = vmatpush1.msra.mxu0 %v86
    %1396 = vmatprep.subr.mxu0 0.0
    %1397 = vmatpush2.msra.mxu0 0.0
    %1398 = vmatprep.subr.mxu0 0.0
    %1399 = vmatpush2.msra.mxu0 0.0
    %1400 = vmatprep.subr.mxu0 0.0
    %1401 = vmatpush2.msra.mxu0 0.0
    %1402 = vmatprep.subr.mxu0 0.0
    %1403 = vmatpush2.msra.mxu0 0.0
    %1404 = vmatprep.subr.mxu0 0.0
    %1405 = vmatpush2.msra.mxu0 0.0
    %1406 = vmatprep.subr.mxu0 0.0
    %1407 = vmatpush2.msra.mxu0 0.0
    %1408 = vmatprep.subr.mxu0 0.0
    %1409 = vmatpush2.msra.mxu0 0.0
    %1410 = vmatprep.subr.mxu0 0.0
    %1411 = vmatpush2.msra.mxu0 0.0
    %1412 = vmatprep.subr.mxu0 0.0
    %1413 = vmatpush2.msra.mxu0 0.0
    %1414 = vmatprep.subr.mxu0 0.0
    %1415 = vmatpush2.msra.mxu0 0.0
    %1416 = vmatprep.subr.mxu0 0.0
    %1417 = vmatpush2.msra.mxu0 0.0
    %1418 = vmatprep.subr.mxu0 0.0
    %1419 = vmatpush2.msra.mxu0 0.0
    %1420 = vmatprep.subr.mxu0 0.0
    %1421 = vmatpush2.msra.mxu0 0.0
    %1422 = vmatprep.subr.mxu0 0.0
    %1423 = vmatpush2.msra.mxu0 0.0
    %1424 = vmatprep.subr.mxu0 0.0
    %1425 = vmatpush2.msra.mxu0 0.0
    %1426 = vmatprep.subr.mxu0 0.0
    %1427 = vmatpush2.msra.mxu0 0.0
    %1428 = vmatprep.mubr.f32.mxu0 0.0
    %1429 = vmatmul.mubr.f32.gmra.mxu0 %v1362
    %v1430 = vpop.f32.mrf.mxu0
    %v1431 = vadd.f32 0.0, %v1430
    %v1432 = vpop.f32.mrf.mxu0
    %1433 = vdwg.mxu0
    %1435 = vrot.lane.b32.xlu0 %v1358, 96
    %v1436 = vpop.permute.xlu0 %1435
    %v1437 = vsel %vm217, %v1436, 0
    %1439 = vmatprep.subr.mxu0 0.0
    %1440 = vmatpush1.msra.mxu0 0.0
    %1441 = vmatprep.subr.mxu0 0.0
    %1442 = vmatpush1.msra.mxu0 0.0
    %1443 = vmatprep.subr.mxu0 0.0
    %1444 = vmatpush1.msra.mxu0 0.0
    %1445 = vmatprep.subr.mxu0 0.0
    %1446 = vmatpush1.msra.mxu0 0.0
    %1447 = vmatprep.subr.mxu0 0.0
    %1448 = vmatpush1.msra.mxu0 0.0
    %1449 = vmatprep.subr.mxu0 0.0
    %1450 = vmatpush1.msra.mxu0 0.0
    %1451 = vmatprep.subr.mxu0 0.0
    %1452 = vmatpush1.msra.mxu0 0.0
    %1453 = vmatprep.subr.mxu0 0.0
    %1454 = vmatpush1.msra.mxu0 0.0
    %1455 = vmatprep.subr.mxu0 0.0
    %1456 = vmatpush1.msra.mxu0 0.0
    %1457 = vmatprep.subr.mxu0 0.0
    %1458 = vmatpush1.msra.mxu0 0.0
    %1459 = vmatprep.subr.mxu0 0.0
    %1460 = vmatpush1.msra.mxu0 0.0
    %1461 = vmatprep.subr.mxu0 0.0
    %1462 = vmatpush1.msra.mxu0 0.0
    %1463 = vmatprep.subr.mxu0 0.0
    %1464 = vmatpush1.msra.mxu0 %v85
    %1465 = vmatprep.subr.mxu0 0.0
    %1466 = vmatpush1.msra.mxu0 %v84
    %1467 = vmatprep.subr.mxu0 0.0
    %1468 = vmatpush1.msra.mxu0 %v83
    %1469 = vmatprep.subr.mxu0 0.0
    %1470 = vmatpush1.msra.mxu0 %v82
    %1471 = vmatprep.subr.mxu0 0.0
    %1472 = vmatpush2.msra.mxu0 0.0
    %1473 = vmatprep.subr.mxu0 0.0
    %1474 = vmatpush2.msra.mxu0 0.0
    %1475 = vmatprep.subr.mxu0 0.0
    %1476 = vmatpush2.msra.mxu0 0.0
    %1477 = vmatprep.subr.mxu0 0.0
    %1478 = vmatpush2.msra.mxu0 0.0
    %1479 = vmatprep.subr.mxu0 0.0
    %1480 = vmatpush2.msra.mxu0 0.0
    %1481 = vmatprep.subr.mxu0 0.0
    %1482 = vmatpush2.msra.mxu0 0.0
    %1483 = vmatprep.subr.mxu0 0.0
    %1484 = vmatpush2.msra.mxu0 0.0
    %1485 = vmatprep.subr.mxu0 0.0
    %1486 = vmatpush2.msra.mxu0 0.0
    %1487 = vmatprep.subr.mxu0 0.0
    %1488 = vmatpush2.msra.mxu0 0.0
    %1489 = vmatprep.subr.mxu0 0.0
    %1490 = vmatpush2.msra.mxu0 0.0
    %1491 = vmatprep.subr.mxu0 0.0
    %1492 = vmatpush2.msra.mxu0 0.0
    %1493 = vmatprep.subr.mxu0 0.0
    %1494 = vmatpush2.msra.mxu0 0.0
    %1495 = vmatprep.subr.mxu0 0.0
    %1496 = vmatpush2.msra.mxu0 0.0
    %1497 = vmatprep.subr.mxu0 0.0
    %1498 = vmatpush2.msra.mxu0 0.0
    %1499 = vmatprep.subr.mxu0 0.0
    %1500 = vmatpush2.msra.mxu0 0.0
    %1501 = vmatprep.subr.mxu0 0.0
    %1502 = vmatpush2.msra.mxu0 0.0
    %1503 = vmatprep.mubr.f32.mxu0 0.0
    %1504 = vmatmul.mubr.f32.gmra.mxu0 %v1437
    %v1505 = vpop.f32.mrf.mxu0
    %v1506 = vadd.f32 %v1431, %v1505
    %v1507 = vpop.f32.mrf.mxu0
    %1508 = vdwg.mxu0
    %v1509 = vadd.f32 %v1506, %v109
    %v1510 = vtanh.pop %v1509
    %v1511 = vmul.f32 %v1510, 0.5
    %v1512 = vadd.f32 %v1511, 0.5
    %v1513 = vmul.f32 %v1512, %v1173
    %1515 = vrot.lane.b32.xlu0 %v1510, 64
    %v1516 = vpop.permute.xlu0 %1515
    %v1518 = vmul.f32 %v1512, %v1516
    %1520 = vrot.lane.b32.xlu0 %v1518, 32
    %v1521 = vpop.permute.xlu0 %1520
    %v1523 = vadd.f32 %v1513, %v1521
    %v1524 = vtanh.pop %v1523
    %1526 = vrot.lane.b32.xlu0 %v1524, 64
    %v1527 = vpop.permute.xlu0 %1526
    %v1529 = vmul.f32 %v1512, %v1527
    %v1530 = vrot.slane %v69, 4
    %v1531 = vrot.slane %v70, 3
    %v1532 = vsel %vm120, %v1531, %v1530
    %v1533 = vrot.slane %v71, 2
    %v1534 = vsel %vm123, %v1533, %v1532
    %v1535 = vrot.slane %v72, 1
    %v1536 = vsel %vm126, %v1535, %v1534
    %v1537 = vsel %vm129, %v73, %v1536
    %v1538 = vrot.slane %v74, 7
    %v1539 = vsel %vm132, %v1538, %v1537
    %v1540 = vrot.slane %v75, 6
    %v1541 = vsel %vm135, %v1540, %v1539
    %v1542 = vrot.slane %v76, 5
    %v1543 = vsel %vm138, %v1542, %v1541
    %v1544 = vsel %vm140, %v1543, 0
    %1546 = vmatprep.subr.mxu0 0.0
    %1547 = vmatpush1.msra.mxu0 0.0
    %1548 = vmatprep.subr.mxu0 0.0
    %1549 = vmatpush1.msra.mxu0 0.0
    %1550 = vmatprep.subr.mxu0 0.0
    %1551 = vmatpush1.msra.mxu0 0.0
    %1552 = vmatprep.subr.mxu0 0.0
    %1553 = vmatpush1.msra.mxu0 0.0
    %1554 = vmatprep.subr.mxu0 0.0
    %1555 = vmatpush1.msra.mxu0 0.0
    %1556 = vmatprep.subr.mxu0 0.0
    %1557 = vmatpush1.msra.mxu0 0.0
    %1558 = vmatprep.subr.mxu0 0.0
    %1559 = vmatpush1.msra.mxu0 0.0
    %1560 = vmatprep.subr.mxu0 0.0
    %1561 = vmatpush1.msra.mxu0 0.0
    %1562 = vmatprep.subr.mxu0 0.0
    %1563 = vmatpush1.msra.mxu0 0.0
    %1564 = vmatprep.subr.mxu0 0.0
    %1565 = vmatpush1.msra.mxu0 0.0
    %1566 = vmatprep.subr.mxu0 0.0
    %1567 = vmatpush1.msra.mxu0 0.0
    %1568 = vmatprep.subr.mxu0 0.0
    %1569 = vmatpush1.msra.mxu0 0.0
    %1570 = vmatprep.subr.mxu0 0.0
    %1571 = vmatpush1.msra.mxu0 0.0
    %1572 = vmatprep.subr.mxu0 0.0
    %1573 = vmatpush1.msra.mxu0 0.0
    %1574 = vmatprep.subr.mxu0 0.0
    %1575 = vmatpush1.msra.mxu0 0.0
    %1576 = vmatprep.subr.mxu0 0.0
    %1577 = vmatpush1.msra.mxu0 %v145
    %1578 = vmatprep.subr.mxu0 0.0
    %1579 = vmatpush2.msra.mxu0 0.0
    %1580 = vmatprep.subr.mxu0 0.0
    %1581 = vmatpush2.msra.mxu0 0.0
    %1582 = vmatprep.subr.mxu0 0.0
    %1583 = vmatpush2.msra.mxu0 0.0
    %1584 = vmatprep.subr.mxu0 0.0
    %1585 = vmatpush2.msra.mxu0 0.0
    %1586 = vmatprep.subr.mxu0 0.0
    %1587 = vmatpush2.msra.mxu0 0.0
    %1588 = vmatprep.subr.mxu0 0.0
    %1589 = vmatpush2.msra.mxu0 0.0
    %1590 = vmatprep.subr.mxu0 0.0
    %1591 = vmatpush2.msra.mxu0 0.0
    %1592 = vmatprep.subr.mxu0 0.0
    %1593 = vmatpush2.msra.mxu0 0.0
    %1594 = vmatprep.subr.mxu0 0.0
    %1595 = vmatpush2.msra.mxu0 0.0
    %1596 = vmatprep.subr.mxu0 0.0
    %1597 = vmatpush2.msra.mxu0 0.0
    %1598 = vmatprep.subr.mxu0 0.0
    %1599 = vmatpush2.msra.mxu0 0.0
    %1600 = vmatprep.subr.mxu0 0.0
    %1601 = vmatpush2.msra.mxu0 0.0
    %1602 = vmatprep.subr.mxu0 0.0
    %1603 = vmatpush2.msra.mxu0 0.0
    %1604 = vmatprep.subr.mxu0 0.0
    %1605 = vmatpush2.msra.mxu0 0.0
    %1606 = vmatprep.subr.mxu0 0.0
    %1607 = vmatpush2.msra.mxu0 0.0
    %1608 = vmatprep.subr.mxu0 0.0
    %1609 = vmatpush2.msra.mxu0 0.0
    %1610 = vmatprep.mubr.f32.mxu0 0.0
    %1611 = vmatmul.mubr.f32.gmra.mxu0 %v1544
    %v1612 = vpop.f32.mrf.mxu0
    %v1613 = vadd.f32 %v95, %v1612
    %v1614 = vpop.f32.mrf.mxu0
    %1615 = vdwg.mxu0
    %1616 = vmatprep.subr.mxu0 0.0
    %1617 = vmatpush1.msra.mxu0 0.0
    %1618 = vmatprep.subr.mxu0 0.0
    %1619 = vmatpush1.msra.mxu0 0.0
    %1620 = vmatprep.subr.mxu0 0.0
    %1621 = vmatpush1.msra.mxu0 0.0
    %1622 = vmatprep.subr.mxu0 0.0
    %1623 = vmatpush1.msra.mxu0 0.0
    %1624 = vmatprep.subr.mxu0 0.0
    %1625 = vmatpush1.msra.mxu0 0.0
    %1626 = vmatprep.subr.mxu0 0.0
    %1627 = vmatpush1.msra.mxu0 0.0
    %1628 = vmatprep.subr.mxu0 0.0
    %1629 = vmatpush1.msra.mxu0 0.0
    %1630 = vmatprep.subr.mxu0 0.0
    %1631 = vmatpush1.msra.mxu0 0.0
    %1632 = vmatprep.subr.mxu0 0.0
    %1633 = vmatpush1.msra.mxu0 0.0
    %1634 = vmatprep.subr.mxu0 0.0
    %1635 = vmatpush1.msra.mxu0 0.0
    %1636 = vmatprep.subr.mxu0 0.0
    %1637 = vmatpush1.msra.mxu0 0.0
    %1638 = vmatprep.subr.mxu0 0.0
    %1639 = vmatpush1.msra.mxu0 0.0
    %1640 = vmatprep.subr.mxu0 0.0
    %1641 = vmatpush1.msra.mxu0 %v81
    %1642 = vmatprep.subr.mxu0 0.0
    %1643 = vmatpush1.msra.mxu0 %v80
    %1644 = vmatprep.subr.mxu0 0.0
    %1645 = vmatpush1.msra.mxu0 %v79
    %1646 = vmatprep.subr.mxu0 0.0
    %1647 = vmatpush1.msra.mxu0 %v78
    %1648 = vmatprep.subr.mxu0 0.0
    %1649 = vmatpush2.msra.mxu0 0.0
    %1650 = vmatprep.subr.mxu0 0.0
    %1651 = vmatpush2.msra.mxu0 0.0
    %1652 = vmatprep.subr.mxu0 0.0
    %1653 = vmatpush2.msra.mxu0 0.0
    %1654 = vmatprep.subr.mxu0 0.0
    %1655 = vmatpush2.msra.mxu0 0.0
    %1656 = vmatprep.subr.mxu0 0.0
    %1657 = vmatpush2.msra.mxu0 0.0
    %1658 = vmatprep.subr.mxu0 0.0
    %1659 = vmatpush2.msra.mxu0 0.0
    %1660 = vmatprep.subr.mxu0 0.0
    %1661 = vmatpush2.msra.mxu0 0.0
    %1662 = vmatprep.subr.mxu0 0.0
    %1663 = vmatpush2.msra.mxu0 0.0
    %1664 = vmatprep.subr.mxu0 0.0
    %1665 = vmatpush2.msra.mxu0 0.0
    %1666 = vmatprep.subr.mxu0 0.0
    %1667 = vmatpush2.msra.mxu0 0.0
    %1668 = vmatprep.subr.mxu0 0.0
    %1669 = vmatpush2.msra.mxu0 0.0
    %1670 = vmatprep.subr.mxu0 0.0
    %1671 = vmatpush2.msra.mxu0 0.0
    %1672 = vmatprep.subr.mxu0 0.0
    %1673 = vmatpush2.msra.mxu0 0.0
    %1674 = vmatprep.subr.mxu0 0.0
    %1675 = vmatpush2.msra.mxu0 0.0
    %1676 = vmatprep.subr.mxu0 0.0
    %1677 = vmatpush2.msra.mxu0 0.0
    %1678 = vmatprep.subr.mxu0 0.0
    %1679 = vmatpush2.msra.mxu0 0.0
    %1680 = vmatprep.mubr.f32.mxu0 0.0
    %1681 = vmatmul.mubr.f32.gmra.mxu0 %v1437
    %v1682 = vpop.f32.mrf.mxu0
    %v1683 = vadd.f32 %v102, %v1682
    %v1684 = vpop.f32.mrf.mxu0
    %1685 = vdwg.mxu0
    %v1686 = vadd.f32 %v1613, %v1683
    %v1687 = vtanh.pop %v1686
    %v1688 = vmul.f32 %v1687, 0.5
    %v1689 = vadd.f32 %v1688, 0.5
    %1691 = vrot.lane.b32.xlu0 %v1683, 64
    %v1692 = vpop.permute.xlu0 %1691
    %v1694 = vmul.f32 %v1689, %v1692
    %1696 = vrot.lane.b32.xlu0 %v1694, 64
    %v1697 = vpop.permute.xlu0 %1696
    %v1699 = vadd.f32 %v1613, %v1697
    %v1700 = vtanh.pop %v1699
    %v1701 = vsub.f32 1.0, %v1689
    %1703 = vrot.lane.b32.xlu0 %v1700, 96
    %v1704 = vpop.permute.xlu0 %1703
    %v1706 = vmul.f32 %v1701, %v1704
    %v1707 = vmul.f32 %v1689, %v1358
    %v1708 = vadd.f32 %v1706, %v1707
    %1710 = vrot.lane.b32.xlu0 %v1529, 32
    %v1711 = vpop.permute.xlu0 %1710
    %v1712 = vsel %vm217, %v1711, 0
    %1714 = vmatprep.subr.mxu0 0.0
    %1715 = vmatpush1.msra.mxu0 0.0
    %1716 = vmatprep.subr.mxu0 0.0
    %1717 = vmatpush1.msra.mxu0 0.0
    %1718 = vmatprep.subr.mxu0 0.0
    %1719 = vmatpush1.msra.mxu0 0.0
    %1720 = vmatprep.subr.mxu0 0.0
    %1721 = vmatpush1.msra.mxu0 0.0
    %1722 = vmatprep.subr.mxu0 0.0
    %1723 = vmatpush1.msra.mxu0 0.0
    %1724 = vmatprep.subr.mxu0 0.0
    %1725 = vmatpush1.msra.mxu0 0.0
    %1726 = vmatprep.subr.mxu0 0.0
    %1727 = vmatpush1.msra.mxu0 0.0
    %1728 = vmatprep.subr.mxu0 0.0
    %1729 = vmatpush1.msra.mxu0 0.0
    %1730 = vmatprep.subr.mxu0 0.0
    %1731 = vmatpush1.msra.mxu0 0.0
    %1732 = vmatprep.subr.mxu0 0.0
    %1733 = vmatpush1.msra.mxu0 0.0
    %1734 = vmatprep.subr.mxu0 0.0
    %1735 = vmatpush1.msra.mxu0 0.0
    %1736 = vmatprep.subr.mxu0 0.0
    %1737 = vmatpush1.msra.mxu0 0.0
    %1738 = vmatprep.subr.mxu0 0.0
    %1739 = vmatpush1.msra.mxu0 %v89
    %1740 = vmatprep.subr.mxu0 0.0
    %1741 = vmatpush1.msra.mxu0 %v88
    %1742 = vmatprep.subr.mxu0 0.0
    %1743 = vmatpush1.msra.mxu0 %v87
    %1744 = vmatprep.subr.mxu0 0.0
    %1745 = vmatpush1.msra.mxu0 %v86
    %1746 = vmatprep.subr.mxu0 0.0
    %1747 = vmatpush2.msra.mxu0 0.0
    %1748 = vmatprep.subr.mxu0 0.0
    %1749 = vmatpush2.msra.mxu0 0.0
    %1750 = vmatprep.subr.mxu0 0.0
    %1751 = vmatpush2.msra.mxu0 0.0
    %1752 = vmatprep.subr.mxu0 0.0
    %1753 = vmatpush2.msra.mxu0 0.0
    %1754 = vmatprep.subr.mxu0 0.0
    %1755 = vmatpush2.msra.mxu0 0.0
    %1756 = vmatprep.subr.mxu0 0.0
    %1757 = vmatpush2.msra.mxu0 0.0
    %1758 = vmatprep.subr.mxu0 0.0
    %1759 = vmatpush2.msra.mxu0 0.0
    %1760 = vmatprep.subr.mxu0 0.0
    %1761 = vmatpush2.msra.mxu0 0.0
    %1762 = vmatprep.subr.mxu0 0.0
    %1763 = vmatpush2.msra.mxu0 0.0
    %1764 = vmatprep.subr.mxu0 0.0
    %1765 = vmatpush2.msra.mxu0 0.0
    %1766 = vmatprep.subr.mxu0 0.0
    %1767 = vmatpush2.msra.mxu0 0.0
    %1768 = vmatprep.subr.mxu0 0.0
    %1769 = vmatpush2.msra.mxu0 0.0
    %1770 = vmatprep.subr.mxu0 0.0
    %1771 = vmatpush2.msra.mxu0 0.0
    %1772 = vmatprep.subr.mxu0 0.0
    %1773 = vmatpush2.msra.mxu0 0.0
    %1774 = vmatprep.subr.mxu0 0.0
    %1775 = vmatpush2.msra.mxu0 0.0
    %1776 = vmatprep.subr.mxu0 0.0
    %1777 = vmatpush2.msra.mxu0 0.0
    %1778 = vmatprep.mubr.f32.mxu0 0.0
    %1779 = vmatmul.mubr.f32.gmra.mxu0 %v1712
    %v1780 = vpop.f32.mrf.mxu0
    %v1781 = vadd.f32 0.0, %v1780
    %v1782 = vpop.f32.mrf.mxu0
    %1783 = vdwg.mxu0
    %1785 = vrot.lane.b32.xlu0 %v1708, 96
    %v1786 = vpop.permute.xlu0 %1785
    %v1787 = vsel %vm217, %v1786, 0
    %1789 = vmatprep.subr.mxu0 0.0
    %1790 = vmatpush1.msra.mxu0 0.0
    %1791 = vmatprep.subr.mxu0 0.0
    %1792 = vmatpush1.msra.mxu0 0.0
    %1793 = vmatprep.subr.mxu0 0.0
    %1794 = vmatpush1.msra.mxu0 0.0
    %1795 = vmatprep.subr.mxu0 0.0
    %1796 = vmatpush1.msra.mxu0 0.0
    %1797 = vmatprep.subr.mxu0 0.0
    %1798 = vmatpush1.msra.mxu0 0.0
    %1799 = vmatprep.subr.mxu0 0.0
    %1800 = vmatpush1.msra.mxu0 0.0
    %1801 = vmatprep.subr.mxu0 0.0
    %1802 = vmatpush1.msra.mxu0 0.0
    %1803 = vmatprep.subr.mxu0 0.0
    %1804 = vmatpush1.msra.mxu0 0.0
    %1805 = vmatprep.subr.mxu0 0.0
    %1806 = vmatpush1.msra.mxu0 0.0
    %1807 = vmatprep.subr.mxu0 0.0
    %1808 = vmatpush1.msra.mxu0 0.0
    %1809 = vmatprep.subr.mxu0 0.0
    %1810 = vmatpush1.msra.mxu0 0.0
    %1811 = vmatprep.subr.mxu0 0.0
    %1812 = vmatpush1.msra.mxu0 0.0
    %1813 = vmatprep.subr.mxu0 0.0
    %1814 = vmatpush1.msra.mxu0 %v85
    %1815 = vmatprep.subr.mxu0 0.0
    %1816 = vmatpush1.msra.mxu0 %v84
    %1817 = vmatprep.subr.mxu0 0.0
    %1818 = vmatpush1.msra.mxu0 %v83
    %1819 = vmatprep.subr.mxu0 0.0
    %1820 = vmatpush1.msra.mxu0 %v82
    %1821 = vmatprep.subr.mxu0 0.0
    %1822 = vmatpush2.msra.mxu0 0.0
    %1823 = vmatprep.subr.mxu0 0.0
    %1824 = vmatpush2.msra.mxu0 0.0
    %1825 = vmatprep.subr.mxu0 0.0
    %1826 = vmatpush2.msra.mxu0 0.0
    %1827 = vmatprep.subr.mxu0 0.0
    %1828 = vmatpush2.msra.mxu0 0.0
    %1829 = vmatprep.subr.mxu0 0.0
    %1830 = vmatpush2.msra.mxu0 0.0
    %1831 = vmatprep.subr.mxu0 0.0
    %1832 = vmatpush2.msra.mxu0 0.0
    %1833 = vmatprep.subr.mxu0 0.0
    %1834 = vmatpush2.msra.mxu0 0.0
    %1835 = vmatprep.subr.mxu0 0.0
    %1836 = vmatpush2.msra.mxu0 0.0
    %1837 = vmatprep.subr.mxu0 0.0
    %1838 = vmatpush2.msra.mxu0 0.0
    %1839 = vmatprep.subr.mxu0 0.0
    %1840 = vmatpush2.msra.mxu0 0.0
    %1841 = vmatprep.subr.mxu0 0.0
    %1842 = vmatpush2.msra.mxu0 0.0
    %1843 = vmatprep.subr.mxu0 0.0
    %1844 = vmatpush2.msra.mxu0 0.0
    %1845 = vmatprep.subr.mxu0 0.0
    %1846 = vmatpush2.msra.mxu0 0.0
    %1847 = vmatprep.subr.mxu0 0.0
    %1848 = vmatpush2.msra.mxu0 0.0
    %1849 = vmatprep.subr.mxu0 0.0
    %1850 = vmatpush2.msra.mxu0 0.0
    %1851 = vmatprep.subr.mxu0 0.0
    %1852 = vmatpush2.msra.mxu0 0.0
    %1853 = vmatprep.mubr.f32.mxu0 0.0
    %1854 = vmatmul.mubr.f32.gmra.mxu0 %v1787
    %v1855 = vpop.f32.mrf.mxu0
    %v1856 = vadd.f32 %v1781, %v1855
    %v1857 = vpop.f32.mrf.mxu0
    %1858 = vdwg.mxu0
    %v1859 = vadd.f32 %v1856, %v109
    %v1860 = vtanh.pop %v1859
    %v1861 = vmul.f32 %v1860, 0.5
    %v1862 = vadd.f32 %v1861, 0.5
    %v1863 = vmul.f32 %v1862, %v1523
    %1865 = vrot.lane.b32.xlu0 %v1860, 64
    %v1866 = vpop.permute.xlu0 %1865
    %v1868 = vmul.f32 %v1862, %v1866
    %1870 = vrot.lane.b32.xlu0 %v1868, 32
    %v1871 = vpop.permute.xlu0 %1870
    %v1873 = vadd.f32 %v1863, %v1871
    %v1874 = vtanh.pop %v1873
    %1876 = vrot.lane.b32.xlu0 %v1874, 64
    %v1877 = vpop.permute.xlu0 %1876
    %v1879 = vmul.f32 %v1862, %v1877
    %v1880 = vrot.slane %v69, 5
    %v1881 = vrot.slane %v70, 4
    %v1882 = vsel %vm120, %v1881, %v1880
    %v1883 = vrot.slane %v71, 3
    %v1884 = vsel %vm123, %v1883, %v1882
    %v1885 = vrot.slane %v72, 2
    %v1886 = vsel %vm126, %v1885, %v1884
    %v1887 = vrot.slane %v73, 1
    %v1888 = vsel %vm129, %v1887, %v1886
    %v1889 = vsel %vm132, %v74, %v1888
    %v1890 = vrot.slane %v75, 7
    %v1891 = vsel %vm135, %v1890, %v1889
    %v1892 = vrot.slane %v76, 6
    %v1893 = vsel %vm138, %v1892, %v1891
    %v1894 = vsel %vm140, %v1893, 0
    %1896 = vmatprep.subr.mxu0 0.0
    %1897 = vmatpush1.msra.mxu0 0.0
    %1898 = vmatprep.subr.mxu0 0.0
    %1899 = vmatpush1.msra.mxu0 0.0
    %1900 = vmatprep.subr.mxu0 0.0
    %1901 = vmatpush1.msra.mxu0 0.0
    %1902 = vmatprep.subr.mxu0 0.0
    %1903 = vmatpush1.msra.mxu0 0.0
    %1904 = vmatprep.subr.mxu0 0.0
    %1905 = vmatpush1.msra.mxu0 0.0
    %1906 = vmatprep.subr.mxu0 0.0
    %1907 = vmatpush1.msra.mxu0 0.0
    %1908 = vmatprep.subr.mxu0 0.0
    %1909 = vmatpush1.msra.mxu0 0.0
    %1910 = vmatprep.subr.mxu0 0.0
    %1911 = vmatpush1.msra.mxu0 0.0
    %1912 = vmatprep.subr.mxu0 0.0
    %1913 = vmatpush1.msra.mxu0 0.0
    %1914 = vmatprep.subr.mxu0 0.0
    %1915 = vmatpush1.msra.mxu0 0.0
    %1916 = vmatprep.subr.mxu0 0.0
    %1917 = vmatpush1.msra.mxu0 0.0
    %1918 = vmatprep.subr.mxu0 0.0
    %1919 = vmatpush1.msra.mxu0 0.0
    %1920 = vmatprep.subr.mxu0 0.0
    %1921 = vmatpush1.msra.mxu0 0.0
    %1922 = vmatprep.subr.mxu0 0.0
    %1923 = vmatpush1.msra.mxu0 0.0
    %1924 = vmatprep.subr.mxu0 0.0
    %1925 = vmatpush1.msra.mxu0 0.0
    %1926 = vmatprep.subr.mxu0 0.0
    %1927 = vmatpush1.msra.mxu0 %v145
    %1928 = vmatprep.subr.mxu0 0.0
    %1929 = vmatpush2.msra.mxu0 0.0
    %1930 = vmatprep.subr.mxu0 0.0
    %1931 = vmatpush2.msra.mxu0 0.0
    %1932 = vmatprep.subr.mxu0 0.0
    %1933 = vmatpush2.msra.mxu0 0.0
    %1934 = vmatprep.subr.mxu0 0.0
    %1935 = vmatpush2.msra.mxu0 0.0
    %1936 = vmatprep.subr.mxu0 0.0
    %1937 = vmatpush2.msra.mxu0 0.0
    %1938 = vmatprep.subr.mxu0 0.0
    %1939 = vmatpush2.msra.mxu0 0.0
    %1940 = vmatprep.subr.mxu0 0.0
    %1941 = vmatpush2.msra.mxu0 0.0
    %1942 = vmatprep.subr.mxu0 0.0
    %1943 = vmatpush2.msra.mxu0 0.0
    %1944 = vmatprep.subr.mxu0 0.0
    %1945 = vmatpush2.msra.mxu0 0.0
    %1946 = vmatprep.subr.mxu0 0.0
    %1947 = vmatpush2.msra.mxu0 0.0
    %1948 = vmatprep.subr.mxu0 0.0
    %1949 = vmatpush2.msra.mxu0 0.0
    %1950 = vmatprep.subr.mxu0 0.0
    %1951 = vmatpush2.msra.mxu0 0.0
    %1952 = vmatprep.subr.mxu0 0.0
    %1953 = vmatpush2.msra.mxu0 0.0
    %1954 = vmatprep.subr.mxu0 0.0
    %1955 = vmatpush2.msra.mxu0 0.0
    %1956 = vmatprep.subr.mxu0 0.0
    %1957 = vmatpush2.msra.mxu0 0.0
    %1958 = vmatprep.subr.mxu0 0.0
    %1959 = vmatpush2.msra.mxu0 0.0
    %1960 = vmatprep.mubr.f32.mxu0 0.0
    %1961 = vmatmul.mubr.f32.gmra.mxu0 %v1894
    %v1962 = vpop.f32.mrf.mxu0
    %v1963 = vadd.f32 %v95, %v1962
    %v1964 = vpop.f32.mrf.mxu0
    %1965 = vdwg.mxu0
    %1966 = vmatprep.subr.mxu0 0.0
    %1967 = vmatpush1.msra.mxu0 0.0
    %1968 = vmatprep.subr.mxu0 0.0
    %1969 = vmatpush1.msra.mxu0 0.0
    %1970 = vmatprep.subr.mxu0 0.0
    %1971 = vmatpush1.msra.mxu0 0.0
    %1972 = vmatprep.subr.mxu0 0.0
    %1973 = vmatpush1.msra.mxu0 0.0
    %1974 = vmatprep.subr.mxu0 0.0
    %1975 = vmatpush1.msra.mxu0 0.0
    %1976 = vmatprep.subr.mxu0 0.0
    %1977 = vmatpush1.msra.mxu0 0.0
    %1978 = vmatprep.subr.mxu0 0.0
    %1979 = vmatpush1.msra.mxu0 0.0
    %1980 = vmatprep.subr.mxu0 0.0
    %1981 = vmatpush1.msra.mxu0 0.0
    %1982 = vmatprep.subr.mxu0 0.0
    %1983 = vmatpush1.msra.mxu0 0.0
    %1984 = vmatprep.subr.mxu0 0.0
    %1985 = vmatpush1.msra.mxu0 0.0
    %1986 = vmatprep.subr.mxu0 0.0
    %1987 = vmatpush1.msra.mxu0 0.0
    %1988 = vmatprep.subr.mxu0 0.0
    %1989 = vmatpush1.msra.mxu0 0.0
    %1990 = vmatprep.subr.mxu0 0.0
    %1991 = vmatpush1.msra.mxu0 %v81
    %1992 = vmatprep.subr.mxu0 0.0
    %1993 = vmatpush1.msra.mxu0 %v80
    %1994 = vmatprep.subr.mxu0 0.0
    %1995 = vmatpush1.msra.mxu0 %v79
    %1996 = vmatprep.subr.mxu0 0.0
    %1997 = vmatpush1.msra.mxu0 %v78
    %1998 = vmatprep.subr.mxu0 0.0
    %1999 = vmatpush2.msra.mxu0 0.0
    %2000 = vmatprep.subr.mxu0 0.0
    %2001 = vmatpush2.msra.mxu0 0.0
    %2002 = vmatprep.subr.mxu0 0.0
    %2003 = vmatpush2.msra.mxu0 0.0
    %2004 = vmatprep.subr.mxu0 0.0
    %2005 = vmatpush2.msra.mxu0 0.0
    %2006 = vmatprep.subr.mxu0 0.0
    %2007 = vmatpush2.msra.mxu0 0.0
    %2008 = vmatprep.subr.mxu0 0.0
    %2009 = vmatpush2.msra.mxu0 0.0
    %2010 = vmatprep.subr.mxu0 0.0
    %2011 = vmatpush2.msra.mxu0 0.0
    %2012 = vmatprep.subr.mxu0 0.0
    %2013 = vmatpush2.msra.mxu0 0.0
    %2014 = vmatprep.subr.mxu0 0.0
    %2015 = vmatpush2.msra.mxu0 0.0
    %2016 = vmatprep.subr.mxu0 0.0
    %2017 = vmatpush2.msra.mxu0 0.0
    %2018 = vmatprep.subr.mxu0 0.0
    %2019 = vmatpush2.msra.mxu0 0.0
    %2020 = vmatprep.subr.mxu0 0.0
    %2021 = vmatpush2.msra.mxu0 0.0
    %2022 = vmatprep.subr.mxu0 0.0
    %2023 = vmatpush2.msra.mxu0 0.0
    %2024 = vmatprep.subr.mxu0 0.0
    %2025 = vmatpush2.msra.mxu0 0.0
    %2026 = vmatprep.subr.mxu0 0.0
    %2027 = vmatpush2.msra.mxu0 0.0
    %2028 = vmatprep.subr.mxu0 0.0
    %2029 = vmatpush2.msra.mxu0 0.0
    %2030 = vmatprep.mubr.f32.mxu0 0.0
    %2031 = vmatmul.mubr.f32.gmra.mxu0 %v1787
    %v2032 = vpop.f32.mrf.mxu0
    %v2033 = vadd.f32 %v102, %v2032
    %v2034 = vpop.f32.mrf.mxu0
    %2035 = vdwg.mxu0
    %v2036 = vadd.f32 %v1963, %v2033
    %v2037 = vtanh.pop %v2036
    %v2038 = vmul.f32 %v2037, 0.5
    %v2039 = vadd.f32 %v2038, 0.5
    %2041 = vrot.lane.b32.xlu0 %v2033, 64
    %v2042 = vpop.permute.xlu0 %2041
    %v2044 = vmul.f32 %v2039, %v2042
    %2046 = vrot.lane.b32.xlu0 %v2044, 64
    %v2047 = vpop.permute.xlu0 %2046
    %v2049 = vadd.f32 %v1963, %v2047
    %v2050 = vtanh.pop %v2049
    %v2051 = vsub.f32 1.0, %v2039
    %2053 = vrot.lane.b32.xlu0 %v2050, 96
    %v2054 = vpop.permute.xlu0 %2053
    %v2056 = vmul.f32 %v2051, %v2054
    %v2057 = vmul.f32 %v2039, %v1708
    %v2058 = vadd.f32 %v2056, %v2057
    %2060 = vrot.lane.b32.xlu0 %v1879, 32
    %v2061 = vpop.permute.xlu0 %2060
    %v2062 = vsel %vm217, %v2061, 0
    %2064 = vmatprep.subr.mxu0 0.0
    %2065 = vmatpush1.msra.mxu0 0.0
    %2066 = vmatprep.subr.mxu0 0.0
    %2067 = vmatpush1.msra.mxu0 0.0
    %2068 = vmatprep.subr.mxu0 0.0
    %2069 = vmatpush1.msra.mxu0 0.0
    %2070 = vmatprep.subr.mxu0 0.0
    %2071 = vmatpush1.msra.mxu0 0.0
    %2072 = vmatprep.subr.mxu0 0.0
    %2073 = vmatpush1.msra.mxu0 0.0
    %2074 = vmatprep.subr.mxu0 0.0
    %2075 = vmatpush1.msra.mxu0 0.0
    %2076 = vmatprep.subr.mxu0 0.0
    %2077 = vmatpush1.msra.mxu0 0.0
    %2078 = vmatprep.subr.mxu0 0.0
    %2079 = vmatpush1.msra.mxu0 0.0
    %2080 = vmatprep.subr.mxu0 0.0
    %2081 = vmatpush1.msra.mxu0 0.0
    %2082 = vmatprep.subr.mxu0 0.0
    %2083 = vmatpush1.msra.mxu0 0.0
    %2084 = vmatprep.subr.mxu0 0.0
    %2085 = vmatpush1.msra.mxu0 0.0
    %2086 = vmatprep.subr.mxu0 0.0
    %2087 = vmatpush1.msra.mxu0 0.0
    %2088 = vmatprep.subr.mxu0 0.0
    %2089 = vmatpush1.msra.mxu0 %v89
    %2090 = vmatprep.subr.mxu0 0.0
    %2091 = vmatpush1.msra.mxu0 %v88
    %2092 = vmatprep.subr.mxu0 0.0
    %2093 = vmatpush1.msra.mxu0 %v87
    %2094 = vmatprep.subr.mxu0 0.0
    %2095 = vmatpush1.msra.mxu0 %v86
    %2096 = vmatprep.subr.mxu0 0.0
    %2097 = vmatpush2.msra.mxu0 0.0
    %2098 = vmatprep.subr.mxu0 0.0
    %2099 = vmatpush2.msra.mxu0 0.0
    %2100 = vmatprep.subr.mxu0 0.0
    %2101 = vmatpush2.msra.mxu0 0.0
    %2102 = vmatprep.subr.mxu0 0.0
    %2103 = vmatpush2.msra.mxu0 0.0
    %2104 = vmatprep.subr.mxu0 0.0
    %2105 = vmatpush2.msra.mxu0 0.0
    %2106 = vmatprep.subr.mxu0 0.0
    %2107 = vmatpush2.msra.mxu0 0.0
    %2108 = vmatprep.subr.mxu0 0.0
    %2109 = vmatpush2.msra.mxu0 0.0
    %2110 = vmatprep.subr.mxu0 0.0
    %2111 = vmatpush2.msra.mxu0 0.0
    %2112 = vmatprep.subr.mxu0 0.0
    %2113 = vmatpush2.msra.mxu0 0.0
    %2114 = vmatprep.subr.mxu0 0.0
    %2115 = vmatpush2.msra.mxu0 0.0
    %2116 = vmatprep.subr.mxu0 0.0
    %2117 = vmatpush2.msra.mxu0 0.0
    %2118 = vmatprep.subr.mxu0 0.0
    %2119 = vmatpush2.msra.mxu0 0.0
    %2120 = vmatprep.subr.mxu0 0.0
    %2121 = vmatpush2.msra.mxu0 0.0
    %2122 = vmatprep.subr.mxu0 0.0
    %2123 = vmatpush2.msra.mxu0 0.0
    %2124 = vmatprep.subr.mxu0 0.0
    %2125 = vmatpush2.msra.mxu0 0.0
    %2126 = vmatprep.subr.mxu0 0.0
    %2127 = vmatpush2.msra.mxu0 0.0
    %2128 = vmatprep.mubr.f32.mxu0 0.0
    %2129 = vmatmul.mubr.f32.gmra.mxu0 %v2062
    %v2130 = vpop.f32.mrf.mxu0
    %v2131 = vadd.f32 0.0, %v2130
    %v2132 = vpop.f32.mrf.mxu0
    %2133 = vdwg.mxu0
    %2135 = vrot.lane.b32.xlu0 %v2058, 96
    %v2136 = vpop.permute.xlu0 %2135
    %v2137 = vsel %vm217, %v2136, 0
    %2139 = vmatprep.subr.mxu0 0.0
    %2140 = vmatpush1.msra.mxu0 0.0
    %2141 = vmatprep.subr.mxu0 0.0
    %2142 = vmatpush1.msra.mxu0 0.0
    %2143 = vmatprep.subr.mxu0 0.0
    %2144 = vmatpush1.msra.mxu0 0.0
    %2145 = vmatprep.subr.mxu0 0.0
    %2146 = vmatpush1.msra.mxu0 0.0
    %2147 = vmatprep.subr.mxu0 0.0
    %2148 = vmatpush1.msra.mxu0 0.0
    %2149 = vmatprep.subr.mxu0 0.0
    %2150 = vmatpush1.msra.mxu0 0.0
    %2151 = vmatprep.subr.mxu0 0.0
    %2152 = vmatpush1.msra.mxu0 0.0
    %2153 = vmatprep.subr.mxu0 0.0
    %2154 = vmatpush1.msra.mxu0 0.0
    %2155 = vmatprep.subr.mxu0 0.0
    %2156 = vmatpush1.msra.mxu0 0.0
    %2157 = vmatprep.subr.mxu0 0.0
    %2158 = vmatpush1.msra.mxu0 0.0
    %2159 = vmatprep.subr.mxu0 0.0
    %2160 = vmatpush1.msra.mxu0 0.0
    %2161 = vmatprep.subr.mxu0 0.0
    %2162 = vmatpush1.msra.mxu0 0.0
    %2163 = vmatprep.subr.mxu0 0.0
    %2164 = vmatpush1.msra.mxu0 %v85
    %2165 = vmatprep.subr.mxu0 0.0
    %2166 = vmatpush1.msra.mxu0 %v84
    %2167 = vmatprep.subr.mxu0 0.0
    %2168 = vmatpush1.msra.mxu0 %v83
    %2169 = vmatprep.subr.mxu0 0.0
    %2170 = vmatpush1.msra.mxu0 %v82
    %2171 = vmatprep.subr.mxu0 0.0
    %2172 = vmatpush2.msra.mxu0 0.0
    %2173 = vmatprep.subr.mxu0 0.0
    %2174 = vmatpush2.msra.mxu0 0.0
    %2175 = vmatprep.subr.mxu0 0.0
    %2176 = vmatpush2.msra.mxu0 0.0
    %2177 = vmatprep.subr.mxu0 0.0
    %2178 = vmatpush2.msra.mxu0 0.0
    %2179 = vmatprep.subr.mxu0 0.0
    %2180 = vmatpush2.msra.mxu0 0.0
    %2181 = vmatprep.subr.mxu0 0.0
    %2182 = vmatpush2.msra.mxu0 0.0
    %2183 = vmatprep.subr.mxu0 0.0
    %2184 = vmatpush2.msra.mxu0 0.0
    %2185 = vmatprep.subr.mxu0 0.0
    %2186 = vmatpush2.msra.mxu0 0.0
    %2187 = vmatprep.subr.mxu0 0.0
    %2188 = vmatpush2.msra.mxu0 0.0
    %2189 = vmatprep.subr.mxu0 0.0
    %2190 = vmatpush2.msra.mxu0 0.0
    %2191 = vmatprep.subr.mxu0 0.0
    %2192 = vmatpush2.msra.mxu0 0.0
    %2193 = vmatprep.subr.mxu0 0.0
    %2194 = vmatpush2.msra.mxu0 0.0
    %2195 = vmatprep.subr.mxu0 0.0
    %2196 = vmatpush2.msra.mxu0 0.0
    %2197 = vmatprep.subr.mxu0 0.0
    %2198 = vmatpush2.msra.mxu0 0.0
    %2199 = vmatprep.subr.mxu0 0.0
    %2200 = vmatpush2.msra.mxu0 0.0
    %2201 = vmatprep.subr.mxu0 0.0
    %2202 = vmatpush2.msra.mxu0 0.0
    %2203 = vmatprep.mubr.f32.mxu0 0.0
    %2204 = vmatmul.mubr.f32.gmra.mxu0 %v2137
    %v2205 = vpop.f32.mrf.mxu0
    %v2206 = vadd.f32 %v2131, %v2205
    %v2207 = vpop.f32.mrf.mxu0
    %2208 = vdwg.mxu0
    %v2209 = vadd.f32 %v2206, %v109
    %v2210 = vtanh.pop %v2209
    %v2211 = vmul.f32 %v2210, 0.5
    %v2212 = vadd.f32 %v2211, 0.5
    %v2213 = vmul.f32 %v2212, %v1873
    %2215 = vrot.lane.b32.xlu0 %v2210, 64
    %v2216 = vpop.permute.xlu0 %2215
    %v2218 = vmul.f32 %v2212, %v2216
    %2220 = vrot.lane.b32.xlu0 %v2218, 32
    %v2221 = vpop.permute.xlu0 %2220
    %v2223 = vadd.f32 %v2213, %v2221
    %v2224 = vtanh.pop %v2223
    %2226 = vrot.lane.b32.xlu0 %v2224, 64
    %v2227 = vpop.permute.xlu0 %2226
    %v2229 = vmul.f32 %v2212, %v2227
    %v2230 = vrot.slane %v69, 6
    %v2231 = vrot.slane %v70, 5
    %v2232 = vsel %vm120, %v2231, %v2230
    %v2233 = vrot.slane %v71, 4
    %v2234 = vsel %vm123, %v2233, %v2232
    %v2235 = vrot.slane %v72, 3
    %v2236 = vsel %vm126, %v2235, %v2234
    %v2237 = vrot.slane %v73, 2
    %v2238 = vsel %vm129, %v2237, %v2236
    %v2239 = vrot.slane %v74, 1
    %v2240 = vsel %vm132, %v2239, %v2238
    %v2241 = vsel %vm135, %v75, %v2240
    %v2242 = vrot.slane %v76, 7
    %v2243 = vsel %vm138, %v2242, %v2241
    %v2244 = vsel %vm140, %v2243, 0
    %2246 = vmatprep.subr.mxu0 0.0
    %2247 = vmatpush1.msra.mxu0 0.0
    %2248 = vmatprep.subr.mxu0 0.0
    %2249 = vmatpush1.msra.mxu0 0.0
    %2250 = vmatprep.subr.mxu0 0.0
    %2251 = vmatpush1.msra.mxu0 0.0
    %2252 = vmatprep.subr.mxu0 0.0
    %2253 = vmatpush1.msra.mxu0 0.0
    %2254 = vmatprep.subr.mxu0 0.0
    %2255 = vmatpush1.msra.mxu0 0.0
    %2256 = vmatprep.subr.mxu0 0.0
    %2257 = vmatpush1.msra.mxu0 0.0
    %2258 = vmatprep.subr.mxu0 0.0
    %2259 = vmatpush1.msra.mxu0 0.0
    %2260 = vmatprep.subr.mxu0 0.0
    %2261 = vmatpush1.msra.mxu0 0.0
    %2262 = vmatprep.subr.mxu0 0.0
    %2263 = vmatpush1.msra.mxu0 0.0
    %2264 = vmatprep.subr.mxu0 0.0
    %2265 = vmatpush1.msra.mxu0 0.0
    %2266 = vmatprep.subr.mxu0 0.0
    %2267 = vmatpush1.msra.mxu0 0.0
    %2268 = vmatprep.subr.mxu0 0.0
    %2269 = vmatpush1.msra.mxu0 0.0
    %2270 = vmatprep.subr.mxu0 0.0
    %2271 = vmatpush1.msra.mxu0 0.0
    %2272 = vmatprep.subr.mxu0 0.0
    %2273 = vmatpush1.msra.mxu0 0.0
    %2274 = vmatprep.subr.mxu0 0.0
    %2275 = vmatpush1.msra.mxu0 0.0
    %2276 = vmatprep.subr.mxu0 0.0
    %2277 = vmatpush1.msra.mxu0 %v145
    %2278 = vmatprep.subr.mxu0 0.0
    %2279 = vmatpush2.msra.mxu0 0.0
    %2280 = vmatprep.subr.mxu0 0.0
    %2281 = vmatpush2.msra.mxu0 0.0
    %2282 = vmatprep.subr.mxu0 0.0
    %2283 = vmatpush2.msra.mxu0 0.0
    %2284 = vmatprep.subr.mxu0 0.0
    %2285 = vmatpush2.msra.mxu0 0.0
    %2286 = vmatprep.subr.mxu0 0.0
    %2287 = vmatpush2.msra.mxu0 0.0
    %2288 = vmatprep.subr.mxu0 0.0
    %2289 = vmatpush2.msra.mxu0 0.0
    %2290 = vmatprep.subr.mxu0 0.0
    %2291 = vmatpush2.msra.mxu0 0.0
    %2292 = vmatprep.subr.mxu0 0.0
    %2293 = vmatpush2.msra.mxu0 0.0
    %2294 = vmatprep.subr.mxu0 0.0
    %2295 = vmatpush2.msra.mxu0 0.0
    %2296 = vmatprep.subr.mxu0 0.0
    %2297 = vmatpush2.msra.mxu0 0.0
    %2298 = vmatprep.subr.mxu0 0.0
    %2299 = vmatpush2.msra.mxu0 0.0
    %2300 = vmatprep.subr.mxu0 0.0
    %2301 = vmatpush2.msra.mxu0 0.0
    %2302 = vmatprep.subr.mxu0 0.0
    %2303 = vmatpush2.msra.mxu0 0.0
    %2304 = vmatprep.subr.mxu0 0.0
    %2305 = vmatpush2.msra.mxu0 0.0
    %2306 = vmatprep.subr.mxu0 0.0
    %2307 = vmatpush2.msra.mxu0 0.0
    %2308 = vmatprep.subr.mxu0 0.0
    %2309 = vmatpush2.msra.mxu0 0.0
    %2310 = vmatprep.mubr.f32.mxu0 0.0
    %2311 = vmatmul.mubr.f32.gmra.mxu0 %v2244
    %v2312 = vpop.f32.mrf.mxu0
    %v2313 = vadd.f32 %v95, %v2312
    %v2314 = vpop.f32.mrf.mxu0
    %2315 = vdwg.mxu0
    %2316 = vmatprep.subr.mxu0 0.0
    %2317 = vmatpush1.msra.mxu0 0.0
    %2318 = vmatprep.subr.mxu0 0.0
    %2319 = vmatpush1.msra.mxu0 0.0
    %2320 = vmatprep.subr.mxu0 0.0
    %2321 = vmatpush1.msra.mxu0 0.0
    %2322 = vmatprep.subr.mxu0 0.0
    %2323 = vmatpush1.msra.mxu0 0.0
    %2324 = vmatprep.subr.mxu0 0.0
    %2325 = vmatpush1.msra.mxu0 0.0
    %2326 = vmatprep.subr.mxu0 0.0
    %2327 = vmatpush1.msra.mxu0 0.0
    %2328 = vmatprep.subr.mxu0 0.0
    %2329 = vmatpush1.msra.mxu0 0.0
    %2330 = vmatprep.subr.mxu0 0.0
    %2331 = vmatpush1.msra.mxu0 0.0
    %2332 = vmatprep.subr.mxu0 0.0
    %2333 = vmatpush1.msra.mxu0 0.0
    %2334 = vmatprep.subr.mxu0 0.0
    %2335 = vmatpush1.msra.mxu0 0.0
    %2336 = vmatprep.subr.mxu0 0.0
    %2337 = vmatpush1.msra.mxu0 0.0
    %2338 = vmatprep.subr.mxu0 0.0
    %2339 = vmatpush1.msra.mxu0 0.0
    %2340 = vmatprep.subr.mxu0 0.0
    %2341 = vmatpush1.msra.mxu0 %v81
    %2342 = vmatprep.subr.mxu0 0.0
    %2343 = vmatpush1.msra.mxu0 %v80
    %2344 = vmatprep.subr.mxu0 0.0
    %2345 = vmatpush1.msra.mxu0 %v79
    %2346 = vmatprep.subr.mxu0 0.0
    %2347 = vmatpush1.msra.mxu0 %v78
    %2348 = vmatprep.subr.mxu0 0.0
    %2349 = vmatpush2.msra.mxu0 0.0
    %2350 = vmatprep.subr.mxu0 0.0
    %2351 = vmatpush2.msra.mxu0 0.0
    %2352 = vmatprep.subr.mxu0 0.0
    %2353 = vmatpush2.msra.mxu0 0.0
    %2354 = vmatprep.subr.mxu0 0.0
    %2355 = vmatpush2.msra.mxu0 0.0
    %2356 = vmatprep.subr.mxu0 0.0
    %2357 = vmatpush2.msra.mxu0 0.0
    %2358 = vmatprep.subr.mxu0 0.0
    %2359 = vmatpush2.msra.mxu0 0.0
    %2360 = vmatprep.subr.mxu0 0.0
    %2361 = vmatpush2.msra.mxu0 0.0
    %2362 = vmatprep.subr.mxu0 0.0
    %2363 = vmatpush2.msra.mxu0 0.0
    %2364 = vmatprep.subr.mxu0 0.0
    %2365 = vmatpush2.msra.mxu0 0.0
    %2366 = vmatprep.subr.mxu0 0.0
    %2367 = vmatpush2.msra.mxu0 0.0
    %2368 = vmatprep.subr.mxu0 0.0
    %2369 = vmatpush2.msra.mxu0 0.0
    %2370 = vmatprep.subr.mxu0 0.0
    %2371 = vmatpush2.msra.mxu0 0.0
    %2372 = vmatprep.subr.mxu0 0.0
    %2373 = vmatpush2.msra.mxu0 0.0
    %2374 = vmatprep.subr.mxu0 0.0
    %2375 = vmatpush2.msra.mxu0 0.0
    %2376 = vmatprep.subr.mxu0 0.0
    %2377 = vmatpush2.msra.mxu0 0.0
    %2378 = vmatprep.subr.mxu0 0.0
    %2379 = vmatpush2.msra.mxu0 0.0
    %2380 = vmatprep.mubr.f32.mxu0 0.0
    %2381 = vmatmul.mubr.f32.gmra.mxu0 %v2137
    %v2382 = vpop.f32.mrf.mxu0
    %v2383 = vadd.f32 %v102, %v2382
    %v2384 = vpop.f32.mrf.mxu0
    %2385 = vdwg.mxu0
    %v2386 = vadd.f32 %v2313, %v2383
    %v2387 = vtanh.pop %v2386
    %v2388 = vmul.f32 %v2387, 0.5
    %v2389 = vadd.f32 %v2388, 0.5
    %2391 = vrot.lane.b32.xlu0 %v2383, 64
    %v2392 = vpop.permute.xlu0 %2391
    %v2394 = vmul.f32 %v2389, %v2392
    %2396 = vrot.lane.b32.xlu0 %v2394, 64
    %v2397 = vpop.permute.xlu0 %2396
    %v2399 = vadd.f32 %v2313, %v2397
    %v2400 = vtanh.pop %v2399
    %v2401 = vsub.f32 1.0, %v2389
    %2403 = vrot.lane.b32.xlu0 %v2400, 96
    %v2404 = vpop.permute.xlu0 %2403
    %v2406 = vmul.f32 %v2401, %v2404
    %v2407 = vmul.f32 %v2389, %v2058
    %v2408 = vadd.f32 %v2406, %v2407
    %2410 = vrot.lane.b32.xlu0 %v2229, 32
    %v2411 = vpop.permute.xlu0 %2410
    %v2412 = vsel %vm217, %v2411, 0
    %2414 = vmatprep.subr.mxu0 0.0
    %2415 = vmatpush1.msra.mxu0 0.0
    %2416 = vmatprep.subr.mxu0 0.0
    %2417 = vmatpush1.msra.mxu0 0.0
    %2418 = vmatprep.subr.mxu0 0.0
    %2419 = vmatpush1.msra.mxu0 0.0
    %2420 = vmatprep.subr.mxu0 0.0
    %2421 = vmatpush1.msra.mxu0 0.0
    %2422 = vmatprep.subr.mxu0 0.0
    %2423 = vmatpush1.msra.mxu0 0.0
    %2424 = vmatprep.subr.mxu0 0.0
    %2425 = vmatpush1.msra.mxu0 0.0
    %2426 = vmatprep.subr.mxu0 0.0
    %2427 = vmatpush1.msra.mxu0 0.0
    %2428 = vmatprep.subr.mxu0 0.0
    %2429 = vmatpush1.msra.mxu0 0.0
    %2430 = vmatprep.subr.mxu0 0.0
    %2431 = vmatpush1.msra.mxu0 0.0
    %2432 = vmatprep.subr.mxu0 0.0
    %2433 = vmatpush1.msra.mxu0 0.0
    %2434 = vmatprep.subr.mxu0 0.0
    %2435 = vmatpush1.msra.mxu0 0.0
    %2436 = vmatprep.subr.mxu0 0.0
    %2437 = vmatpush1.msra.mxu0 0.0
    %2438 = vmatprep.subr.mxu0 0.0
    %2439 = vmatpush1.msra.mxu0 %v89
    %2440 = vmatprep.subr.mxu0 0.0
    %2441 = vmatpush1.msra.mxu0 %v88
    %2442 = vmatprep.subr.mxu0 0.0
    %2443 = vmatpush1.msra.mxu0 %v87
    %2444 = vmatprep.subr.mxu0 0.0
    %2445 = vmatpush1.msra.mxu0 %v86
    %2446 = vmatprep.subr.mxu0 0.0
    %2447 = vmatpush2.msra.mxu0 0.0
    %2448 = vmatprep.subr.mxu0 0.0
    %2449 = vmatpush2.msra.mxu0 0.0
    %2450 = vmatprep.subr.mxu0 0.0
    %2451 = vmatpush2.msra.mxu0 0.0
    %2452 = vmatprep.subr.mxu0 0.0
    %2453 = vmatpush2.msra.mxu0 0.0
    %2454 = vmatprep.subr.mxu0 0.0
    %2455 = vmatpush2.msra.mxu0 0.0
    %2456 = vmatprep.subr.mxu0 0.0
    %2457 = vmatpush2.msra.mxu0 0.0
    %2458 = vmatprep.subr.mxu0 0.0
    %2459 = vmatpush2.msra.mxu0 0.0
    %2460 = vmatprep.subr.mxu0 0.0
    %2461 = vmatpush2.msra.mxu0 0.0
    %2462 = vmatprep.subr.mxu0 0.0
    %2463 = vmatpush2.msra.mxu0 0.0
    %2464 = vmatprep.subr.mxu0 0.0
    %2465 = vmatpush2.msra.mxu0 0.0
    %2466 = vmatprep.subr.mxu0 0.0
    %2467 = vmatpush2.msra.mxu0 0.0
    %2468 = vmatprep.subr.mxu0 0.0
    %2469 = vmatpush2.msra.mxu0 0.0
    %2470 = vmatprep.subr.mxu0 0.0
    %2471 = vmatpush2.msra.mxu0 0.0
    %2472 = vmatprep.subr.mxu0 0.0
    %2473 = vmatpush2.msra.mxu0 0.0
    %2474 = vmatprep.subr.mxu0 0.0
    %2475 = vmatpush2.msra.mxu0 0.0
    %2476 = vmatprep.subr.mxu0 0.0
    %2477 = vmatpush2.msra.mxu0 0.0
    %2478 = vmatprep.mubr.f32.mxu0 0.0
    %2479 = vmatmul.mubr.f32.gmra.mxu0 %v2412
    %v2480 = vpop.f32.mrf.mxu0
    %v2481 = vadd.f32 0.0, %v2480
    %v2482 = vpop.f32.mrf.mxu0
    %2483 = vdwg.mxu0
    %2485 = vrot.lane.b32.xlu0 %v2408, 96
    %v2486 = vpop.permute.xlu0 %2485
    %v2487 = vsel %vm217, %v2486, 0
    %2489 = vmatprep.subr.mxu0 0.0
    %2490 = vmatpush1.msra.mxu0 0.0
    %2491 = vmatprep.subr.mxu0 0.0
    %2492 = vmatpush1.msra.mxu0 0.0
    %2493 = vmatprep.subr.mxu0 0.0
    %2494 = vmatpush1.msra.mxu0 0.0
    %2495 = vmatprep.subr.mxu0 0.0
    %2496 = vmatpush1.msra.mxu0 0.0
    %2497 = vmatprep.subr.mxu0 0.0
    %2498 = vmatpush1.msra.mxu0 0.0
    %2499 = vmatprep.subr.mxu0 0.0
    %2500 = vmatpush1.msra.mxu0 0.0
    %2501 = vmatprep.subr.mxu0 0.0
    %2502 = vmatpush1.msra.mxu0 0.0
    %2503 = vmatprep.subr.mxu0 0.0
    %2504 = vmatpush1.msra.mxu0 0.0
    %2505 = vmatprep.subr.mxu0 0.0
    %2506 = vmatpush1.msra.mxu0 0.0
    %2507 = vmatprep.subr.mxu0 0.0
    %2508 = vmatpush1.msra.mxu0 0.0
    %2509 = vmatprep.subr.mxu0 0.0
    %2510 = vmatpush1.msra.mxu0 0.0
    %2511 = vmatprep.subr.mxu0 0.0
    %2512 = vmatpush1.msra.mxu0 0.0
    %2513 = vmatprep.subr.mxu0 0.0
    %2514 = vmatpush1.msra.mxu0 %v85
    %2515 = vmatprep.subr.mxu0 0.0
    %2516 = vmatpush1.msra.mxu0 %v84
    %2517 = vmatprep.subr.mxu0 0.0
    %2518 = vmatpush1.msra.mxu0 %v83
    %2519 = vmatprep.subr.mxu0 0.0
    %2520 = vmatpush1.msra.mxu0 %v82
    %2521 = vmatprep.subr.mxu0 0.0
    %2522 = vmatpush2.msra.mxu0 0.0
    %2523 = vmatprep.subr.mxu0 0.0
    %2524 = vmatpush2.msra.mxu0 0.0
    %2525 = vmatprep.subr.mxu0 0.0
    %2526 = vmatpush2.msra.mxu0 0.0
    %2527 = vmatprep.subr.mxu0 0.0
    %2528 = vmatpush2.msra.mxu0 0.0
    %2529 = vmatprep.subr.mxu0 0.0
    %2530 = vmatpush2.msra.mxu0 0.0
    %2531 = vmatprep.subr.mxu0 0.0
    %2532 = vmatpush2.msra.mxu0 0.0
    %2533 = vmatprep.subr.mxu0 0.0
    %2534 = vmatpush2.msra.mxu0 0.0
    %2535 = vmatprep.subr.mxu0 0.0
    %2536 = vmatpush2.msra.mxu0 0.0
    %2537 = vmatprep.subr.mxu0 0.0
    %2538 = vmatpush2.msra.mxu0 0.0
    %2539 = vmatprep.subr.mxu0 0.0
    %2540 = vmatpush2.msra.mxu0 0.0
    %2541 = vmatprep.subr.mxu0 0.0
    %2542 = vmatpush2.msra.mxu0 0.0
    %2543 = vmatprep.subr.mxu0 0.0
    %2544 = vmatpush2.msra.mxu0 0.0
    %2545 = vmatprep.subr.mxu0 0.0
    %2546 = vmatpush2.msra.mxu0 0.0
    %2547 = vmatprep.subr.mxu0 0.0
    %2548 = vmatpush2.msra.mxu0 0.0
    %2549 = vmatprep.subr.mxu0 0.0
    %2550 = vmatpush2.msra.mxu0 0.0
    %2551 = vmatprep.subr.mxu0 0.0
    %2552 = vmatpush2.msra.mxu0 0.0
    %2553 = vmatprep.mubr.f32.mxu0 0.0
    %2554 = vmatmul.mubr.f32.gmra.mxu0 %v2487
    %v2555 = vpop.f32.mrf.mxu0
    %v2556 = vadd.f32 %v2481, %v2555
    %v2557 = vpop.f32.mrf.mxu0
    %2558 = vdwg.mxu0
    %v2559 = vadd.f32 %v2556, %v109
    %v2560 = vtanh.pop %v2559
    %v2561 = vmul.f32 %v2560, 0.5
    %v2562 = vadd.f32 %v2561, 0.5
    %v2563 = vmul.f32 %v2562, %v2223
    %2565 = vrot.lane.b32.xlu0 %v2560, 64
    %v2566 = vpop.permute.xlu0 %2565
    %v2568 = vmul.f32 %v2562, %v2566
    %2570 = vrot.lane.b32.xlu0 %v2568, 32
    %v2571 = vpop.permute.xlu0 %2570
    %v2573 = vadd.f32 %v2563, %v2571
    %v2574 = vtanh.pop %v2573
    %2576 = vrot.lane.b32.xlu0 %v2574, 64
    %v2577 = vpop.permute.xlu0 %2576
    %v2579 = vmul.f32 %v2562, %v2577
    %v2580 = vrot.slane %v69, 7
    %v2581 = vrot.slane %v70, 6
    %v2582 = vsel %vm120, %v2581, %v2580
    %v2583 = vrot.slane %v71, 5
    %v2584 = vsel %vm123, %v2583, %v2582
    %v2585 = vrot.slane %v72, 4
    %v2586 = vsel %vm126, %v2585, %v2584
    %v2587 = vrot.slane %v73, 3
    %v2588 = vsel %vm129, %v2587, %v2586
    %v2589 = vrot.slane %v74, 2
    %v2590 = vsel %vm132, %v2589, %v2588
    %v2591 = vrot.slane %v75, 1
    %v2592 = vsel %vm135, %v2591, %v2590
    %v2593 = vsel %vm138, %v76, %v2592
    %v2594 = vsel %vm140, %v2593, 0
    %2596 = vmatprep.subr.mxu0 0.0
    %2597 = vmatpush1.msra.mxu0 0.0
    %2598 = vmatprep.subr.mxu0 0.0
    %2599 = vmatpush1.msra.mxu0 0.0
    %2600 = vmatprep.subr.mxu0 0.0
    %2601 = vmatpush1.msra.mxu0 0.0
    %2602 = vmatprep.subr.mxu0 0.0
    %2603 = vmatpush1.msra.mxu0 0.0
    %2604 = vmatprep.subr.mxu0 0.0
    %2605 = vmatpush1.msra.mxu0 0.0
    %2606 = vmatprep.subr.mxu0 0.0
    %2607 = vmatpush1.msra.mxu0 0.0
    %2608 = vmatprep.subr.mxu0 0.0
    %2609 = vmatpush1.msra.mxu0 0.0
    %2610 = vmatprep.subr.mxu0 0.0
    %2611 = vmatpush1.msra.mxu0 0.0
    %2612 = vmatprep.subr.mxu0 0.0
    %2613 = vmatpush1.msra.mxu0 0.0
    %2614 = vmatprep.subr.mxu0 0.0
    %2615 = vmatpush1.msra.mxu0 0.0
    %2616 = vmatprep.subr.mxu0 0.0
    %2617 = vmatpush1.msra.mxu0 0.0
    %2618 = vmatprep.subr.mxu0 0.0
    %2619 = vmatpush1.msra.mxu0 0.0
    %2620 = vmatprep.subr.mxu0 0.0
    %2621 = vmatpush1.msra.mxu0 0.0
    %2622 = vmatprep.subr.mxu0 0.0
    %2623 = vmatpush1.msra.mxu0 0.0
    %2624 = vmatprep.subr.mxu0 0.0
    %2625 = vmatpush1.msra.mxu0 0.0
    %2626 = vmatprep.subr.mxu0 0.0
    %2627 = vmatpush1.msra.mxu0 %v145
    %2628 = vmatprep.subr.mxu0 0.0
    %2629 = vmatpush2.msra.mxu0 0.0
    %2630 = vmatprep.subr.mxu0 0.0
    %2631 = vmatpush2.msra.mxu0 0.0
    %2632 = vmatprep.subr.mxu0 0.0
    %2633 = vmatpush2.msra.mxu0 0.0
    %2634 = vmatprep.subr.mxu0 0.0
    %2635 = vmatpush2.msra.mxu0 0.0
    %2636 = vmatprep.subr.mxu0 0.0
    %2637 = vmatpush2.msra.mxu0 0.0
    %2638 = vmatprep.subr.mxu0 0.0
    %2639 = vmatpush2.msra.mxu0 0.0
    %2640 = vmatprep.subr.mxu0 0.0
    %2641 = vmatpush2.msra.mxu0 0.0
    %2642 = vmatprep.subr.mxu0 0.0
    %2643 = vmatpush2.msra.mxu0 0.0
    %2644 = vmatprep.subr.mxu0 0.0
    %2645 = vmatpush2.msra.mxu0 0.0
    %2646 = vmatprep.subr.mxu0 0.0
    %2647 = vmatpush2.msra.mxu0 0.0
    %2648 = vmatprep.subr.mxu0 0.0
    %2649 = vmatpush2.msra.mxu0 0.0
    %2650 = vmatprep.subr.mxu0 0.0
    %2651 = vmatpush2.msra.mxu0 0.0
    %2652 = vmatprep.subr.mxu0 0.0
    %2653 = vmatpush2.msra.mxu0 0.0
    %2654 = vmatprep.subr.mxu0 0.0
    %2655 = vmatpush2.msra.mxu0 0.0
    %2656 = vmatprep.subr.mxu0 0.0
    %2657 = vmatpush2.msra.mxu0 0.0
    %2658 = vmatprep.subr.mxu0 0.0
    %2659 = vmatpush2.msra.mxu0 0.0
    %2660 = vmatprep.mubr.f32.mxu0 0.0
    %2661 = vmatmul.mubr.f32.gmra.mxu0 %v2594
    %v2662 = vpop.f32.mrf.mxu0
    %v2663 = vadd.f32 %v95, %v2662
    %v2664 = vpop.f32.mrf.mxu0
    %2665 = vdwg.mxu0
    %2666 = vmatprep.subr.mxu0 0.0
    %2667 = vmatpush1.msra.mxu0 0.0
    %2668 = vmatprep.subr.mxu0 0.0
    %2669 = vmatpush1.msra.mxu0 0.0
    %2670 = vmatprep.subr.mxu0 0.0
    %2671 = vmatpush1.msra.mxu0 0.0
    %2672 = vmatprep.subr.mxu0 0.0
    %2673 = vmatpush1.msra.mxu0 0.0
    %2674 = vmatprep.subr.mxu0 0.0
    %2675 = vmatpush1.msra.mxu0 0.0
    %2676 = vmatprep.subr.mxu0 0.0
    %2677 = vmatpush1.msra.mxu0 0.0
    %2678 = vmatprep.subr.mxu0 0.0
    %2679 = vmatpush1.msra.mxu0 0.0
    %2680 = vmatprep.subr.mxu0 0.0
    %2681 = vmatpush1.msra.mxu0 0.0
    %2682 = vmatprep.subr.mxu0 0.0
    %2683 = vmatpush1.msra.mxu0 0.0
    %2684 = vmatprep.subr.mxu0 0.0
    %2685 = vmatpush1.msra.mxu0 0.0
    %2686 = vmatprep.subr.mxu0 0.0
    %2687 = vmatpush1.msra.mxu0 0.0
    %2688 = vmatprep.subr.mxu0 0.0
    %2689 = vmatpush1.msra.mxu0 0.0
    %2690 = vmatprep.subr.mxu0 0.0
    %2691 = vmatpush1.msra.mxu0 %v81
    %2692 = vmatprep.subr.mxu0 0.0
    %2693 = vmatpush1.msra.mxu0 %v80
    %2694 = vmatprep.subr.mxu0 0.0
    %2695 = vmatpush1.msra.mxu0 %v79
    %2696 = vmatprep.subr.mxu0 0.0
    %2697 = vmatpush1.msra.mxu0 %v78
    %2698 = vmatprep.subr.mxu0 0.0
    %2699 = vmatpush2.msra.mxu0 0.0
    %2700 = vmatprep.subr.mxu0 0.0
    %2701 = vmatpush2.msra.mxu0 0.0
    %2702 = vmatprep.subr.mxu0 0.0
    %2703 = vmatpush2.msra.mxu0 0.0
    %2704 = vmatprep.subr.mxu0 0.0
    %2705 = vmatpush2.msra.mxu0 0.0
    %2706 = vmatprep.subr.mxu0 0.0
    %2707 = vmatpush2.msra.mxu0 0.0
    %2708 = vmatprep.subr.mxu0 0.0
    %2709 = vmatpush2.msra.mxu0 0.0
    %2710 = vmatprep.subr.mxu0 0.0
    %2711 = vmatpush2.msra.mxu0 0.0
    %2712 = vmatprep.subr.mxu0 0.0
    %2713 = vmatpush2.msra.mxu0 0.0
    %2714 = vmatprep.subr.mxu0 0.0
    %2715 = vmatpush2.msra.mxu0 0.0
    %2716 = vmatprep.subr.mxu0 0.0
    %2717 = vmatpush2.msra.mxu0 0.0
    %2718 = vmatprep.subr.mxu0 0.0
    %2719 = vmatpush2.msra.mxu0 0.0
    %2720 = vmatprep.subr.mxu0 0.0
    %2721 = vmatpush2.msra.mxu0 0.0
    %2722 = vmatprep.subr.mxu0 0.0
    %2723 = vmatpush2.msra.mxu0 0.0
    %2724 = vmatprep.subr.mxu0 0.0
    %2725 = vmatpush2.msra.mxu0 0.0
    %2726 = vmatprep.subr.mxu0 0.0
    %2727 = vmatpush2.msra.mxu0 0.0
    %2728 = vmatprep.subr.mxu0 0.0
    %2729 = vmatpush2.msra.mxu0 0.0
    %2730 = vmatprep.mubr.f32.mxu0 0.0
    %2731 = vmatmul.mubr.f32.gmra.mxu0 %v2487
    %v2732 = vpop.f32.mrf.mxu0
    %v2733 = vadd.f32 %v102, %v2732
    %v2734 = vpop.f32.mrf.mxu0
    %2735 = vdwg.mxu0
    %v2736 = vadd.f32 %v2663, %v2733
    %v2737 = vtanh.pop %v2736
    %v2738 = vmul.f32 %v2737, 0.5
    %v2739 = vadd.f32 %v2738, 0.5
    %2741 = vrot.lane.b32.xlu0 %v2733, 64
    %v2742 = vpop.permute.xlu0 %2741
    %v2744 = vmul.f32 %v2739, %v2742
    %2746 = vrot.lane.b32.xlu0 %v2744, 64
    %v2747 = vpop.permute.xlu0 %2746
    %v2749 = vadd.f32 %v2663, %v2747
    %v2750 = vtanh.pop %v2749
    %v2751 = vsub.f32 1.0, %v2739
    %2753 = vrot.lane.b32.xlu0 %v2750, 96
    %v2754 = vpop.permute.xlu0 %2753
    %v2756 = vmul.f32 %v2751, %v2754
    %v2757 = vmul.f32 %v2739, %v2408
    %v2758 = vadd.f32 %v2756, %v2757
    %2760 = vrot.lane.b32.xlu0 %v2579, 32
    %v2761 = vpop.permute.xlu0 %2760
    %v2762 = vsel %vm217, %v2761, 0
    %2764 = vmatprep.subr.mxu0 0.0
    %2765 = vmatpush1.msra.mxu0 0.0
    %2766 = vmatprep.subr.mxu0 0.0
    %2767 = vmatpush1.msra.mxu0 0.0
    %2768 = vmatprep.subr.mxu0 0.0
    %2769 = vmatpush1.msra.mxu0 0.0
    %2770 = vmatprep.subr.mxu0 0.0
    %2771 = vmatpush1.msra.mxu0 0.0
    %2772 = vmatprep.subr.mxu0 0.0
    %2773 = vmatpush1.msra.mxu0 0.0
    %2774 = vmatprep.subr.mxu0 0.0
    %2775 = vmatpush1.msra.mxu0 0.0
    %2776 = vmatprep.subr.mxu0 0.0
    %2777 = vmatpush1.msra.mxu0 0.0
    %2778 = vmatprep.subr.mxu0 0.0
    %2779 = vmatpush1.msra.mxu0 0.0
    %2780 = vmatprep.subr.mxu0 0.0
    %2781 = vmatpush1.msra.mxu0 0.0
    %2782 = vmatprep.subr.mxu0 0.0
    %2783 = vmatpush1.msra.mxu0 0.0
    %2784 = vmatprep.subr.mxu0 0.0
    %2785 = vmatpush1.msra.mxu0 0.0
    %2786 = vmatprep.subr.mxu0 0.0
    %2787 = vmatpush1.msra.mxu0 0.0
    %2788 = vmatprep.subr.mxu0 0.0
    %2789 = vmatpush1.msra.mxu0 %v89
    %2790 = vmatprep.subr.mxu0 0.0
    %2791 = vmatpush1.msra.mxu0 %v88
    %2792 = vmatprep.subr.mxu0 0.0
    %2793 = vmatpush1.msra.mxu0 %v87
    %2794 = vmatprep.subr.mxu0 0.0
    %2795 = vmatpush1.msra.mxu0 %v86
    %2796 = vmatprep.subr.mxu0 0.0
    %2797 = vmatpush2.msra.mxu0 0.0
    %2798 = vmatprep.subr.mxu0 0.0
    %2799 = vmatpush2.msra.mxu0 0.0
    %2800 = vmatprep.subr.mxu0 0.0
    %2801 = vmatpush2.msra.mxu0 0.0
    %2802 = vmatprep.subr.mxu0 0.0
    %2803 = vmatpush2.msra.mxu0 0.0
    %2804 = vmatprep.subr.mxu0 0.0
    %2805 = vmatpush2.msra.mxu0 0.0
    %2806 = vmatprep.subr.mxu0 0.0
    %2807 = vmatpush2.msra.mxu0 0.0
    %2808 = vmatprep.subr.mxu0 0.0
    %2809 = vmatpush2.msra.mxu0 0.0
    %2810 = vmatprep.subr.mxu0 0.0
    %2811 = vmatpush2.msra.mxu0 0.0
    %2812 = vmatprep.subr.mxu0 0.0
    %2813 = vmatpush2.msra.mxu0 0.0
    %2814 = vmatprep.subr.mxu0 0.0
    %2815 = vmatpush2.msra.mxu0 0.0
    %2816 = vmatprep.subr.mxu0 0.0
    %2817 = vmatpush2.msra.mxu0 0.0
    %2818 = vmatprep.subr.mxu0 0.0
    %2819 = vmatpush2.msra.mxu0 0.0
    %2820 = vmatprep.subr.mxu0 0.0
    %2821 = vmatpush2.msra.mxu0 0.0
    %2822 = vmatprep.subr.mxu0 0.0
    %2823 = vmatpush2.msra.mxu0 0.0
    %2824 = vmatprep.subr.mxu0 0.0
    %2825 = vmatpush2.msra.mxu0 0.0
    %2826 = vmatprep.subr.mxu0 0.0
    %2827 = vmatpush2.msra.mxu0 0.0
    %2828 = vmatprep.mubr.f32.mxu0 0.0
    %2829 = vmatmul.mubr.f32.gmra.mxu0 %v2762
    %v2830 = vpop.f32.mrf.mxu0
    %v2831 = vadd.f32 0.0, %v2830
    %v2832 = vpop.f32.mrf.mxu0
    %2833 = vdwg.mxu0
    %2835 = vrot.lane.b32.xlu0 %v2758, 96
    %v2836 = vpop.permute.xlu0 %2835
    %v2837 = vsel %vm217, %v2836, 0
    %2839 = vmatprep.subr.mxu0 0.0
    %2840 = vmatpush1.msra.mxu0 0.0
    %2841 = vmatprep.subr.mxu0 0.0
    %2842 = vmatpush1.msra.mxu0 0.0
    %2843 = vmatprep.subr.mxu0 0.0
    %2844 = vmatpush1.msra.mxu0 0.0
    %2845 = vmatprep.subr.mxu0 0.0
    %2846 = vmatpush1.msra.mxu0 0.0
    %2847 = vmatprep.subr.mxu0 0.0
    %2848 = vmatpush1.msra.mxu0 0.0
    %2849 = vmatprep.subr.mxu0 0.0
    %2850 = vmatpush1.msra.mxu0 0.0
    %2851 = vmatprep.subr.mxu0 0.0
    %2852 = vmatpush1.msra.mxu0 0.0
    %2853 = vmatprep.subr.mxu0 0.0
    %2854 = vmatpush1.msra.mxu0 0.0
    %2855 = vmatprep.subr.mxu0 0.0
    %2856 = vmatpush1.msra.mxu0 0.0
    %2857 = vmatprep.subr.mxu0 0.0
    %2858 = vmatpush1.msra.mxu0 0.0
    %2859 = vmatprep.subr.mxu0 0.0
    %2860 = vmatpush1.msra.mxu0 0.0
    %2861 = vmatprep.subr.mxu0 0.0
    %2862 = vmatpush1.msra.mxu0 0.0
    %2863 = vmatprep.subr.mxu0 0.0
    %2864 = vmatpush1.msra.mxu0 %v85
    %2865 = vmatprep.subr.mxu0 0.0
    %2866 = vmatpush1.msra.mxu0 %v84
    %2867 = vmatprep.subr.mxu0 0.0
    %2868 = vmatpush1.msra.mxu0 %v83
    %2869 = vmatprep.subr.mxu0 0.0
    %2870 = vmatpush1.msra.mxu0 %v82
    %2871 = vmatprep.subr.mxu0 0.0
    %2872 = vmatpush2.msra.mxu0 0.0
    %2873 = vmatprep.subr.mxu0 0.0
    %2874 = vmatpush2.msra.mxu0 0.0
    %2875 = vmatprep.subr.mxu0 0.0
    %2876 = vmatpush2.msra.mxu0 0.0
    %2877 = vmatprep.subr.mxu0 0.0
    %2878 = vmatpush2.msra.mxu0 0.0
    %2879 = vmatprep.subr.mxu0 0.0
    %2880 = vmatpush2.msra.mxu0 0.0
    %2881 = vmatprep.subr.mxu0 0.0
    %2882 = vmatpush2.msra.mxu0 0.0
    %2883 = vmatprep.subr.mxu0 0.0
    %2884 = vmatpush2.msra.mxu0 0.0
    %2885 = vmatprep.subr.mxu0 0.0
    %2886 = vmatpush2.msra.mxu0 0.0
    %2887 = vmatprep.subr.mxu0 0.0
    %2888 = vmatpush2.msra.mxu0 0.0
    %2889 = vmatprep.subr.mxu0 0.0
    %2890 = vmatpush2.msra.mxu0 0.0
    %2891 = vmatprep.subr.mxu0 0.0
    %2892 = vmatpush2.msra.mxu0 0.0
    %2893 = vmatprep.subr.mxu0 0.0
    %2894 = vmatpush2.msra.mxu0 0.0
    %2895 = vmatprep.subr.mxu0 0.0
    %2896 = vmatpush2.msra.mxu0 0.0
    %2897 = vmatprep.subr.mxu0 0.0
    %2898 = vmatpush2.msra.mxu0 0.0
    %2899 = vmatprep.subr.mxu0 0.0
    %2900 = vmatpush2.msra.mxu0 0.0
    %2901 = vmatprep.subr.mxu0 0.0
    %2902 = vmatpush2.msra.mxu0 0.0
    %2903 = vmatprep.mubr.f32.mxu0 0.0
    %2904 = vmatmul.mubr.f32.gmra.mxu0 %v2837
    %v2905 = vpop.f32.mrf.mxu0
    %v2906 = vadd.f32 %v2831, %v2905
    %v2907 = vpop.f32.mrf.mxu0
    %2908 = vdwg.mxu0
    %v2909 = vadd.f32 %v2906, %v109
    %v2910 = vtanh.pop %v2909
    %v2911 = vmul.f32 %v2910, 0.5
    %v2912 = vadd.f32 %v2911, 0.5
    %v2913 = vmul.f32 %v2912, %v2573
    %2915 = vrot.lane.b32.xlu0 %v2910, 64
    %v2916 = vpop.permute.xlu0 %2915
    %v2918 = vmul.f32 %v2912, %v2916
    %2920 = vrot.lane.b32.xlu0 %v2918, 32
    %v2921 = vpop.permute.xlu0 %2920
    %v2923 = vadd.f32 %v2913, %v2921
    %v2924 = vtanh.pop %v2923
    %2926 = vrot.lane.b32.xlu0 %v2924, 64
    %v2927 = vpop.permute.xlu0 %2926
    %v2929 = vmul.f32 %v2912, %v2927
    %v2930 = vld [vmem:[#allocation5] sm:$0xff]
    %v2931 = vld [vmem:[#allocation5 + $0x8] sm:$0xff]
    %v2932 = vld [vmem:[#allocation5 + $0x10] sm:$0xff]
    %v2933 = vld [vmem:[#allocation5 + $0x18] sm:$0xff]
    %v2934 = vld [vmem:[%s9] sm:$0x1]
    %v2936 = vlaneseq
    %v2937 = vshrl.u32 %v2936, 7
    %v2938 = vsub.s32 0, %v2937
    %v2939 = vrot.slane %v2934, %v2938
    %2941 = vmatprep.subr.mxu0 0.0
    %2942 = vmatpush1.msra.mxu0 0.0
    %2943 = vmatprep.subr.mxu0 0.0
    %2944 = vmatpush1.msra.mxu0 0.0
    %2945 = vmatprep.subr.mxu0 0.0
    %2946 = vmatpush1.msra.mxu0 0.0
    %2947 = vmatprep.subr.mxu0 0.0
    %2948 = vmatpush1.msra.mxu0 0.0
    %2949 = vmatprep.subr.mxu0 0.0
    %2950 = vmatpush1.msra.mxu0 0.0
    %2951 = vmatprep.subr.mxu0 0.0
    %2952 = vmatpush1.msra.mxu0 0.0
    %2953 = vmatprep.subr.mxu0 0.0
    %2954 = vmatpush1.msra.mxu0 0.0
    %2955 = vmatprep.subr.mxu0 0.0
    %2956 = vmatpush1.msra.mxu0 0.0
    %2957 = vmatprep.subr.mxu0 0.0
    %2958 = vmatpush1.msra.mxu0 0.0
    %2959 = vmatprep.subr.mxu0 0.0
    %2960 = vmatpush1.msra.mxu0 0.0
    %2961 = vmatprep.subr.mxu0 0.0
    %2962 = vmatpush1.msra.mxu0 0.0
    %2963 = vmatprep.subr.mxu0 0.0
    %2964 = vmatpush1.msra.mxu0 0.0
    %2965 = vmatprep.subr.mxu0 0.0
    %2966 = vmatpush1.msra.mxu0 %v2933
    %2967 = vmatprep.subr.mxu0 0.0
    %2968 = vmatpush1.msra.mxu0 %v2932
    %2969 = vmatprep.subr.mxu0 0.0
    %2970 = vmatpush1.msra.mxu0 %v2931
    %2971 = vmatprep.subr.mxu0 0.0
    %2972 = vmatpush1.msra.mxu0 %v2930
    %2973 = vmatprep.subr.mxu0 0.0
    %2974 = vmatpush2.msra.mxu0 0.0
    %2975 = vmatprep.subr.mxu0 0.0
    %2976 = vmatpush2.msra.mxu0 0.0
    %2977 = vmatprep.subr.mxu0 0.0
    %2978 = vmatpush2.msra.mxu0 0.0
    %2979 = vmatprep.subr.mxu0 0.0
    %2980 = vmatpush2.msra.mxu0 0.0
    %2981 = vmatprep.subr.mxu0 0.0
    %2982 = vmatpush2.msra.mxu0 0.0
    %2983 = vmatprep.subr.mxu0 0.0
    %2984 = vmatpush2.msra.mxu0 0.0
    %2985 = vmatprep.subr.mxu0 0.0
    %2986 = vmatpush2.msra.mxu0 0.0
    %2987 = vmatprep.subr.mxu0 0.0
    %2988 = vmatpush2.msra.mxu0 0.0
    %2989 = vmatprep.subr.mxu0 0.0
    %2990 = vmatpush2.msra.mxu0 0.0
    %2991 = vmatprep.subr.mxu0 0.0
    %2992 = vmatpush2.msra.mxu0 0.0
    %2993 = vmatprep.subr.mxu0 0.0
    %2994 = vmatpush2.msra.mxu0 0.0
    %2995 = vmatprep.subr.mxu0 0.0
    %2996 = vmatpush2.msra.mxu0 0.0
    %2997 = vmatprep.subr.mxu0 0.0
    %2998 = vmatpush2.msra.mxu0 0.0
    %2999 = vmatprep.subr.mxu0 0.0
    %3000 = vmatpush2.msra.mxu0 0.0
    %3001 = vmatprep.subr.mxu0 0.0
    %3002 = vmatpush2.msra.mxu0 0.0
    %3003 = vmatprep.subr.mxu0 0.0
    %3004 = vmatpush2.msra.mxu0 0.0
    %3005 = vmatprep.mubr.f32.mxu0 0.0
    %3006 = vmatmul.mubr.f32.gmra.mxu0 %v2837
    %v3007 = vpop.f32.mrf.mxu0
    %v3008 = vadd.f32 %v2939, %v3007
    %v3009 = vpop.f32.mrf.mxu0
    %3010 = vdwg.mxu0
    %v3011 = vtanh.pop %v3008
    %v3012 = vmul.f32 %v3011, 0.5
    %v3013 = vadd.f32 %v3012, 0.5
    %3015 = vrot.lane.b32.xlu0 %v3011, 64
    %v3016 = vpop.permute.xlu0 %3015
    %v3018 = vmul.f32 %v3013, %v3016
    %v3019 = vtanh.pop %v3018
    %3021 = vrot.lane.b32.xlu0 %v3019, 32
    %v3022 = vpop.permute.xlu0 %3021
    %v3024 = vmul.f32 %v3013, %v3022
    %v3025 = vld [vmem:[%s10] sm:$0x1]
    %v3027 = vlaneseq
    %v3028 = vshrl.u32 %v3027, 7
    %v3029 = vsub.s32 0, %v3028
    %v3030 = vrot.slane %v3025, %v3029
    %3032 = vrot.lane.b32.xlu0 %v3030, 96
    %v3033 = vpop.permute.xlu0 %3032
    %v3035 = vmul.f32 %v2929, %v3033
    %3037 = vrot.lane.b32.xlu0 %v3035, 32
    %v3038 = vpop.permute.xlu0 %3037
    %v3040 = vsel %vm217, %v3038, 0.0
    %3041 = vadd.xlane.f32.xlu0 %v3040
    %v3042 = vpop.xlane.xlu0 %3041
    %v3043 = vmul.f32 %v3024, %v3030
    %3045 = vrot.lane.b32.xlu0 %v3043, 96
    %v3046 = vpop.permute.xlu0 %3045
    %v3048 = vsel %vm217, %v3046, 0.0
    %3049 = vadd.xlane.f32.xlu0 %v3048
    %v3050 = vpop.xlane.xlu0 %3049
    %v3051 = vadd.f32 %v3042, %v3050
    %v3052 = vld [vmem:[#allocation2] sm:$0x1]
    %v3054 = vlaneseq
    %v3055 = vshrl.u32 %v3054, 7
    %v3056 = vsub.s32 0, %v3055
    %v3057 = vrot.slane %v3052, %v3056
    %v3059 = vadd.f32 %v3051, %v3057
    %vm3060 = vcmask 7168
    %3061 = vst.msk [vmem:[%s12] sm:$0xff] %vm3060, %v3059
    // Predicated region
    $region58: #{tpu_custom_call.1} parent=1 // pred_check
      _
    $region59: #{tpu_custom_call.1} parent=1 // pred_check_branch
      %3063 = sbr.rel (0) target = $region61
    $region60: #{tpu_custom_call.1} parent=1 // pred_region
      _
    $region61: #{tpu_custom_call.1} parent=1 // pred_fallthru
      _
    // Predicated region
    $region62: #{tpu_custom_call.1} parent=1 // pred_check
      _
    $region63: #{tpu_custom_call.1} parent=1 // pred_check_branch
      %3065 = sbr.rel (0) target = $region65
    $region64: #{tpu_custom_call.1} parent=1 // pred_region
      _
    $region65: #{tpu_custom_call.1} parent=1 // pred_fallthru
      _
    %3066 = vsyncpa [#allocation4], 1
    %3067 = vsyncpa [#allocation6], 1

</llo_original>
